<compile_context>
chip_gen: v6e
topology: v6e:2x2x1
jax: 0.10.0
libtpu: 0.0.40
codegen_flags: <defaults>
</compile_context>

<pallas_src>
import functools

import jax
import jax.numpy as jnp
from jax import lax
from jax.experimental import pallas as pl
from jax.experimental.pallas import tpu as pltpu

BN_EPS = 1e-5
_TARGET_GEMM_ROWS = 1024  # ~512-1024 GEMM rows/step is the measured roofline sweet spot


def _round_up(x, m):
    return (x + m - 1) // m * m


# --------------------------------------------------------------------------- #
# Kernel-side helpers
# --------------------------------------------------------------------------- #
def _conv_tile(xm_ref, xh0_ref, xh1_ref, w_ref, *, th, wo, cin, cpad, stride):
    """3x3 conv for one row tile -> (th*wo, cpad) f32.

    xm_ref : (1, th*stride, Wp, Cin) bf16 main rows of the padded NHWC input.
    xh*_ref: (1, 1, Wp, Cin)         bf16 halo rows just below the main block.
    w_ref  : (3, 3, Cin, Cpad)       bf16 weights laid out (kh, kw, cin, cout_pad).
    """
    # Stitch main + halo rows; concat is along the untiled major axis (cheap).
    xt = jnp.concatenate([xm_ref[0], xh0_ref[0], xh1_ref[0]], axis=0)
    mt = th * wo
    acc = jnp.zeros((mt, cpad), jnp.float32)
    for kh in range(3):
        for kw in range(3):
            if stride == 1:
                tap = xt[kh:kh + th, kw:kw + wo, :]
            else:
                # TODO(synk): stride>1 uses sublane-strided slices (one XLU
                # relayout per tap); a host-side even/odd phase split would be
                # faster.  Path is correct-by-construction but not exercised
                # by the demo (stride=1).
                tap = lax.slice(
                    xt, (kh, kw, 0),
                    (kh + (th - 1) * stride + 1,
                     kw + (wo - 1) * stride + 1, cin),
                    (stride, stride, 1))
            # One small GEMM per tap (K = Cin): identical total MXU work to a
            # packed K=9*Cin GEMM, without the lane-sparse 9*Cin concat or the
            # (th, wo, 9*cin) im2col temp.
            acc = acc + jnp.dot(tap.reshape(mt, cin), w_ref[kh, kw],
                                preferred_element_type=jnp.float32)
    return acc


def _conv_stats_kernel(xm_ref, xh0_ref, xh1_ref, w_ref, sum_ref, sq_ref,
                       *, th, wo, cin, cpad, stride):
    """Pass 1: per-tile partial BN statistics (sum, sum of squares) per channel."""
    conv = _conv_tile(xm_ref, xh0_ref, xh1_ref, w_ref,
                      th=th, wo=wo, cin=cin, cpad=cpad, stride=stride)
    sum_ref[0, 0] = jnp.sum(conv, axis=0, keepdims=True)        # (1, Cpad)
    sq_ref[0, 0] = jnp.sum(conv * conv, axis=0, keepdims=True)  # (1, Cpad)


def _conv_bn_relu_kernel(xm_ref, xh0_ref, xh1_ref, w_ref, scale_ref, shift_ref,
                         o_ref, *, th, wo, cin, cpad, cout, stride):
    """Pass 2: conv (recomputed) -> folded BN affine -> ReLU -> unpadded store."""
    conv = _conv_tile(xm_ref, xh0_ref, xh1_ref, w_ref,
                      th=th, wo=wo, cin=cin, cpad=cpad, stride=stride)
    y = conv[:, :cout] * scale_ref[...] + shift_ref[...]        # f32 BN math
    o_ref[0] = jnp.maximum(y, 0.0).astype(o_ref.dtype)


# --------------------------------------------------------------------------- #
# Host-side helpers
# --------------------------------------------------------------------------- #
def _vmem_limit_bytes():
    # Generation-aware scoped-VMEM cap (v7x has only 64 MiB per TensorCore).
    try:
        phys = int(pltpu.get_tpu_info().vmem_capacity_bytes)
    except Exception:
        phys = 64 << 20
    return int(min(phys * 3 // 4, 96 << 20))


def _tile_vmem_bytes(th, stride, wp, wo, cin, cout, cpad):
    """Rough per-step VMEM footprint: double-buffered I/O + weights + temps."""
    mt = th * wo
    in_main = th * stride * wp * cin * 2            # bf16 input block
    halo = 2 * wp * cin * 2
    wts = 9 * cin * cpad * 2
    out = mt * cout * 4                             # f32 output block (unpadded)
    conv_tmp = mt * cpad * 4                        # f32 accumulator value
    stitch_tmp = (th * stride + 2) * wp * cin * 2   # concat result
    return 2 * (in_main + halo + out) + wts + conv_tmp + stitch_tmp + (2 << 20)


def _pick_tile_rows(ho, wo, wp, cin, cout, cpad, stride, vmem_cap):
    """Output rows per tile: multiple of 8, ~_TARGET_GEMM_ROWS GEMM rows,
    shrunk until the per-step VMEM estimate fits the budget with headroom."""
    th = _round_up(min(ho, max(1, _TARGET_GEMM_ROWS // max(wo, 1))), 8)
    th = min(th, _round_up(ho, 8))
    budget = vmem_cap // 2
    while th > 8 and _tile_vmem_bytes(th, stride, wp, wo, cin, cout, cpad) > budget:
        th -= 8
    return th


@functools.partial(jax.jit, static_argnames=("stride",))
def convolutional_block(x, weight, gamma, beta, *, stride=1):
    """x: (N, Cin, H, W) NCHW; weight: (Cout, Cin, 3, 3); gamma/beta: (Cout,).
    Returns NCHW float32 = ReLU(BN_train(Conv2d_3x3_pad1_nobias(x)))."""
    N, Cin, H, W = x.shape
    Cout = weight.shape[0]
    Ho = (H + 2 - 3) // stride + 1
    Wo = (W + 2 - 3) // stride + 1
    Wp = W + 2
    Cpad = _round_up(Cout, 128)                     # lane-dense MXU output columns

    vmem_cap = _vmem_limit_bytes()
    th = _pick_tile_rows(Ho, Wo, Wp, Cin, Cout, Cpad, stride, vmem_cap)
    th_s = th * stride                              # input rows per main block
    num_t = int(pl.cdiv(Ho, th))
    Mt = th * Wo
    M_total = N * Ho * Wo

    # NCHW -> NHWC bf16 and zero-pad once: 1 conv-padding row/col per side plus
    # extra zero rows at the bottom so every tile's main+halo blocks are full and
    # in bounds.  Zero rows produce conv == 0 exactly, so they add 0 to the BN
    # sum / sum-of-squares (no masking needed); pass 2's writes past Ho*Wo are
    # clipped by the partial output block.
    pad_bottom = num_t * th_s + 2 - (H + 2)
    xp = jnp.pad(jnp.transpose(x, (0, 2, 3, 1)).astype(jnp.bfloat16),
                 ((0, 0), (1, 1 + pad_bottom), (1, 1), (0, 0)))

    # Weights: (Cout, Cin, 3, 3) -> (3, 3, Cin, Cpad) bf16, zero-padded columns.
    w4 = jnp.transpose(weight, (2, 3, 1, 0))
    w4 = jnp.pad(w4, ((0, 0), (0, 0), (0, 0), (0, Cpad - Cout))).astype(jnp.bfloat16)

    grid = (N, num_t)
    x_main_spec = pl.BlockSpec((1, th_s, Wp, Cin), lambda n, t: (n, t, 0, 0))
    # Block-size-1 H dim => index map returns an element row offset: the two halo
    # rows just below the main block (only duplicated traffic: 2 rows per tile).
    halo0_spec = pl.BlockSpec((1, 1, Wp, Cin),
                              lambda n, t: (n, (t + 1) * th_s, 0, 0))
    halo1_spec = pl.BlockSpec((1, 1, Wp, Cin),
                              lambda n, t: (n, (t + 1) * th_s + 1, 0, 0))
    w_spec = pl.BlockSpec((3, 3, Cin, Cpad), lambda n, t: (0, 0, 0, 0))  # resident

    cparams = pltpu.CompilerParams(
        dimension_semantics=("parallel", "parallel"),   # megacore-shardable grid
        vmem_limit_bytes=vmem_cap)

    # ---------------- pass 1: per-tile partial BN statistics -----------------
    sums, sqs = pl.pallas_call(
        functools.partial(_conv_stats_kernel, th=th, wo=Wo, cin=Cin, cpad=Cpad,
                          stride=stride),
        out_shape=(jax.ShapeDtypeStruct((N, num_t, 1, Cpad), jnp.float32),
                   jax.ShapeDtypeStruct((N, num_t, 1, Cpad), jnp.float32)),
        grid=grid,
        in_specs=[x_main_spec, halo0_spec, halo1_spec, w_spec],
        out_specs=(pl.BlockSpec((1, 1, 1, Cpad), lambda n, t: (n, t, 0, 0)),
                   pl.BlockSpec((1, 1, 1, Cpad), lambda n, t: (n, t, 0, 0))),
        compiler_params=cparams,
    )(xp, xp, xp, w4)

    # Tiny cross-tile reduction + BN folding in plain JAX (Cout floats).
    # NOTE: one-pass E[x^2]-E[x]^2 in f32, clamped at 0 (fine at these scales;
    # switch to a Welford-style merge if activations become very large).
    s_tot = jnp.sum(sums, axis=(0, 1))[0, :Cout]
    q_tot = jnp.sum(sqs, axis=(0, 1))[0, :Cout]
    mean = s_tot / M_total
    var = jnp.maximum(q_tot / M_total - mean * mean, 0.0)   # biased var (training)
    inv_std = lax.rsqrt(var + BN_EPS)
    g = gamma.astype(jnp.float32)
    scale = (g * inv_std).reshape(1, Cout)
    shift = (beta.astype(jnp.float32) - mean * g * inv_std).reshape(1, Cout)

    # ---------------- pass 2: conv -> folded BN -> ReLU ----------------------
    # TODO(synk): when 9*Cin is large (MXU-bound regime) write the bf16 conv tile
    # in pass 1 and turn pass 2 into a pure VPU affine+ReLU instead of recompute.
    out_flat = pl.pallas_call(
        functools.partial(_conv_bn_relu_kernel, th=th, wo=Wo, cin=Cin, cpad=Cpad,
                          cout=Cout, stride=stride),
        out_shape=jax.ShapeDtypeStruct((N, Ho * Wo, Cout), jnp.float32),
        grid=grid,
        in_specs=[x_main_spec, halo0_spec, halo1_spec, w_spec,
                  pl.BlockSpec((1, Cout), lambda n, t: (0, 0)),
                  pl.BlockSpec((1, Cout), lambda n, t: (0, 0))],
        out_specs=pl.BlockSpec((1, Mt, Cout), lambda n, t: (n, t, 0)),
        compiler_params=cparams,
    )(xp, xp, xp, w4, scale, shift)

    # Free contiguous reshape + one small NHWC->NCHW transpose (unpadded Cout).
    out = out_flat.reshape(N, Ho, Wo, Cout)
    return jnp.transpose(out, (0, 3, 1, 2))


# ------------------------------ reference (JAX) ------------------------------
def reference_block(x, weight, gamma, beta, stride):
    conv = lax.conv_general_dilated(
        x.astype(jnp.float32), weight.astype(jnp.float32),
        window_strides=(stride, stride), padding=((1, 1), (1, 1)),
        dimension_numbers=("NCHW", "OIHW", "NCHW"))
    mean = conv.mean(axis=(0, 2, 3), keepdims=True)
    var = ((conv - mean) ** 2).mean(axis=(0, 2, 3), keepdims=True)
    y = (conv - mean) / jnp.sqrt(var + BN_EPS)
    y = y * gamma.reshape(1, -1, 1, 1) + beta.reshape(1, -1, 1, 1)
    return jnp.maximum(y, 0.0)


if __name__ == "__main__":
    # ConvolutionalBlock(in_channels=4, out_channels=8, stride=1, expand_ratio=2);
    # expand_ratio is stored but unused in the PyTorch forward.
    N, Cin, H, W = 2, 4, 16, 16
    Cout, stride = 8, 1

    key = jax.random.PRNGKey(0)
    kx, kw, kg, kb = jax.random.split(key, 4)

    x = jax.random.normal(kx, (N, Cin, H, W), dtype=jnp.float32)
    weight = jax.random.normal(kw, (Cout, Cin, 3, 3), dtype=jnp.float32) * 0.2
    gamma = 1.0 + 0.1 * jax.random.normal(kg, (Cout,), dtype=jnp.float32)
    beta = 0.1 * jax.random.normal(kb, (Cout,), dtype=jnp.float32)

    out = jax.block_until_ready(
        convolutional_block(x, weight, gamma, beta, stride=stride))

    ref = reference_block(x, weight, gamma, beta, stride)
    assert out.shape == ref.shape == (N, Cout, H // stride, W // stride), out.shape
    # Tolerance sized for the bf16 MXU feed (accumulation and BN math are f32).
    max_err = float(jnp.max(jnp.abs(out - ref)))
    assert jnp.allclose(out, ref, atol=3e-2, rtol=3e-2), max_err

    print("KERNEL_OK")
</pallas_src>

<mosaic_0001>
module attributes {stable_mosaic.version = 11 : i64} {
  func.func @_conv_bn_relu_kernel(%arg0: i32, %arg1: i32, %arg2: memref<1x16x18x4xbf16, #tpu.memory_space<vmem>>, %arg3: memref<1x1x18x4xbf16, #tpu.memory_space<vmem>>, %arg4: memref<1x1x18x4xbf16, #tpu.memory_space<vmem>>, %arg5: memref<3x3x4x128xbf16, #tpu.memory_space<vmem>>, %arg6: memref<1x8xf32, #tpu.memory_space<vmem>>, %arg7: memref<1x8xf32, #tpu.memory_space<vmem>>, %arg8: memref<1x256x8xf32, #tpu.memory_space<vmem>>) attributes {dimension_semantics = [#tpu.dimension_semantics<parallel>, #tpu.dimension_semantics<parallel>], iteration_bounds = array<i64: 2, 1>, scalar_prefetch = 0 : i64, scratch_operands = 0 : i64, tpu.core_type = #tpu.core_type<tc>, window_params = [{transform_indices = @transform_0, window_bounds = array<i64: 1, 16, 18, 4>}, {transform_indices = @transform_1, window_bounds = array<i64: 1, 1, 18, 4>}, {transform_indices = @transform_2, window_bounds = array<i64: 1, 1, 18, 4>}, {pipeline_mode = #tpu.pipeline_mode<synchronous>, transform_indices = @transform_3, window_bounds = array<i64: 3, 3, 4, 128>}, {pipeline_mode = #tpu.pipeline_mode<synchronous>, transform_indices = @transform_4, window_bounds = array<i64: 1, 8>}, {pipeline_mode = #tpu.pipeline_mode<synchronous>, transform_indices = @transform_5, window_bounds = array<i64: 1, 8>}, {transform_indices = @transform_6, window_bounds = array<i64: 1, 256, 8>}]} {
    %c0 = arith.constant 0 : index
    %c0_0 = arith.constant 0 : index
    %c0_1 = arith.constant 0 : index
    %c0_2 = arith.constant 0 : index
    %0 = vector.load %arg2[%c0, %c0_0, %c0_1, %c0_2] : memref<1x16x18x4xbf16, #tpu.memory_space<vmem>>, vector<1x16x18x4xbf16>
    %1 = vector.shape_cast %0 : vector<1x16x18x4xbf16> to vector<16x18x4xbf16>
    %c0_3 = arith.constant 0 : index
    %c0_4 = arith.constant 0 : index
    %c0_5 = arith.constant 0 : index
    %c0_6 = arith.constant 0 : index
    %2 = vector.load %arg3[%c0_3, %c0_4, %c0_5, %c0_6] : memref<1x1x18x4xbf16, #tpu.memory_space<vmem>>, vector<1x1x18x4xbf16>
    %3 = vector.shape_cast %2 : vector<1x1x18x4xbf16> to vector<1x18x4xbf16>
    %c0_7 = arith.constant 0 : index
    %c0_8 = arith.constant 0 : index
    %c0_9 = arith.constant 0 : index
    %c0_10 = arith.constant 0 : index
    %4 = vector.load %arg4[%c0_7, %c0_8, %c0_9, %c0_10] : memref<1x1x18x4xbf16, #tpu.memory_space<vmem>>, vector<1x1x18x4xbf16>
    %5 = vector.shape_cast %4 : vector<1x1x18x4xbf16> to vector<1x18x4xbf16>
    %6 = tpu.concatenate %1, %3, %5 in 0 : vector<16x18x4xbf16>, vector<1x18x4xbf16>, vector<1x18x4xbf16> -> vector<18x18x4xbf16>
    %cst = arith.constant 0.000000e+00 : f32
    %7 = vector.broadcast %cst : f32 to vector<256x128xf32>
    %8 = vector.extract_strided_slice %6 {offsets = [0, 0, 0], sizes = [16, 16, 4], strides = [1, 1, 1]} : vector<18x18x4xbf16> to vector<16x16x4xbf16>
    %9 = vector.shape_cast %8 : vector<16x16x4xbf16> to vector<256x4xbf16>
    %c0_11 = arith.constant 0 : index
    %c0_12 = arith.constant 0 : index
    %c0_13 = arith.constant 0 : index
    %c0_14 = arith.constant 0 : index
    %10 = vector.load %arg5[%c0_11, %c0_12, %c0_13, %c0_14] : memref<3x3x4x128xbf16, #tpu.memory_space<vmem>>, vector<1x1x4x128xbf16>
    %11 = vector.shape_cast %10 : vector<1x1x4x128xbf16> to vector<4x128xbf16>
    %cst_15 = arith.constant dense<0.000000e+00> : vector<256x128xf32>
    %12 = tpu.matmul %9, %11, %cst_15 {dimension_numbers = #tpu.dot_dimension_numbers<[1], [0], [0], [1], [0, 0, 1, 1], [], []>} : vector<256x4xbf16>, vector<4x128xbf16>, vector<256x128xf32> -> vector<256x128xf32>
    %13 = arith.addf %7, %12 : vector<256x128xf32>
    %14 = vector.extract_strided_slice %6 {offsets = [0, 1, 0], sizes = [16, 16, 4], strides = [1, 1, 1]} : vector<18x18x4xbf16> to vector<16x16x4xbf16>
    %15 = vector.shape_cast %14 : vector<16x16x4xbf16> to vector<256x4xbf16>
    %c0_16 = arith.constant 0 : index
    %c1 = arith.constant 1 : index
    %c0_17 = arith.constant 0 : index
    %c0_18 = arith.constant 0 : index
    %16 = vector.load %arg5[%c0_16, %c1, %c0_17, %c0_18] : memref<3x3x4x128xbf16, #tpu.memory_space<vmem>>, vector<1x1x4x128xbf16>
    %17 = vector.shape_cast %16 : vector<1x1x4x128xbf16> to vector<4x128xbf16>
    %cst_19 = arith.constant dense<0.000000e+00> : vector<256x128xf32>
    %18 = tpu.matmul %15, %17, %cst_19 {dimension_numbers = #tpu.dot_dimension_numbers<[1], [0], [0], [1], [0, 0, 1, 1], [], []>} : vector<256x4xbf16>, vector<4x128xbf16>, vector<256x128xf32> -> vector<256x128xf32>
    %19 = arith.addf %13, %18 : vector<256x128xf32>
    %20 = vector.extract_strided_slice %6 {offsets = [0, 2, 0], sizes = [16, 16, 4], strides = [1, 1, 1]} : vector<18x18x4xbf16> to vector<16x16x4xbf16>
    %21 = vector.shape_cast %20 : vector<16x16x4xbf16> to vector<256x4xbf16>
    %c0_20 = arith.constant 0 : index
    %c2 = arith.constant 2 : index
    %c0_21 = arith.constant 0 : index
    %c0_22 = arith.constant 0 : index
    %22 = vector.load %arg5[%c0_20, %c2, %c0_21, %c0_22] : memref<3x3x4x128xbf16, #tpu.memory_space<vmem>>, vector<1x1x4x128xbf16>
    %23 = vector.shape_cast %22 : vector<1x1x4x128xbf16> to vector<4x128xbf16>
    %cst_23 = arith.constant dense<0.000000e+00> : vector<256x128xf32>
    %24 = tpu.matmul %21, %23, %cst_23 {dimension_numbers = #tpu.dot_dimension_numbers<[1], [0], [0], [1], [0, 0, 1, 1], [], []>} : vector<256x4xbf16>, vector<4x128xbf16>, vector<256x128xf32> -> vector<256x128xf32>
    %25 = arith.addf %19, %24 : vector<256x128xf32>
    %26 = vector.extract_strided_slice %6 {offsets = [1, 0, 0], sizes = [16, 16, 4], strides = [1, 1, 1]} : vector<18x18x4xbf16> to vector<16x16x4xbf16>
    %27 = vector.shape_cast %26 : vector<16x16x4xbf16> to vector<256x4xbf16>
    %c1_24 = arith.constant 1 : index
    %c0_25 = arith.constant 0 : index
    %c0_26 = arith.constant 0 : index
    %c0_27 = arith.constant 0 : index
    %28 = vector.load %arg5[%c1_24, %c0_25, %c0_26, %c0_27] : memref<3x3x4x128xbf16, #tpu.memory_space<vmem>>, vector<1x1x4x128xbf16>
    %29 = vector.shape_cast %28 : vector<1x1x4x128xbf16> to vector<4x128xbf16>
    %cst_28 = arith.constant dense<0.000000e+00> : vector<256x128xf32>
    %30 = tpu.matmul %27, %29, %cst_28 {dimension_numbers = #tpu.dot_dimension_numbers<[1], [0], [0], [1], [0, 0, 1, 1], [], []>} : vector<256x4xbf16>, vector<4x128xbf16>, vector<256x128xf32> -> vector<256x128xf32>
    %31 = arith.addf %25, %30 : vector<256x128xf32>
    %32 = vector.extract_strided_slice %6 {offsets = [1, 1, 0], sizes = [16, 16, 4], strides = [1, 1, 1]} : vector<18x18x4xbf16> to vector<16x16x4xbf16>
    %33 = vector.shape_cast %32 : vector<16x16x4xbf16> to vector<256x4xbf16>
    %c1_29 = arith.constant 1 : index
    %c1_30 = arith.constant 1 : index
    %c0_31 = arith.constant 0 : index
    %c0_32 = arith.constant 0 : index
    %34 = vector.load %arg5[%c1_29, %c1_30, %c0_31, %c0_32] : memref<3x3x4x128xbf16, #tpu.memory_space<vmem>>, vector<1x1x4x128xbf16>
    %35 = vector.shape_cast %34 : vector<1x1x4x128xbf16> to vector<4x128xbf16>
    %cst_33 = arith.constant dense<0.000000e+00> : vector<256x128xf32>
    %36 = tpu.matmul %33, %35, %cst_33 {dimension_numbers = #tpu.dot_dimension_numbers<[1], [0], [0], [1], [0, 0, 1, 1], [], []>} : vector<256x4xbf16>, vector<4x128xbf16>, vector<256x128xf32> -> vector<256x128xf32>
    %37 = arith.addf %31, %36 : vector<256x128xf32>
    %38 = vector.extract_strided_slice %6 {offsets = [1, 2, 0], sizes = [16, 16, 4], strides = [1, 1, 1]} : vector<18x18x4xbf16> to vector<16x16x4xbf16>
    %39 = vector.shape_cast %38 : vector<16x16x4xbf16> to vector<256x4xbf16>
    %c1_34 = arith.constant 1 : index
    %c2_35 = arith.constant 2 : index
    %c0_36 = arith.constant 0 : index
    %c0_37 = arith.constant 0 : index
    %40 = vector.load %arg5[%c1_34, %c2_35, %c0_36, %c0_37] : memref<3x3x4x128xbf16, #tpu.memory_space<vmem>>, vector<1x1x4x128xbf16>
    %41 = vector.shape_cast %40 : vector<1x1x4x128xbf16> to vector<4x128xbf16>
    %cst_38 = arith.constant dense<0.000000e+00> : vector<256x128xf32>
    %42 = tpu.matmul %39, %41, %cst_38 {dimension_numbers = #tpu.dot_dimension_numbers<[1], [0], [0], [1], [0, 0, 1, 1], [], []>} : vector<256x4xbf16>, vector<4x128xbf16>, vector<256x128xf32> -> vector<256x128xf32>
    %43 = arith.addf %37, %42 : vector<256x128xf32>
    %44 = vector.extract_strided_slice %6 {offsets = [2, 0, 0], sizes = [16, 16, 4], strides = [1, 1, 1]} : vector<18x18x4xbf16> to vector<16x16x4xbf16>
    %45 = vector.shape_cast %44 : vector<16x16x4xbf16> to vector<256x4xbf16>
    %c2_39 = arith.constant 2 : index
    %c0_40 = arith.constant 0 : index
    %c0_41 = arith.constant 0 : index
    %c0_42 = arith.constant 0 : index
    %46 = vector.load %arg5[%c2_39, %c0_40, %c0_41, %c0_42] : memref<3x3x4x128xbf16, #tpu.memory_space<vmem>>, vector<1x1x4x128xbf16>
    %47 = vector.shape_cast %46 : vector<1x1x4x128xbf16> to vector<4x128xbf16>
    %cst_43 = arith.constant dense<0.000000e+00> : vector<256x128xf32>
    %48 = tpu.matmul %45, %47, %cst_43 {dimension_numbers = #tpu.dot_dimension_numbers<[1], [0], [0], [1], [0, 0, 1, 1], [], []>} : vector<256x4xbf16>, vector<4x128xbf16>, vector<256x128xf32> -> vector<256x128xf32>
    %49 = arith.addf %43, %48 : vector<256x128xf32>
    %50 = vector.extract_strided_slice %6 {offsets = [2, 1, 0], sizes = [16, 16, 4], strides = [1, 1, 1]} : vector<18x18x4xbf16> to vector<16x16x4xbf16>
    %51 = vector.shape_cast %50 : vector<16x16x4xbf16> to vector<256x4xbf16>
    %c2_44 = arith.constant 2 : index
    %c1_45 = arith.constant 1 : index
    %c0_46 = arith.constant 0 : index
    %c0_47 = arith.constant 0 : index
    %52 = vector.load %arg5[%c2_44, %c1_45, %c0_46, %c0_47] : memref<3x3x4x128xbf16, #tpu.memory_space<vmem>>, vector<1x1x4x128xbf16>
    %53 = vector.shape_cast %52 : vector<1x1x4x128xbf16> to vector<4x128xbf16>
    %cst_48 = arith.constant dense<0.000000e+00> : vector<256x128xf32>
    %54 = tpu.matmul %51, %53, %cst_48 {dimension_numbers = #tpu.dot_dimension_numbers<[1], [0], [0], [1], [0, 0, 1, 1], [], []>} : vector<256x4xbf16>, vector<4x128xbf16>, vector<256x128xf32> -> vector<256x128xf32>
    %55 = arith.addf %49, %54 : vector<256x128xf32>
    %56 = vector.extract_strided_slice %6 {offsets = [2, 2, 0], sizes = [16, 16, 4], strides = [1, 1, 1]} : vector<18x18x4xbf16> to vector<16x16x4xbf16>
    %57 = vector.shape_cast %56 : vector<16x16x4xbf16> to vector<256x4xbf16>
    %c2_49 = arith.constant 2 : index
    %c2_50 = arith.constant 2 : index
    %c0_51 = arith.constant 0 : index
    %c0_52 = arith.constant 0 : index
    %58 = vector.load %arg5[%c2_49, %c2_50, %c0_51, %c0_52] : memref<3x3x4x128xbf16, #tpu.memory_space<vmem>>, vector<1x1x4x128xbf16>
    %59 = vector.shape_cast %58 : vector<1x1x4x128xbf16> to vector<4x128xbf16>
    %cst_53 = arith.constant dense<0.000000e+00> : vector<256x128xf32>
    %60 = tpu.matmul %57, %59, %cst_53 {dimension_numbers = #tpu.dot_dimension_numbers<[1], [0], [0], [1], [0, 0, 1, 1], [], []>} : vector<256x4xbf16>, vector<4x128xbf16>, vector<256x128xf32> -> vector<256x128xf32>
    %61 = arith.addf %55, %60 : vector<256x128xf32>
    %62 = vector.extract_strided_slice %61 {offsets = [0, 0], sizes = [256, 8], strides = [1, 1]} : vector<256x128xf32> to vector<256x8xf32>
    %c0_54 = arith.constant 0 : index
    %c0_55 = arith.constant 0 : index
    %63 = vector.load %arg6[%c0_54, %c0_55] : memref<1x8xf32, #tpu.memory_space<vmem>>, vector<1x8xf32>
    %64 = vector.broadcast %63 : vector<1x8xf32> to vector<256x8xf32>
    %65 = arith.mulf %62, %64 : vector<256x8xf32>
    %c0_56 = arith.constant 0 : index
    %c0_57 = arith.constant 0 : index
    %66 = vector.load %arg7[%c0_56, %c0_57] : memref<1x8xf32, #tpu.memory_space<vmem>>, vector<1x8xf32>
    %67 = vector.broadcast %66 : vector<1x8xf32> to vector<256x8xf32>
    %68 = arith.addf %65, %67 : vector<256x8xf32>
    %cst_58 = arith.constant 0.000000e+00 : f32
    %69 = vector.broadcast %cst_58 : f32 to vector<256x8xf32>
    %70 = arith.maximumf %68, %69 : vector<256x8xf32>
    %c0_59 = arith.constant 0 : index
    %c0_60 = arith.constant 0 : index
    %c0_61 = arith.constant 0 : index
    %71 = vector.load %arg8[%c0_59, %c0_60, %c0_61] : memref<1x256x8xf32, #tpu.memory_space<vmem>>, vector<1x256x8xf32>
    %72 = vector.shape_cast %71 : vector<1x256x8xf32> to vector<256x8xf32>
    %73 = vector.shape_cast %70 : vector<256x8xf32> to vector<1x256x8xf32>
    tpu.vector_store %arg8[%c0_59, %c0_60, %c0_61], %73 {strides = array<i32>} : memref<1x256x8xf32, #tpu.memory_space<vmem>>, vector<1x256x8xf32>,
    return
  }
  func.func @transform_0(%arg0: i32, %arg1: i32) -> (i32, i32, i32, i32) {
    %c0_i32 = arith.constant 0 : i32
    %c0_i32_0 = arith.constant 0 : i32
    %c0_i32_1 = arith.constant 0 : i32
    return %arg0, %arg1, %c0_i32, %c0_i32_0 : i32, i32, i32, i32
  }
  func.func @transform_1(%arg0: i32, %arg1: i32) -> (i32, i32, i32, i32) {
    %c1_i32 = arith.constant 1 : i32
    %0 = arith.addi %arg1, %c1_i32 : i32
    %c16_i32 = arith.constant 16 : i32
    %1 = arith.muli %0, %c16_i32 : i32
    %c0_i32 = arith.constant 0 : i32
    %c0_i32_0 = arith.constant 0 : i32
    %c0_i32_1 = arith.constant 0 : i32
    return %arg0, %1, %c0_i32, %c0_i32_0 : i32, i32, i32, i32
  }
  func.func @transform_2(%arg0: i32, %arg1: i32) -> (i32, i32, i32, i32) {
    %c1_i32 = arith.constant 1 : i32
    %0 = arith.addi %arg1, %c1_i32 : i32
    %c16_i32 = arith.constant 16 : i32
    %1 = arith.muli %0, %c16_i32 : i32
    %c1_i32_0 = arith.constant 1 : i32
    %2 = arith.addi %1, %c1_i32_0 : i32
    %c0_i32 = arith.constant 0 : i32
    %c0_i32_1 = arith.constant 0 : i32
    %c0_i32_2 = arith.constant 0 : i32
    return %arg0, %2, %c0_i32, %c0_i32_1 : i32, i32, i32, i32
  }
  func.func @transform_3(%arg0: i32, %arg1: i32) -> (i32, i32, i32, i32) {
    %c0_i32 = arith.constant 0 : i32
    %c0_i32_0 = arith.constant 0 : i32
    %c0_i32_1 = arith.constant 0 : i32
    %c0_i32_2 = arith.constant 0 : i32
    %c0_i32_3 = arith.constant 0 : i32
    return %c0_i32, %c0_i32_0, %c0_i32_1, %c0_i32_2 : i32, i32, i32, i32
  }
  func.func @transform_4(%arg0: i32, %arg1: i32) -> (i32, i32) {
    %c0_i32 = arith.constant 0 : i32
    %c0_i32_0 = arith.constant 0 : i32
    %c0_i32_1 = arith.constant 0 : i32
    return %c0_i32, %c0_i32_0 : i32, i32
  }
  func.func @transform_5(%arg0: i32, %arg1: i32) -> (i32, i32) {
    %c0_i32 = arith.constant 0 : i32
    %c0_i32_0 = arith.constant 0 : i32
    %c0_i32_1 = arith.constant 0 : i32
    return %c0_i32, %c0_i32_0 : i32, i32
  }
  func.func @transform_6(%arg0: i32, %arg1: i32) -> (i32, i32, i32) {
    %c0_i32 = arith.constant 0 : i32
    %c0_i32_0 = arith.constant 0 : i32
    return %arg0, %arg1, %c0_i32 : i32, i32, i32
  }
}

module attributes {stable_mosaic.version = 11 : i64} {
  func.func @_conv_stats_kernel(%arg0: i32, %arg1: i32, %arg2: memref<1x16x18x4xbf16, #tpu.memory_space<vmem>>, %arg3: memref<1x1x18x4xbf16, #tpu.memory_space<vmem>>, %arg4: memref<1x1x18x4xbf16, #tpu.memory_space<vmem>>, %arg5: memref<3x3x4x128xbf16, #tpu.memory_space<vmem>>, %arg6: memref<1x1x1x128xf32, #tpu.memory_space<vmem>>, %arg7: memref<1x1x1x128xf32, #tpu.memory_space<vmem>>) attributes {dimension_semantics = [#tpu.dimension_semantics<parallel>, #tpu.dimension_semantics<parallel>], iteration_bounds = array<i64: 2, 1>, scalar_prefetch = 0 : i64, scratch_operands = 0 : i64, tpu.core_type = #tpu.core_type<tc>, window_params = [{transform_indices = @transform_0, window_bounds = array<i64: 1, 16, 18, 4>}, {transform_indices = @transform_1, window_bounds = array<i64: 1, 1, 18, 4>}, {transform_indices = @transform_2, window_bounds = array<i64: 1, 1, 18, 4>}, {pipeline_mode = #tpu.pipeline_mode<synchronous>, transform_indices = @transform_3, window_bounds = array<i64: 3, 3, 4, 128>}, {transform_indices = @transform_4, window_bounds = array<i64: 1, 1, 1, 128>}, {transform_indices = @transform_5, window_bounds = array<i64: 1, 1, 1, 128>}]} {
    %c0 = arith.constant 0 : index
    %c0_0 = arith.constant 0 : index
    %c0_1 = arith.constant 0 : index
    %c0_2 = arith.constant 0 : index
    %0 = vector.load %arg2[%c0, %c0_0, %c0_1, %c0_2] : memref<1x16x18x4xbf16, #tpu.memory_space<vmem>>, vector<1x16x18x4xbf16>
    %1 = vector.shape_cast %0 : vector<1x16x18x4xbf16> to vector<16x18x4xbf16>
    %c0_3 = arith.constant 0 : index
    %c0_4 = arith.constant 0 : index
    %c0_5 = arith.constant 0 : index
    %c0_6 = arith.constant 0 : index
    %2 = vector.load %arg3[%c0_3, %c0_4, %c0_5, %c0_6] : memref<1x1x18x4xbf16, #tpu.memory_space<vmem>>, vector<1x1x18x4xbf16>
    %3 = vector.shape_cast %2 : vector<1x1x18x4xbf16> to vector<1x18x4xbf16>
    %c0_7 = arith.constant 0 : index
    %c0_8 = arith.constant 0 : index
    %c0_9 = arith.constant 0 : index
    %c0_10 = arith.constant 0 : index
    %4 = vector.load %arg4[%c0_7, %c0_8, %c0_9, %c0_10] : memref<1x1x18x4xbf16, #tpu.memory_space<vmem>>, vector<1x1x18x4xbf16>
    %5 = vector.shape_cast %4 : vector<1x1x18x4xbf16> to vector<1x18x4xbf16>
    %6 = tpu.concatenate %1, %3, %5 in 0 : vector<16x18x4xbf16>, vector<1x18x4xbf16>, vector<1x18x4xbf16> -> vector<18x18x4xbf16>
    %cst = arith.constant 0.000000e+00 : f32
    %7 = vector.broadcast %cst : f32 to vector<256x128xf32>
    %8 = vector.extract_strided_slice %6 {offsets = [0, 0, 0], sizes = [16, 16, 4], strides = [1, 1, 1]} : vector<18x18x4xbf16> to vector<16x16x4xbf16>
    %9 = vector.shape_cast %8 : vector<16x16x4xbf16> to vector<256x4xbf16>
    %c0_11 = arith.constant 0 : index
    %c0_12 = arith.constant 0 : index
    %c0_13 = arith.constant 0 : index
    %c0_14 = arith.constant 0 : index
    %10 = vector.load %arg5[%c0_11, %c0_12, %c0_13, %c0_14] : memref<3x3x4x128xbf16, #tpu.memory_space<vmem>>, vector<1x1x4x128xbf16>
    %11 = vector.shape_cast %10 : vector<1x1x4x128xbf16> to vector<4x128xbf16>
    %cst_15 = arith.constant dense<0.000000e+00> : vector<256x128xf32>
    %12 = tpu.matmul %9, %11, %cst_15 {dimension_numbers = #tpu.dot_dimension_numbers<[1], [0], [0], [1], [0, 0, 1, 1], [], []>} : vector<256x4xbf16>, vector<4x128xbf16>, vector<256x128xf32> -> vector<256x128xf32>
    %13 = arith.addf %7, %12 : vector<256x128xf32>
    %14 = vector.extract_strided_slice %6 {offsets = [0, 1, 0], sizes = [16, 16, 4], strides = [1, 1, 1]} : vector<18x18x4xbf16> to vector<16x16x4xbf16>
    %15 = vector.shape_cast %14 : vector<16x16x4xbf16> to vector<256x4xbf16>
    %c0_16 = arith.constant 0 : index
    %c1 = arith.constant 1 : index
    %c0_17 = arith.constant 0 : index
    %c0_18 = arith.constant 0 : index
    %16 = vector.load %arg5[%c0_16, %c1, %c0_17, %c0_18] : memref<3x3x4x128xbf16, #tpu.memory_space<vmem>>, vector<1x1x4x128xbf16>
    %17 = vector.shape_cast %16 : vector<1x1x4x128xbf16> to vector<4x128xbf16>
    %cst_19 = arith.constant dense<0.000000e+00> : vector<256x128xf32>
    %18 = tpu.matmul %15, %17, %cst_19 {dimension_numbers = #tpu.dot_dimension_numbers<[1], [0], [0], [1], [0, 0, 1, 1], [], []>} : vector<256x4xbf16>, vector<4x128xbf16>, vector<256x128xf32> -> vector<256x128xf32>
    %19 = arith.addf %13, %18 : vector<256x128xf32>
    %20 = vector.extract_strided_slice %6 {offsets = [0, 2, 0], sizes = [16, 16, 4], strides = [1, 1, 1]} : vector<18x18x4xbf16> to vector<16x16x4xbf16>
    %21 = vector.shape_cast %20 : vector<16x16x4xbf16> to vector<256x4xbf16>
    %c0_20 = arith.constant 0 : index
    %c2 = arith.constant 2 : index
    %c0_21 = arith.constant 0 : index
    %c0_22 = arith.constant 0 : index
    %22 = vector.load %arg5[%c0_20, %c2, %c0_21, %c0_22] : memref<3x3x4x128xbf16, #tpu.memory_space<vmem>>, vector<1x1x4x128xbf16>
    %23 = vector.shape_cast %22 : vector<1x1x4x128xbf16> to vector<4x128xbf16>
    %cst_23 = arith.constant dense<0.000000e+00> : vector<256x128xf32>
    %24 = tpu.matmul %21, %23, %cst_23 {dimension_numbers = #tpu.dot_dimension_numbers<[1], [0], [0], [1], [0, 0, 1, 1], [], []>} : vector<256x4xbf16>, vector<4x128xbf16>, vector<256x128xf32> -> vector<256x128xf32>
    %25 = arith.addf %19, %24 : vector<256x128xf32>
    %26 = vector.extract_strided_slice %6 {offsets = [1, 0, 0], sizes = [16, 16, 4], strides = [1, 1, 1]} : vector<18x18x4xbf16> to vector<16x16x4xbf16>
    %27 = vector.shape_cast %26 : vector<16x16x4xbf16> to vector<256x4xbf16>
    %c1_24 = arith.constant 1 : index
    %c0_25 = arith.constant 0 : index
    %c0_26 = arith.constant 0 : index
    %c0_27 = arith.constant 0 : index
    %28 = vector.load %arg5[%c1_24, %c0_25, %c0_26, %c0_27] : memref<3x3x4x128xbf16, #tpu.memory_space<vmem>>, vector<1x1x4x128xbf16>
    %29 = vector.shape_cast %28 : vector<1x1x4x128xbf16> to vector<4x128xbf16>
    %cst_28 = arith.constant dense<0.000000e+00> : vector<256x128xf32>
    %30 = tpu.matmul %27, %29, %cst_28 {dimension_numbers = #tpu.dot_dimension_numbers<[1], [0], [0], [1], [0, 0, 1, 1], [], []>} : vector<256x4xbf16>, vector<4x128xbf16>, vector<256x128xf32> -> vector<256x128xf32>
    %31 = arith.addf %25, %30 : vector<256x128xf32>
    %32 = vector.extract_strided_slice %6 {offsets = [1, 1, 0], sizes = [16, 16, 4], strides = [1, 1, 1]} : vector<18x18x4xbf16> to vector<16x16x4xbf16>
    %33 = vector.shape_cast %32 : vector<16x16x4xbf16> to vector<256x4xbf16>
    %c1_29 = arith.constant 1 : index
    %c1_30 = arith.constant 1 : index
    %c0_31 = arith.constant 0 : index
    %c0_32 = arith.constant 0 : index
    %34 = vector.load %arg5[%c1_29, %c1_30, %c0_31, %c0_32] : memref<3x3x4x128xbf16, #tpu.memory_space<vmem>>, vector<1x1x4x128xbf16>
    %35 = vector.shape_cast %34 : vector<1x1x4x128xbf16> to vector<4x128xbf16>
    %cst_33 = arith.constant dense<0.000000e+00> : vector<256x128xf32>
    %36 = tpu.matmul %33, %35, %cst_33 {dimension_numbers = #tpu.dot_dimension_numbers<[1], [0], [0], [1], [0, 0, 1, 1], [], []>} : vector<256x4xbf16>, vector<4x128xbf16>, vector<256x128xf32> -> vector<256x128xf32>
    %37 = arith.addf %31, %36 : vector<256x128xf32>
    %38 = vector.extract_strided_slice %6 {offsets = [1, 2, 0], sizes = [16, 16, 4], strides = [1, 1, 1]} : vector<18x18x4xbf16> to vector<16x16x4xbf16>
    %39 = vector.shape_cast %38 : vector<16x16x4xbf16> to vector<256x4xbf16>
    %c1_34 = arith.constant 1 : index
    %c2_35 = arith.constant 2 : index
    %c0_36 = arith.constant 0 : index
    %c0_37 = arith.constant 0 : index
    %40 = vector.load %arg5[%c1_34, %c2_35, %c0_36, %c0_37] : memref<3x3x4x128xbf16, #tpu.memory_space<vmem>>, vector<1x1x4x128xbf16>
    %41 = vector.shape_cast %40 : vector<1x1x4x128xbf16> to vector<4x128xbf16>
    %cst_38 = arith.constant dense<0.000000e+00> : vector<256x128xf32>
    %42 = tpu.matmul %39, %41, %cst_38 {dimension_numbers = #tpu.dot_dimension_numbers<[1], [0], [0], [1], [0, 0, 1, 1], [], []>} : vector<256x4xbf16>, vector<4x128xbf16>, vector<256x128xf32> -> vector<256x128xf32>
    %43 = arith.addf %37, %42 : vector<256x128xf32>
    %44 = vector.extract_strided_slice %6 {offsets = [2, 0, 0], sizes = [16, 16, 4], strides = [1, 1, 1]} : vector<18x18x4xbf16> to vector<16x16x4xbf16>
    %45 = vector.shape_cast %44 : vector<16x16x4xbf16> to vector<256x4xbf16>
    %c2_39 = arith.constant 2 : index
    %c0_40 = arith.constant 0 : index
    %c0_41 = arith.constant 0 : index
    %c0_42 = arith.constant 0 : index
    %46 = vector.load %arg5[%c2_39, %c0_40, %c0_41, %c0_42] : memref<3x3x4x128xbf16, #tpu.memory_space<vmem>>, vector<1x1x4x128xbf16>
    %47 = vector.shape_cast %46 : vector<1x1x4x128xbf16> to vector<4x128xbf16>
    %cst_43 = arith.constant dense<0.000000e+00> : vector<256x128xf32>
    %48 = tpu.matmul %45, %47, %cst_43 {dimension_numbers = #tpu.dot_dimension_numbers<[1], [0], [0], [1], [0, 0, 1, 1], [], []>} : vector<256x4xbf16>, vector<4x128xbf16>, vector<256x128xf32> -> vector<256x128xf32>
    %49 = arith.addf %43, %48 : vector<256x128xf32>
    %50 = vector.extract_strided_slice %6 {offsets = [2, 1, 0], sizes = [16, 16, 4], strides = [1, 1, 1]} : vector<18x18x4xbf16> to vector<16x16x4xbf16>
    %51 = vector.shape_cast %50 : vector<16x16x4xbf16> to vector<256x4xbf16>
    %c2_44 = arith.constant 2 : index
    %c1_45 = arith.constant 1 : index
    %c0_46 = arith.constant 0 : index
    %c0_47 = arith.constant 0 : index
    %52 = vector.load %arg5[%c2_44, %c1_45, %c0_46, %c0_47] : memref<3x3x4x128xbf16, #tpu.memory_space<vmem>>, vector<1x1x4x128xbf16>
    %53 = vector.shape_cast %52 : vector<1x1x4x128xbf16> to vector<4x128xbf16>
    %cst_48 = arith.constant dense<0.000000e+00> : vector<256x128xf32>
    %54 = tpu.matmul %51, %53, %cst_48 {dimension_numbers = #tpu.dot_dimension_numbers<[1], [0], [0], [1], [0, 0, 1, 1], [], []>} : vector<256x4xbf16>, vector<4x128xbf16>, vector<256x128xf32> -> vector<256x128xf32>
    %55 = arith.addf %49, %54 : vector<256x128xf32>
    %56 = vector.extract_strided_slice %6 {offsets = [2, 2, 0], sizes = [16, 16, 4], strides = [1, 1, 1]} : vector<18x18x4xbf16> to vector<16x16x4xbf16>
    %57 = vector.shape_cast %56 : vector<16x16x4xbf16> to vector<256x4xbf16>
    %c2_49 = arith.constant 2 : index
    %c2_50 = arith.constant 2 : index
    %c0_51 = arith.constant 0 : index
    %c0_52 = arith.constant 0 : index
    %58 = vector.load %arg5[%c2_49, %c2_50, %c0_51, %c0_52] : memref<3x3x4x128xbf16, #tpu.memory_space<vmem>>, vector<1x1x4x128xbf16>
    %59 = vector.shape_cast %58 : vector<1x1x4x128xbf16> to vector<4x128xbf16>
    %cst_53 = arith.constant dense<0.000000e+00> : vector<256x128xf32>
    %60 = tpu.matmul %57, %59, %cst_53 {dimension_numbers = #tpu.dot_dimension_numbers<[1], [0], [0], [1], [0, 0, 1, 1], [], []>} : vector<256x4xbf16>, vector<4x128xbf16>, vector<256x128xf32> -> vector<256x128xf32>
    %61 = arith.addf %55, %60 : vector<256x128xf32>
    %cst_54 = arith.constant dense<0.000000e+00> : vector<128xf32>
    %62 = vector.multi_reduction <add>, %61, %cst_54 [0] : vector<256x128xf32> to vector<128xf32>
    %63 = vector.shape_cast %62 : vector<128xf32> to vector<1x128xf32>
    %c0_55 = arith.constant 0 : index
    %c0_56 = arith.constant 0 : index
    %c0_57 = arith.constant 0 : index
    %c0_58 = arith.constant 0 : index
    %64 = vector.load %arg6[%c0_55, %c0_56, %c0_57, %c0_58] : memref<1x1x1x128xf32, #tpu.memory_space<vmem>>, vector<1x1x1x128xf32>
    %65 = vector.shape_cast %64 : vector<1x1x1x128xf32> to vector<1x128xf32>
    %66 = vector.shape_cast %63 : vector<1x128xf32> to vector<1x1x1x128xf32>
    tpu.vector_store %arg6[%c0_55, %c0_56, %c0_57, %c0_58], %66 {strides = array<i32>} : memref<1x1x1x128xf32, #tpu.memory_space<vmem>>, vector<1x1x1x128xf32>,
    %67 = arith.mulf %61, %61 : vector<256x128xf32>
    %cst_59 = arith.constant dense<0.000000e+00> : vector<128xf32>
    %68 = vector.multi_reduction <add>, %67, %cst_59 [0] : vector<256x128xf32> to vector<128xf32>
    %69 = vector.shape_cast %68 : vector<128xf32> to vector<1x128xf32>
    %c0_60 = arith.constant 0 : index
    %c0_61 = arith.constant 0 : index
    %c0_62 = arith.constant 0 : index
    %c0_63 = arith.constant 0 : index
    %70 = vector.load %arg7[%c0_60, %c0_61, %c0_62, %c0_63] : memref<1x1x1x128xf32, #tpu.memory_space<vmem>>, vector<1x1x1x128xf32>
    %71 = vector.shape_cast %70 : vector<1x1x1x128xf32> to vector<1x128xf32>
    %72 = vector.shape_cast %69 : vector<1x128xf32> to vector<1x1x1x128xf32>
    tpu.vector_store %arg7[%c0_60, %c0_61, %c0_62, %c0_63], %72 {strides = array<i32>} : memref<1x1x1x128xf32, #tpu.memory_space<vmem>>, vector<1x1x1x128xf32>,
    return
  }
  func.func @transform_0(%arg0: i32, %arg1: i32) -> (i32, i32, i32, i32) {
    %c0_i32 = arith.constant 0 : i32
    %c0_i32_0 = arith.constant 0 : i32
    %c0_i32_1 = arith.constant 0 : i32
    return %arg0, %arg1, %c0_i32, %c0_i32_0 : i32, i32, i32, i32
  }
  func.func @transform_1(%arg0: i32, %arg1: i32) -> (i32, i32, i32, i32) {
    %c1_i32 = arith.constant 1 : i32
    %0 = arith.addi %arg1, %c1_i32 : i32
    %c16_i32 = arith.constant 16 : i32
    %1 = arith.muli %0, %c16_i32 : i32
    %c0_i32 = arith.constant 0 : i32
    %c0_i32_0 = arith.constant 0 : i32
    %c0_i32_1 = arith.constant 0 : i32
    return %arg0, %1, %c0_i32, %c0_i32_0 : i32, i32, i32, i32
  }
  func.func @transform_2(%arg0: i32, %arg1: i32) -> (i32, i32, i32, i32) {
    %c1_i32 = arith.constant 1 : i32
    %0 = arith.addi %arg1, %c1_i32 : i32
    %c16_i32 = arith.constant 16 : i32
    %1 = arith.muli %0, %c16_i32 : i32
    %c1_i32_0 = arith.constant 1 : i32
    %2 = arith.addi %1, %c1_i32_0 : i32
    %c0_i32 = arith.constant 0 : i32
    %c0_i32_1 = arith.constant 0 : i32
    %c0_i32_2 = arith.constant 0 : i32
    return %arg0, %2, %c0_i32, %c0_i32_1 : i32, i32, i32, i32
  }
  func.func @transform_3(%arg0: i32, %arg1: i32) -> (i32, i32, i32, i32) {
    %c0_i32 = arith.constant 0 : i32
    %c0_i32_0 = arith.constant 0 : i32
    %c0_i32_1 = arith.constant 0 : i32
    %c0_i32_2 = arith.constant 0 : i32
    %c0_i32_3 = arith.constant 0 : i32
    return %c0_i32, %c0_i32_0, %c0_i32_1, %c0_i32_2 : i32, i32, i32, i32
  }
  func.func @transform_4(%arg0: i32, %arg1: i32) -> (i32, i32, i32, i32) {
    %c0_i32 = arith.constant 0 : i32
    %c0_i32_0 = arith.constant 0 : i32
    %c0_i32_1 = arith.constant 0 : i32
    return %arg0, %arg1, %c0_i32, %c0_i32_0 : i32, i32, i32, i32
  }
  func.func @transform_5(%arg0: i32, %arg1: i32) -> (i32, i32, i32, i32) {
    %c0_i32 = arith.constant 0 : i32
    %c0_i32_0 = arith.constant 0 : i32
    %c0_i32_1 = arith.constant 0 : i32
    return %arg0, %arg1, %c0_i32, %c0_i32_0 : i32, i32, i32, i32
  }
}

</mosaic_0001>

<llo_original>
// kernel: convolutional_block.2
$region0: #{convolutional_block.2}
  #allocation0 [shape = 'u32[]', space=smem, size = 0x4, offset = 0x4, fixed_abs, tag = 'smem constant byte address 0x4 - core index']
  #allocation1 [shape = 'u32[144,128]{1,0:T(1,128)}', space=vmem, size = 0x12000, scoped, tag = 'internal scratch']
  %s0 = inlined_call_operand.vmem [shape: bf16[2,18,18,4], index: 0, kind: input, shape index: {}, may-alias: {0,1,2}]
  %s1 = inlined_call_operand.vmem [shape: bf16[2,18,18,4], index: 1, kind: input, shape index: {}, may-alias: {0,1,2}]
  %s2 = inlined_call_operand.vmem [shape: bf16[2,18,18,4], index: 2, kind: input, shape index: {}, may-alias: {0,1,2}]
  %s3 = inlined_call_operand.vmem [shape: bf16[3,3,4,128], index: 3, kind: input, shape index: {}]
  %s4 = inlined_call_operand.vmem [shape: f32[2,1,1,128], index: 4, kind: output, shape index: {0}]
  %s5 = inlined_call_operand.vmem [shape: f32[2,1,1,128], index: 5, kind: output, shape index: {1}]
  %6 = xla_tuple %s4, %s5
  %s7 = sld [smem:[#allocation0]]
  $region57: #{convolutional_block.2} parent=0
    _
  %s9 = ssub.s32 1, %s7
  %s10 = scalar_select 0, %s9, %s7
  loop: start=0, step=1, limit=4
  $region2: #{convolutional_block.2} parent=0 // loop_pre_header
    _
  $region3: #{convolutional_block.2} parent=0 // loop_header
    %s12 = sphi 0, %s16
    %p13 = scmp.ge.s32.totalorder %s12, 4
    %s19 = sphi 0, %s31
    %s20 = sphi 0, %s27
    %s21 = sphi 0, %s19
    %s22 = sphi 0, %s20
    %s23 = sphi 0, %s21
    %s24 = sphi 0, %s22
    %s36 = sphi 0, %s38
    %s39 = sphi 0, %s36
    %s40 = sphi 0, %s39
    %s56 = sphi 0, %s40
    %s68 = sphi 0, %s70
    %s71 = sphi 0, %s68
    %s72 = sphi 0, %s71
    %s88 = sphi 0, %s72
    %s102 = sphi 0, %s104
    %s105 = sphi 0, %s102
    %s106 = sphi 0, %s105
    %s122 = sphi 0, %s106
    %s126 = sphi 0, %s126
    %s128 = sphi 0, %s126
    %s129 = sphi 0, %s128
    %s143 = sphi 0, %s129
    %s151 = sphi 0, %s153
    %s154 = sphi 0, %s151
    %s155 = sphi 0, %s154
    %s171 = sphi 0, %s155
    %s179 = sphi 0, %s181
    %s182 = sphi 0, %s179
    %s183 = sphi 0, %s182
    %s199 = sphi 0, %s183
  $region4: #{convolutional_block.2} parent=0 // loop_header_branch
    %15 = sbr.rel (%p13) target = $region8
  $region5: #{convolutional_block.2} parent=0 // loop_body
    %s17 = ssub.s32 %s12, 1
    %s18 = ssub.s32 %s12, 2
    %s25 = sadd.s32 1, %s20
    %p26 = scmp.ge.s32.totalorder %s25, 1
    %s27 = scalar_select %p26, 0, %s25
    %s28 = sadd.s32 1, %s19
    %s29 = scalar_select %p26, %s28, %s19
    %p30 = scmp.ge.s32.totalorder %s29, 2
    %s31 = scalar_select %p30, 0, %s29
    %s32 = ssub.s32 %s19, %s31
    %s33 = ssub.s32 %s20, %s27
    %s34 = sor.u32 %s32, %s33
    %p35 = scmp.eq.s32.totalorder %s34, 0
    %s37 = sadd.s32 %s36, 1
    %s38 = scalar_select %p35, %s36, %s37
    %p41 = pneg %p35
    %p42 = scmp.eq.s32.totalorder %s12, 1
    %p43 = por %p41, %p42
    %p44 = scmp.ne.s32.totalorder %s36, %s39
    %p45 = scmp.eq.s32.totalorder %s12, 0
    %p46 = por %p44, %p45
    %p47 = scmp.ne.s32.totalorder %s36, %s39
    %p48 = scmp.eq.s32.totalorder %s17, 1
    %p49 = por %p47, %p48
    %p50 = scmp.ne.s32.totalorder %s39, %s40
    %p51 = scmp.eq.s32.totalorder %s17, 0
    %p52 = por %p50, %p51
    %p53 = scmp.ne.s32.totalorder %s39, %s40
    %p54 = scmp.eq.s32.totalorder %s18, 1
    %p55 = por %p53, %p54
    %p57 = scmp.ne.s32.totalorder %s40, %s56
    %p58 = scmp.eq.s32.totalorder %s18, 0
    %p59 = por %p57, %p58
    %s60 = sadd.s32 %s20, 1
    %s61 = smul.u32 %s60, 16
    %s62 = sadd.s32 %s27, 1
    %s63 = smul.u32 %s62, 16
    %s64 = ssub.s32 %s19, %s31
    %s65 = ssub.s32 %s61, %s63
    %s66 = sor.u32 %s64, %s65
    %p67 = scmp.eq.s32.totalorder %s66, 0
    %s69 = sadd.s32 %s68, 1
    %s70 = scalar_select %p67, %s68, %s69
    %p73 = pneg %p67
    %p74 = scmp.eq.s32.totalorder %s12, 1
    %p75 = por %p73, %p74
    %p76 = scmp.ne.s32.totalorder %s68, %s71
    %p77 = scmp.eq.s32.totalorder %s12, 0
    %p78 = por %p76, %p77
    %p79 = scmp.ne.s32.totalorder %s68, %s71
    %p80 = scmp.eq.s32.totalorder %s17, 1
    %p81 = por %p79, %p80
    %p82 = scmp.ne.s32.totalorder %s71, %s72
    %p83 = scmp.eq.s32.totalorder %s17, 0
    %p84 = por %p82, %p83
    %p85 = scmp.ne.s32.totalorder %s71, %s72
    %p86 = scmp.eq.s32.totalorder %s18, 1
    %p87 = por %p85, %p86
    %p89 = scmp.ne.s32.totalorder %s72, %s88
    %p90 = scmp.eq.s32.totalorder %s18, 0
    %p91 = por %p89, %p90
    %s92 = sadd.s32 %s20, 1
    %s93 = smul.u32 %s92, 16
    %s94 = sadd.s32 %s93, 1
    %s95 = sadd.s32 %s27, 1
    %s96 = smul.u32 %s95, 16
    %s97 = sadd.s32 %s96, 1
    %s98 = ssub.s32 %s19, %s31
    %s99 = ssub.s32 %s94, %s97
    %s100 = sor.u32 %s98, %s99
    %p101 = scmp.eq.s32.totalorder %s100, 0
    %s103 = sadd.s32 %s102, 1
    %s104 = scalar_select %p101, %s102, %s103
    %p107 = pneg %p101
    %p108 = scmp.eq.s32.totalorder %s12, 1
    %p109 = por %p107, %p108
    %p110 = scmp.ne.s32.totalorder %s102, %s105
    %p111 = scmp.eq.s32.totalorder %s12, 0
    %p112 = por %p110, %p111
    %p113 = scmp.ne.s32.totalorder %s102, %s105
    %p114 = scmp.eq.s32.totalorder %s17, 1
    %p115 = por %p113, %p114
    %p116 = scmp.ne.s32.totalorder %s105, %s106
    %p117 = scmp.eq.s32.totalorder %s17, 0
    %p118 = por %p116, %p117
    %p119 = scmp.ne.s32.totalorder %s105, %s106
    %p120 = scmp.eq.s32.totalorder %s18, 1
    %p121 = por %p119, %p120
    %p123 = scmp.ne.s32.totalorder %s106, %s122
    %p124 = scmp.eq.s32.totalorder %s18, 0
    %p125 = por %p123, %p124
    %s127 = sadd.s32 %s126, 1
    %p130 = scmp.eq.s32.totalorder %s12, 1
    %p131 = scmp.ne.s32.totalorder %s126, %s128
    %p132 = scmp.eq.s32.totalorder %s12, 0
    %p133 = por %p131, %p132
    %p134 = scmp.ne.s32.totalorder %s126, %s128
    %p135 = scmp.eq.s32.totalorder %s17, 1
    %p136 = por %p134, %p135
    %p137 = scmp.ne.s32.totalorder %s128, %s129
    %p138 = scmp.eq.s32.totalorder %s17, 0
    %p139 = por %p137, %p138
    %p140 = scmp.ne.s32.totalorder %s128, %s129
    %p141 = scmp.eq.s32.totalorder %s18, 1
    %p142 = por %p140, %p141
    %p144 = scmp.ne.s32.totalorder %s129, %s143
    %p145 = scmp.eq.s32.totalorder %s18, 0
    %p146 = por %p144, %p145
    %s147 = ssub.s32 %s19, %s31
    %s148 = ssub.s32 %s20, %s27
    %s149 = sor.u32 %s147, %s148
    %p150 = scmp.eq.s32.totalorder %s149, 0
    %s152 = sadd.s32 %s151, 1
    %s153 = scalar_select %p150, %s151, %s152
    %p156 = pneg %p150
    %p157 = scmp.eq.s32.totalorder %s12, 1
    %p158 = por %p156, %p157
    %p159 = scmp.ne.s32.totalorder %s151, %s154
    %p160 = scmp.eq.s32.totalorder %s12, 0
    %p161 = por %p159, %p160
    %p162 = scmp.ne.s32.totalorder %s151, %s154
    %p163 = scmp.eq.s32.totalorder %s17, 1
    %p164 = por %p162, %p163
    %p165 = scmp.ne.s32.totalorder %s154, %s155
    %p166 = scmp.eq.s32.totalorder %s17, 0
    %p167 = por %p165, %p166
    %p168 = scmp.ne.s32.totalorder %s154, %s155
    %p169 = scmp.eq.s32.totalorder %s18, 1
    %p170 = por %p168, %p169
    %p172 = scmp.ne.s32.totalorder %s155, %s171
    %p173 = scmp.eq.s32.totalorder %s18, 0
    %p174 = por %p172, %p173
    %s175 = ssub.s32 %s19, %s31
    %s176 = ssub.s32 %s20, %s27
    %s177 = sor.u32 %s175, %s176
    %p178 = scmp.eq.s32.totalorder %s177, 0
    %s180 = sadd.s32 %s179, 1
    %s181 = scalar_select %p178, %s179, %s180
    %p184 = pneg %p178
    %p185 = scmp.eq.s32.totalorder %s12, 1
    %p186 = por %p184, %p185
    %p187 = scmp.ne.s32.totalorder %s179, %s182
    %p188 = scmp.eq.s32.totalorder %s12, 0
    %p189 = por %p187, %p188
    %p190 = scmp.ne.s32.totalorder %s179, %s182
    %p191 = scmp.eq.s32.totalorder %s17, 1
    %p192 = por %p190, %p191
    %p193 = scmp.ne.s32.totalorder %s182, %s183
    %p194 = scmp.eq.s32.totalorder %s17, 0
    %p195 = por %p193, %p194
    %p196 = scmp.ne.s32.totalorder %s182, %s183
    %p197 = scmp.eq.s32.totalorder %s18, 1
    %p198 = por %p196, %p197
    %p200 = scmp.ne.s32.totalorder %s183, %s199
    %p201 = scmp.eq.s32.totalorder %s18, 0
    %p202 = por %p200, %p201
    %p203 = scmp.le.s32.totalorder 1, %s12
    %p204 = scmp.lt.s32.totalorder %s12, 3
    %p205 = pnand %p203, %p204
    %p206 = pneg %p205
    // Predicated region
    $region9: #{convolutional_block.2} parent=5 // pred_check
      _
    $region10: #{convolutional_block.2} parent=5 // pred_check_branch
      %208 = sbr.rel (%p205) target = $region12
    $region11: #{convolutional_block.2} parent=5 // pred_region
      %s209 = ssub.s32 %s12, 1
      // Predicated region
      $region13: #{convolutional_block.2} parent=11 // pred_check
        %p210 = pneg %p139
      $region14: #{convolutional_block.2} parent=11 // pred_check_branch
        %212 = sbr.rel (%p210) target = $region16
      $region15: #{convolutional_block.2} parent=11 // pred_region
        _
      $region16: #{convolutional_block.2} parent=11 // pred_fallthru
        _
    $region12: #{convolutional_block.2} parent=5 // pred_fallthru
      _
    %p213 = scmp.lt.s32.totalorder %s12, 2
    // Predicated region
    $region17: #{convolutional_block.2} parent=5 // pred_check
      %p214 = pneg %p213
    $region18: #{convolutional_block.2} parent=5 // pred_check_branch
      %216 = sbr.rel (%p214) target = $region20
    $region19: #{convolutional_block.2} parent=5 // pred_region
      // Predicated region
      $region21: #{convolutional_block.2} parent=19 // pred_check
        %p217 = pneg %p46
      $region22: #{convolutional_block.2} parent=19 // pred_check_branch
        %219 = sbr.rel (%p217) target = $region24
      $region23: #{convolutional_block.2} parent=19 // pred_region
        %s220 = smul.u32 16, %s20
        %s221 = ssub.s32 18, %s220
        %p222 = scmp.lt.s32.totalorder %s221, 16
        %s223 = scalar_select %p222, %s221, 16
        %s224 = smul.u32 64, %s223
        %s225 = smul.u32 %s224, 3
        %p226 = scmp.lt.s32.totalorder %s19, 1
        %s227 = scalar_select %p226, %s19, 1
        %p228 = scmp.lt.s32.totalorder %s220, 17
        %s229 = scalar_select %p228, %s220, 17
        %s230 = smul.addr %s229, 3
        %s231 = smul.addr %s227, 54
        %s232 = sadd.s32 %s230, %s231
        %s233 = smul.addr %s232, 4
        %s234 = scalar_lea.vmem %s0, %s233
        %s235 = smul.u32 16, %s20
        %s236 = ssub.s32 18, %s235
        %p237 = scmp.lt.s32.totalorder %s236, 16
        %s238 = scalar_select %p237, %s236, 16
        %s239 = smul.u32 64, %s238
        %s240 = smul.u32 %s239, 3
      $region24: #{convolutional_block.2} parent=19 // pred_fallthru
        _
      // Predicated region
      $region25: #{convolutional_block.2} parent=19 // pred_check
        %p241 = pneg %p78
      $region26: #{convolutional_block.2} parent=19 // pred_check_branch
        %243 = sbr.rel (%p241) target = $region28
      $region27: #{convolutional_block.2} parent=19 // pred_region
        %s244 = sadd.s32 %s20, 1
        %s245 = smul.u32 %s244, 16
        %p246 = scmp.lt.s32.totalorder %s19, 1
        %s247 = scalar_select %p246, %s19, 1
        %p248 = scmp.lt.s32.totalorder %s245, 17
        %s249 = scalar_select %p248, %s245, 17
        %s250 = smul.addr %s249, 3
        %s251 = smul.addr %s247, 54
        %s252 = sadd.s32 %s250, %s251
        %s253 = smul.addr %s252, 4
        %s254 = scalar_lea.vmem %s1, %s253
        %s255 = sadd.s32 %s20, 1
        %s256 = smul.u32 %s255, 16
      $region28: #{convolutional_block.2} parent=19 // pred_fallthru
        _
      // Predicated region
      $region29: #{convolutional_block.2} parent=19 // pred_check
        %p257 = pneg %p112
      $region30: #{convolutional_block.2} parent=19 // pred_check_branch
        %259 = sbr.rel (%p257) target = $region32
      $region31: #{convolutional_block.2} parent=19 // pred_region
        %s260 = sadd.s32 %s20, 1
        %s261 = smul.u32 %s260, 16
        %s262 = sadd.s32 %s261, 1
        %p263 = scmp.lt.s32.totalorder %s19, 1
        %s264 = scalar_select %p263, %s19, 1
        %p265 = scmp.lt.s32.totalorder %s262, 17
        %s266 = scalar_select %p265, %s262, 17
        %s267 = smul.addr %s266, 3
        %s268 = smul.addr %s264, 54
        %s269 = sadd.s32 %s267, %s268
        %s270 = smul.addr %s269, 4
        %s271 = scalar_lea.vmem %s2, %s270
        %s272 = sadd.s32 %s20, 1
        %s273 = smul.u32 %s272, 16
        %s274 = sadd.s32 %s273, 1
      $region32: #{convolutional_block.2} parent=19 // pred_fallthru
        _
    $region20: #{convolutional_block.2} parent=5 // pred_fallthru
      _
    %p275 = scmp.le.s32.totalorder 1, %s12
    %p276 = scmp.lt.s32.totalorder %s12, 3
    %p277 = pnand %p275, %p276
    %p278 = pneg %p277
    // Predicated region
    $region33: #{convolutional_block.2} parent=5 // pred_check
      _
    $region34: #{convolutional_block.2} parent=5 // pred_check_branch
      %280 = sbr.rel (%p277) target = $region36
    $region35: #{convolutional_block.2} parent=5 // pred_region
      %s281 = ssub.s32 %s12, 1
      %s282 = smul.u32 16, %s22
      %s283 = ssub.s32 18, %s282
      %p284 = scmp.lt.s32.totalorder %s283, 16
      %s285 = scalar_select %p284, %s283, 16
      %s286 = smul.u32 64, %s285
      %s287 = smul.u32 %s286, 3
      %p288 = scmp.lt.s32.totalorder %s21, 1
      %s289 = scalar_select %p288, %s21, 1
      %p290 = scmp.lt.s32.totalorder %s282, 17
      %s291 = scalar_select %p290, %s282, 17
      %s292 = smul.addr %s291, 3
      %s293 = smul.addr %s289, 54
      %s294 = sadd.s32 %s292, %s293
      %s295 = smul.addr %s294, 4
      %s296 = scalar_lea.vmem %s0, %s295
      %p297 = pneg %p52
      %p298 = pneg %p49
      %s299 = sadd.s32 %s22, 1
      %s300 = smul.u32 %s299, 16
      %p301 = scmp.lt.s32.totalorder %s21, 1
      %s302 = scalar_select %p301, %s21, 1
      %p303 = scmp.lt.s32.totalorder %s300, 17
      %s304 = scalar_select %p303, %s300, 17
      %s305 = smul.addr %s304, 3
      %s306 = smul.addr %s302, 54
      %s307 = sadd.s32 %s305, %s306
      %s308 = smul.addr %s307, 4
      %s309 = scalar_lea.vmem %s1, %s308
      %p310 = pneg %p84
      %p311 = pneg %p81
      %s312 = sadd.s32 %s22, 1
      %s313 = smul.u32 %s312, 16
      %s314 = sadd.s32 %s313, 1
      %p315 = scmp.lt.s32.totalorder %s21, 1
      %s316 = scalar_select %p315, %s21, 1
      %p317 = scmp.lt.s32.totalorder %s314, 17
      %s318 = scalar_select %p317, %s314, 17
      %s319 = smul.addr %s318, 3
      %s320 = smul.addr %s316, 54
      %s321 = sadd.s32 %s319, %s320
      %s322 = smul.addr %s321, 4
      %s323 = scalar_lea.vmem %s2, %s322
      %p324 = pneg %p118
      %p325 = pneg %p115
      %p326 = pneg %p139
      %p327 = pneg %p136
      %p328 = pneg %p167
      %p329 = pneg %p164
      %p330 = scmp.lt.s32.totalorder %s21, 1
      %s331 = scalar_select %p330, %s21, 1
      %p332 = scmp.lt.s32.totalorder %s22, 0
      %s333 = scalar_select %p332, %s22, 0
      %s334 = sadd.s32 %s333, %s331
      %s335 = scalar_lea.vmem %s4, %s334
      %p336 = pneg %p195
      %p337 = pneg %p192
      %p338 = scmp.lt.s32.totalorder %s21, 1
      %s339 = scalar_select %p338, %s21, 1
      %p340 = scmp.lt.s32.totalorder %s22, 0
      %s341 = scalar_select %p340, %s22, 0
      %s342 = sadd.s32 %s341, %s339
      %s343 = scalar_lea.vmem %s5, %s342
      %s344 = smul.u32 16, %s22
      %s345 = ssub.s32 18, %s344
      %p346 = scmp.lt.s32.totalorder %s345, 16
      %s347 = scalar_select %p346, %s345, 16
      %s348 = smul.u32 64, %s347
      %s349 = smul.u32 %s348, 3
      %p350 = scmp.lt.s32.totalorder %s21, 1
      %s351 = scalar_select %p350, %s21, 1
      %p352 = scmp.lt.s32.totalorder %s344, 17
      %s353 = scalar_select %p352, %s344, 17
      %s354 = smul.addr %s353, 3
      %s355 = smul.addr %s351, 54
      %s356 = sadd.s32 %s354, %s355
      %s357 = smul.addr %s356, 4
      %s358 = scalar_lea.vmem %s0, %s357
      %s359 = smul.u32 16, %s22
      %s360 = ssub.s32 18, %s359
      %p361 = scmp.lt.s32.totalorder %s360, 16
      %s362 = scalar_select %p361, %s360, 16
      %s363 = smul.u32 64, %s362
      %s364 = smul.u32 %s363, 3
      %s365 = sadd.s32 %s22, 1
      %s366 = smul.u32 %s365, 16
      %p367 = scmp.lt.s32.totalorder %s21, 1
      %s368 = scalar_select %p367, %s21, 1
      %p369 = scmp.lt.s32.totalorder %s366, 17
      %s370 = scalar_select %p369, %s366, 17
      %s371 = smul.addr %s370, 3
      %s372 = smul.addr %s368, 54
      %s373 = sadd.s32 %s371, %s372
      %s374 = smul.addr %s373, 4
      %s375 = scalar_lea.vmem %s1, %s374
      %s376 = sadd.s32 %s22, 1
      %s377 = smul.u32 %s376, 16
      %s378 = sadd.s32 %s22, 1
      %s379 = smul.u32 %s378, 16
      %s380 = sadd.s32 %s379, 1
      %p381 = scmp.lt.s32.totalorder %s21, 1
      %s382 = scalar_select %p381, %s21, 1
      %p383 = scmp.lt.s32.totalorder %s380, 17
      %s384 = scalar_select %p383, %s380, 17
      %s385 = smul.addr %s384, 3
      %s386 = smul.addr %s382, 54
      %s387 = sadd.s32 %s385, %s386
      %s388 = smul.addr %s387, 4
      %s389 = scalar_lea.vmem %s2, %s388
      %s390 = sadd.s32 %s22, 1
      %s391 = smul.u32 %s390, 16
      %s392 = sadd.s32 %s391, 1
      %p393 = scmp.lt.s32.totalorder %s21, 1
      %s394 = scalar_select %p393, %s21, 1
      %p395 = scmp.lt.s32.totalorder %s22, 0
      %s396 = scalar_select %p395, %s22, 0
      %s397 = sadd.s32 %s396, %s394
      %s398 = scalar_lea.vmem %s4, %s397
      %p399 = scmp.lt.s32.totalorder %s21, 1
      %s400 = scalar_select %p399, %s21, 1
      %p401 = scmp.lt.s32.totalorder %s22, 0
      %s402 = scalar_select %p401, %s22, 0
      %s403 = sadd.s32 %s402, %s400
      %s404 = scalar_lea.vmem %s5, %s403
      %v406 = vld [vmem:[%s358] sm:$0xf]
      %v407 = vld [vmem:[%s358 + $0x4] sm:$0xf]
      %v408 = vld [vmem:[%s358 + $0x8] sm:$0x1]
      %v409 = vld [vmem:[%s358 + $0xc] sm:$0xf]
      %v410 = vld [vmem:[%s358 + $0x10] sm:$0xf]
      %v411 = vld [vmem:[%s358 + $0x14] sm:$0x1]
      %v412 = vld [vmem:[%s358 + $0x18] sm:$0xf]
      %v413 = vld [vmem:[%s358 + $0x1c] sm:$0xf]
      %v414 = vld [vmem:[%s358 + $0x20] sm:$0x1]
      %v415 = vld [vmem:[%s358 + $0x24] sm:$0xf]
      %v416 = vld [vmem:[%s358 + $0x28] sm:$0xf]
      %v417 = vld [vmem:[%s358 + $0x2c] sm:$0x1]
      %v418 = vld [vmem:[%s358 + $0x30] sm:$0xf]
      %v419 = vld [vmem:[%s358 + $0x34] sm:$0xf]
      %v420 = vld [vmem:[%s358 + $0x38] sm:$0x1]
      %v421 = vld [vmem:[%s358 + $0x3c] sm:$0xf]
      %v422 = vld [vmem:[%s358 + $0x40] sm:$0xf]
      %v423 = vld [vmem:[%s358 + $0x44] sm:$0x1]
      %v424 = vld [vmem:[%s358 + $0x48] sm:$0xf]
      %v425 = vld [vmem:[%s358 + $0x4c] sm:$0xf]
      %v426 = vld [vmem:[%s358 + $0x50] sm:$0x1]
      %v427 = vld [vmem:[%s358 + $0x54] sm:$0xf]
      %v428 = vld [vmem:[%s358 + $0x58] sm:$0xf]
      %v429 = vld [vmem:[%s358 + $0x5c] sm:$0x1]
      %v430 = vld [vmem:[%s358 + $0x60] sm:$0xf]
      %v431 = vld [vmem:[%s358 + $0x64] sm:$0xf]
      %v432 = vld [vmem:[%s358 + $0x68] sm:$0x1]
      %v433 = vld [vmem:[%s358 + $0x6c] sm:$0xf]
      %v434 = vld [vmem:[%s358 + $0x70] sm:$0xf]
      %v435 = vld [vmem:[%s358 + $0x74] sm:$0x1]
      %v436 = vld [vmem:[%s358 + $0x78] sm:$0xf]
      %v437 = vld [vmem:[%s358 + $0x7c] sm:$0xf]
      %v438 = vld [vmem:[%s358 + $0x80] sm:$0x1]
      %v439 = vld [vmem:[%s358 + $0x84] sm:$0xf]
      %v440 = vld [vmem:[%s358 + $0x88] sm:$0xf]
      %v441 = vld [vmem:[%s358 + $0x8c] sm:$0x1]
      %v442 = vld [vmem:[%s358 + $0x90] sm:$0xf]
      %v443 = vld [vmem:[%s358 + $0x94] sm:$0xf]
      %v444 = vld [vmem:[%s358 + $0x98] sm:$0x1]
      %v445 = vld [vmem:[%s358 + $0x9c] sm:$0xf]
      %v446 = vld [vmem:[%s358 + $0xa0] sm:$0xf]
      %v447 = vld [vmem:[%s358 + $0xa4] sm:$0x1]
      %v448 = vld [vmem:[%s358 + $0xa8] sm:$0xf]
      %v449 = vld [vmem:[%s358 + $0xac] sm:$0xf]
      %v450 = vld [vmem:[%s358 + $0xb0] sm:$0x1]
      %v451 = vld [vmem:[%s358 + $0xb4] sm:$0xf]
      %v452 = vld [vmem:[%s358 + $0xb8] sm:$0xf]
      %v453 = vld [vmem:[%s358 + $0xbc] sm:$0x1]
      %v454 = vld [vmem:[%s375] sm:$0xf]
      %v455 = vld [vmem:[%s375 + $0x4] sm:$0xf]
      %v456 = vld [vmem:[%s375 + $0x8] sm:$0x1]
      %v457 = vld [vmem:[%s389] sm:$0xf]
      %v458 = vld [vmem:[%s389 + $0x4] sm:$0xf]
      %v459 = vld [vmem:[%s389 + $0x8] sm:$0x1]
      %v460 = vld [vmem:[%s3] sm:$0x3]
      %vm461 = vsmask.f32 3328
      %vm462 = vsmask.f32 7440
      %vm463 = vmor %vm461, %vm462
      %v465 = vshrl.u32 %v406, 16
      %v467 = vrot.slane %v465, 4
      %v468 = vshll.u32 %v406, 16
      %v470 = vrot.slane %v468, 5
      %v471 = vor.u32 %v467, %v470
      %v472 = vrot.slane %v471, 4
      %v474 = vshll.u32 %v407, 16
      %v476 = vrot.slane %v474, 5
      %v477 = vsel %vm463, %v472, %v476
      %v478 = vshrl.u32 %v407, 16
      %v480 = vrot.slane %v478, 4
      %v481 = vor.u32 %v480, %v476
      %v482 = vrot.slane %v481, 4
      %v484 = vshll.u32 %v408, 16
      %v486 = vrot.slane %v484, 5
      %v487 = vsel %vm463, %v482, %v486
      %v489 = vshrl.u32 %v409, 16
      %v491 = vrot.slane %v489, 4
      %v492 = vshll.u32 %v409, 16
      %v494 = vrot.slane %v492, 5
      %v495 = vor.u32 %v491, %v494
      %v496 = vrot.slane %v495, 4
      %v498 = vshll.u32 %v410, 16
      %v500 = vrot.slane %v498, 5
      %v501 = vsel %vm463, %v496, %v500
      %v502 = vshrl.u32 %v410, 16
      %v504 = vrot.slane %v502, 4
      %v505 = vor.u32 %v504, %v500
      %v506 = vrot.slane %v505, 4
      %v508 = vshll.u32 %v411, 16
      %v510 = vrot.slane %v508, 5
      %v511 = vsel %vm463, %v506, %v510
      %v513 = vshrl.u32 %v412, 16
      %v515 = vrot.slane %v513, 4
      %v516 = vshll.u32 %v412, 16
      %v518 = vrot.slane %v516, 5
      %v519 = vor.u32 %v515, %v518
      %v520 = vrot.slane %v519, 4
      %v522 = vshll.u32 %v413, 16
      %v524 = vrot.slane %v522, 5
      %v525 = vsel %vm463, %v520, %v524
      %v526 = vshrl.u32 %v413, 16
      %v528 = vrot.slane %v526, 4
      %v529 = vor.u32 %v528, %v524
      %v530 = vrot.slane %v529, 4
      %v532 = vshll.u32 %v414, 16
      %v534 = vrot.slane %v532, 5
      %v535 = vsel %vm463, %v530, %v534
      %v537 = vshrl.u32 %v415, 16
      %v539 = vrot.slane %v537, 4
      %v540 = vshll.u32 %v415, 16
      %v542 = vrot.slane %v540, 5
      %v543 = vor.u32 %v539, %v542
      %v544 = vrot.slane %v543, 4
      %v546 = vshll.u32 %v416, 16
      %v548 = vrot.slane %v546, 5
      %v549 = vsel %vm463, %v544, %v548
      %v550 = vshrl.u32 %v416, 16
      %v552 = vrot.slane %v550, 4
      %v553 = vor.u32 %v552, %v548
      %v554 = vrot.slane %v553, 4
      %v556 = vshll.u32 %v417, 16
      %v558 = vrot.slane %v556, 5
      %v559 = vsel %vm463, %v554, %v558
      %v561 = vshrl.u32 %v418, 16
      %v563 = vrot.slane %v561, 4
      %v564 = vshll.u32 %v418, 16
      %v566 = vrot.slane %v564, 5
      %v567 = vor.u32 %v563, %v566
      %v568 = vrot.slane %v567, 4
      %v570 = vshll.u32 %v419, 16
      %v572 = vrot.slane %v570, 5
      %v573 = vsel %vm463, %v568, %v572
      %v574 = vshrl.u32 %v419, 16
      %v576 = vrot.slane %v574, 4
      %v577 = vor.u32 %v576, %v572
      %v578 = vrot.slane %v577, 4
      %v580 = vshll.u32 %v420, 16
      %v582 = vrot.slane %v580, 5
      %v583 = vsel %vm463, %v578, %v582
      %v585 = vshrl.u32 %v421, 16
      %v587 = vrot.slane %v585, 4
      %v588 = vshll.u32 %v421, 16
      %v590 = vrot.slane %v588, 5
      %v591 = vor.u32 %v587, %v590
      %v592 = vrot.slane %v591, 4
      %v594 = vshll.u32 %v422, 16
      %v596 = vrot.slane %v594, 5
      %v597 = vsel %vm463, %v592, %v596
      %v598 = vshrl.u32 %v422, 16
      %v600 = vrot.slane %v598, 4
      %v601 = vor.u32 %v600, %v596
      %v602 = vrot.slane %v601, 4
      %v604 = vshll.u32 %v423, 16
      %v606 = vrot.slane %v604, 5
      %v607 = vsel %vm463, %v602, %v606
      %v609 = vshrl.u32 %v424, 16
      %v611 = vrot.slane %v609, 4
      %v612 = vshll.u32 %v424, 16
      %v614 = vrot.slane %v612, 5
      %v615 = vor.u32 %v611, %v614
      %v616 = vrot.slane %v615, 4
      %v618 = vshll.u32 %v425, 16
      %v620 = vrot.slane %v618, 5
      %v621 = vsel %vm463, %v616, %v620
      %v622 = vshrl.u32 %v425, 16
      %v624 = vrot.slane %v622, 4
      %v625 = vor.u32 %v624, %v620
      %v626 = vrot.slane %v625, 4
      %v628 = vshll.u32 %v426, 16
      %v630 = vrot.slane %v628, 5
      %v631 = vsel %vm463, %v626, %v630
      %v633 = vshrl.u32 %v427, 16
      %v635 = vrot.slane %v633, 4
      %v636 = vshll.u32 %v427, 16
      %v638 = vrot.slane %v636, 5
      %v639 = vor.u32 %v635, %v638
      %v640 = vrot.slane %v639, 4
      %v642 = vshll.u32 %v428, 16
      %v644 = vrot.slane %v642, 5
      %v645 = vsel %vm463, %v640, %v644
      %v646 = vshrl.u32 %v428, 16
      %v648 = vrot.slane %v646, 4
      %v649 = vor.u32 %v648, %v644
      %v650 = vrot.slane %v649, 4
      %v652 = vshll.u32 %v429, 16
      %v654 = vrot.slane %v652, 5
      %v655 = vsel %vm463, %v650, %v654
      %v657 = vshrl.u32 %v430, 16
      %v659 = vrot.slane %v657, 4
      %v660 = vshll.u32 %v430, 16
      %v662 = vrot.slane %v660, 5
      %v663 = vor.u32 %v659, %v662
      %v664 = vrot.slane %v663, 4
      %v666 = vshll.u32 %v431, 16
      %v668 = vrot.slane %v666, 5
      %v669 = vsel %vm463, %v664, %v668
      %v670 = vshrl.u32 %v431, 16
      %v672 = vrot.slane %v670, 4
      %v673 = vor.u32 %v672, %v668
      %v674 = vrot.slane %v673, 4
      %v676 = vshll.u32 %v432, 16
      %v678 = vrot.slane %v676, 5
      %v679 = vsel %vm463, %v674, %v678
      %v681 = vshrl.u32 %v433, 16
      %v683 = vrot.slane %v681, 4
      %v684 = vshll.u32 %v433, 16
      %v686 = vrot.slane %v684, 5
      %v687 = vor.u32 %v683, %v686
      %v688 = vrot.slane %v687, 4
      %v690 = vshll.u32 %v434, 16
      %v692 = vrot.slane %v690, 5
      %v693 = vsel %vm463, %v688, %v692
      %v694 = vshrl.u32 %v434, 16
      %v696 = vrot.slane %v694, 4
      %v697 = vor.u32 %v696, %v692
      %v698 = vrot.slane %v697, 4
      %v700 = vshll.u32 %v435, 16
      %v702 = vrot.slane %v700, 5
      %v703 = vsel %vm463, %v698, %v702
      %v705 = vshrl.u32 %v436, 16
      %v707 = vrot.slane %v705, 4
      %v708 = vshll.u32 %v436, 16
      %v710 = vrot.slane %v708, 5
      %v711 = vor.u32 %v707, %v710
      %v712 = vrot.slane %v711, 4
      %v714 = vshll.u32 %v437, 16
      %v716 = vrot.slane %v714, 5
      %v717 = vsel %vm463, %v712, %v716
      %v718 = vshrl.u32 %v437, 16
      %v720 = vrot.slane %v718, 4
      %v721 = vor.u32 %v720, %v716
      %v722 = vrot.slane %v721, 4
      %v724 = vshll.u32 %v438, 16
      %v726 = vrot.slane %v724, 5
      %v727 = vsel %vm463, %v722, %v726
      %v729 = vshrl.u32 %v439, 16
      %v731 = vrot.slane %v729, 4
      %v732 = vshll.u32 %v439, 16
      %v734 = vrot.slane %v732, 5
      %v735 = vor.u32 %v731, %v734
      %v736 = vrot.slane %v735, 4
      %v738 = vshll.u32 %v440, 16
      %v740 = vrot.slane %v738, 5
      %v741 = vsel %vm463, %v736, %v740
      %v742 = vshrl.u32 %v440, 16
      %v744 = vrot.slane %v742, 4
      %v745 = vor.u32 %v744, %v740
      %v746 = vrot.slane %v745, 4
      %v748 = vshll.u32 %v441, 16
      %v750 = vrot.slane %v748, 5
      %v751 = vsel %vm463, %v746, %v750
      %v753 = vshrl.u32 %v442, 16
      %v755 = vrot.slane %v753, 4
      %v756 = vshll.u32 %v442, 16
      %v758 = vrot.slane %v756, 5
      %v759 = vor.u32 %v755, %v758
      %v760 = vrot.slane %v759, 4
      %v762 = vshll.u32 %v443, 16
      %v764 = vrot.slane %v762, 5
      %v765 = vsel %vm463, %v760, %v764
      %v766 = vshrl.u32 %v443, 16
      %v768 = vrot.slane %v766, 4
      %v769 = vor.u32 %v768, %v764
      %v770 = vrot.slane %v769, 4
      %v772 = vshll.u32 %v444, 16
      %v774 = vrot.slane %v772, 5
      %v775 = vsel %vm463, %v770, %v774
      %v777 = vshrl.u32 %v445, 16
      %v779 = vrot.slane %v777, 4
      %v780 = vshll.u32 %v445, 16
      %v782 = vrot.slane %v780, 5
      %v783 = vor.u32 %v779, %v782
      %v784 = vrot.slane %v783, 4
      %v786 = vshll.u32 %v446, 16
      %v788 = vrot.slane %v786, 5
      %v789 = vsel %vm463, %v784, %v788
      %v790 = vshrl.u32 %v446, 16
      %v792 = vrot.slane %v790, 4
      %v793 = vor.u32 %v792, %v788
      %v794 = vrot.slane %v793, 4
      %v796 = vshll.u32 %v447, 16
      %v798 = vrot.slane %v796, 5
      %v799 = vsel %vm463, %v794, %v798
      %v801 = vshrl.u32 %v448, 16
      %v803 = vrot.slane %v801, 4
      %v804 = vshll.u32 %v448, 16
      %v806 = vrot.slane %v804, 5
      %v807 = vor.u32 %v803, %v806
      %v808 = vrot.slane %v807, 4
      %v810 = vshll.u32 %v449, 16
      %v812 = vrot.slane %v810, 5
      %v813 = vsel %vm463, %v808, %v812
      %v814 = vshrl.u32 %v449, 16
      %v816 = vrot.slane %v814, 4
      %v817 = vor.u32 %v816, %v812
      %v818 = vrot.slane %v817, 4
      %v820 = vshll.u32 %v450, 16
      %v822 = vrot.slane %v820, 5
      %v823 = vsel %vm463, %v818, %v822
      %v825 = vshrl.u32 %v451, 16
      %v827 = vrot.slane %v825, 4
      %v828 = vshll.u32 %v451, 16
      %v830 = vrot.slane %v828, 5
      %v831 = vor.u32 %v827, %v830
      %v832 = vrot.slane %v831, 4
      %v834 = vshll.u32 %v452, 16
      %v836 = vrot.slane %v834, 5
      %v837 = vsel %vm463, %v832, %v836
      %v838 = vshrl.u32 %v452, 16
      %v840 = vrot.slane %v838, 4
      %v841 = vor.u32 %v840, %v836
      %v842 = vrot.slane %v841, 4
      %v844 = vshll.u32 %v453, 16
      %v846 = vrot.slane %v844, 5
      %v847 = vsel %vm463, %v842, %v846
      %s848 = scalar_lea.vmem %s3, 2
      %v849 = vld [vmem:[%s848] sm:$0x3]
      %v850 = vunpack.c.l.b16 %v477
      %v851 = vunpack.c.l.b16 %v487
      %v852 = vunpack.c.l.b16 %v501
      %v853 = vunpack.c.l.b16 %v511
      %v854 = vunpack.c.l.b16 %v525
      %v855 = vunpack.c.l.b16 %v535
      %v856 = vunpack.c.l.b16 %v549
      %v857 = vunpack.c.l.b16 %v559
      %v858 = vunpack.c.l.b16 %v573
      %v859 = vunpack.c.l.b16 %v583
      %v860 = vunpack.c.l.b16 %v597
      %v861 = vunpack.c.l.b16 %v607
      %v862 = vunpack.c.l.b16 %v621
      %v863 = vunpack.c.l.b16 %v631
      %v864 = vunpack.c.l.b16 %v645
      %v865 = vunpack.c.l.b16 %v655
      %v866 = vunpack.c.l.b16 %v669
      %v867 = vunpack.c.l.b16 %v679
      %v868 = vunpack.c.l.b16 %v693
      %v869 = vunpack.c.l.b16 %v703
      %v870 = vunpack.c.l.b16 %v717
      %v871 = vunpack.c.l.b16 %v727
      %v872 = vunpack.c.l.b16 %v741
      %v873 = vunpack.c.l.b16 %v751
      %v874 = vunpack.c.l.b16 %v765
      %v875 = vunpack.c.l.b16 %v775
      %v876 = vunpack.c.l.b16 %v789
      %v877 = vunpack.c.l.b16 %v799
      %v878 = vunpack.c.l.b16 %v813
      %v879 = vunpack.c.l.b16 %v823
      %v880 = vunpack.c.l.b16 %v837
      %v881 = vunpack.c.l.b16 %v847
      %v882 = vpack.c.b16 %v851, %v850
      %v883 = vpack.c.b16 %v853, %v852
      %v884 = vpack.c.b16 %v855, %v854
      %v885 = vpack.c.b16 %v857, %v856
      %v886 = vpack.c.b16 %v859, %v858
      %v887 = vpack.c.b16 %v861, %v860
      %v888 = vpack.c.b16 %v863, %v862
      %v889 = vpack.c.b16 %v865, %v864
      %v890 = vpack.c.b16 %v867, %v866
      %v891 = vpack.c.b16 %v869, %v868
      %v892 = vpack.c.b16 %v871, %v870
      %v893 = vpack.c.b16 %v873, %v872
      %v894 = vpack.c.b16 %v875, %v874
      %v895 = vpack.c.b16 %v877, %v876
      %v896 = vpack.c.b16 %v879, %v878
      %v897 = vpack.c.b16 %v881, %v880
      %vm898 = vcmask 31744
      %v900 = vsel %vm898, %v882, 0
      %v903 = vsel %vm898, %v883, 0
      %v906 = vsel %vm898, %v884, 0
      %v909 = vsel %vm898, %v885, 0
      %v912 = vsel %vm898, %v886, 0
      %v915 = vsel %vm898, %v887, 0
      %v918 = vsel %vm898, %v888, 0
      %v921 = vsel %vm898, %v889, 0
      %v924 = vsel %vm898, %v890, 0
      %v927 = vsel %vm898, %v891, 0
      %v930 = vsel %vm898, %v892, 0
      %v933 = vsel %vm898, %v893, 0
      %v936 = vsel %vm898, %v894, 0
      %v939 = vsel %vm898, %v895, 0
      %v942 = vsel %vm898, %v896, 0
      %v945 = vsel %vm898, %v897, 0
      %vm947 = vcmask 1041408
      %v949 = vsel %vm947, %v849, 0
      %951 = vmatprep.subr.bf16.mxu0 0
      %952 = vmatpush1.bf16.msra.mxu0 0
      %953 = vmatprep.subr.bf16.mxu0 0
      %954 = vmatpush1.bf16.msra.mxu0 0
      %955 = vmatprep.subr.bf16.mxu0 0
      %956 = vmatpush1.bf16.msra.mxu0 0
      %957 = vmatprep.subr.bf16.mxu0 0
      %958 = vmatpush1.bf16.msra.mxu0 0
      %959 = vmatprep.subr.bf16.mxu0 0
      %960 = vmatpush1.bf16.msra.mxu0 0
      %961 = vmatprep.subr.bf16.mxu0 0
      %962 = vmatpush1.bf16.msra.mxu0 0
      %963 = vmatprep.subr.bf16.mxu0 0
      %964 = vmatpush1.bf16.msra.mxu0 0
      %965 = vmatprep.subr.bf16.mxu0 0
      %966 = vmatpush1.bf16.msra.mxu0 %v949
      %967 = vmatprep.subr.bf16.mxu0 0
      %968 = vmatpush2.bf16.msra.mxu0 0
      %969 = vmatprep.subr.bf16.mxu0 0
      %970 = vmatpush2.bf16.msra.mxu0 0
      %971 = vmatprep.subr.bf16.mxu0 0
      %972 = vmatpush2.bf16.msra.mxu0 0
      %973 = vmatprep.subr.bf16.mxu0 0
      %974 = vmatpush2.bf16.msra.mxu0 0
      %975 = vmatprep.subr.bf16.mxu0 0
      %976 = vmatpush2.bf16.msra.mxu0 0
      %977 = vmatprep.subr.bf16.mxu0 0
      %978 = vmatpush2.bf16.msra.mxu0 0
      %979 = vmatprep.subr.bf16.mxu0 0
      %980 = vmatpush2.bf16.msra.mxu0 0
      %981 = vmatprep.subr.bf16.mxu0 0
      %982 = vmatpush2.bf16.msra.mxu0 0
      %983 = vmatprep.mubr.bf16.mxu0 0
      %984 = vmatmul.mubr.bf16.gmra.mxu0 %v900
      %v985 = vpop.f32.mrf.mxu0
      %v986 = vadd.f32 0.0, %v985
      %v987 = vpop.f32.mrf.mxu0
      %v988 = vpop.f32.mrf.mxu0
      %v989 = vadd.f32 0.0, %v988
      %v990 = vpop.f32.mrf.mxu0
      %991 = vmatprep.mubr.bf16.mxu0 0
      %992 = vmatmul.mubr.bf16.gmra.mxu0 %v903
      %v993 = vpop.f32.mrf.mxu0
      %v994 = vadd.f32 0.0, %v993
      %v995 = vpop.f32.mrf.mxu0
      %v996 = vpop.f32.mrf.mxu0
      %v997 = vadd.f32 0.0, %v996
      %v998 = vpop.f32.mrf.mxu0
      %999 = vmatprep.mubr.bf16.mxu0 0
      %1000 = vmatmul.mubr.bf16.gmra.mxu0 %v906
      %v1001 = vpop.f32.mrf.mxu0
      %v1002 = vadd.f32 0.0, %v1001
      %v1003 = vpop.f32.mrf.mxu0
      %v1004 = vpop.f32.mrf.mxu0
      %v1005 = vadd.f32 0.0, %v1004
      %v1006 = vpop.f32.mrf.mxu0
      %1007 = vmatprep.mubr.bf16.mxu0 0
      %1008 = vmatmul.mubr.bf16.gmra.mxu0 %v909
      %v1009 = vpop.f32.mrf.mxu0
      %v1010 = vadd.f32 0.0, %v1009
      %v1011 = vpop.f32.mrf.mxu0
      %v1012 = vpop.f32.mrf.mxu0
      %v1013 = vadd.f32 0.0, %v1012
      %v1014 = vpop.f32.mrf.mxu0
      %1015 = vmatprep.mubr.bf16.mxu0 0
      %1016 = vmatmul.mubr.bf16.gmra.mxu0 %v912
      %v1017 = vpop.f32.mrf.mxu0
      %v1018 = vadd.f32 0.0, %v1017
      %v1019 = vpop.f32.mrf.mxu0
      %v1020 = vpop.f32.mrf.mxu0
      %v1021 = vadd.f32 0.0, %v1020
      %v1022 = vpop.f32.mrf.mxu0
      %1023 = vmatprep.mubr.bf16.mxu0 0
      %1024 = vmatmul.mubr.bf16.gmra.mxu0 %v915
      %v1025 = vpop.f32.mrf.mxu0
      %v1026 = vadd.f32 0.0, %v1025
      %v1027 = vpop.f32.mrf.mxu0
      %v1028 = vpop.f32.mrf.mxu0
      %v1029 = vadd.f32 0.0, %v1028
      %v1030 = vpop.f32.mrf.mxu0
      %1031 = vmatprep.mubr.bf16.mxu0 0
      %1032 = vmatmul.mubr.bf16.gmra.mxu0 %v918
      %v1033 = vpop.f32.mrf.mxu0
      %v1034 = vadd.f32 0.0, %v1033
      %v1035 = vpop.f32.mrf.mxu0
      %v1036 = vpop.f32.mrf.mxu0
      %v1037 = vadd.f32 0.0, %v1036
      %v1038 = vpop.f32.mrf.mxu0
      %1039 = vmatprep.mubr.bf16.mxu0 0
      %1040 = vmatmul.mubr.bf16.gmra.mxu0 %v921
      %v1041 = vpop.f32.mrf.mxu0
      %v1042 = vadd.f32 0.0, %v1041
      %v1043 = vpop.f32.mrf.mxu0
      %v1044 = vpop.f32.mrf.mxu0
      %v1045 = vadd.f32 0.0, %v1044
      %v1046 = vpop.f32.mrf.mxu0
      %1047 = vmatprep.mubr.bf16.mxu0 0
      %1048 = vmatmul.mubr.bf16.gmra.mxu0 %v924
      %v1049 = vpop.f32.mrf.mxu0
      %v1050 = vadd.f32 0.0, %v1049
      %v1051 = vpop.f32.mrf.mxu0
      %v1052 = vpop.f32.mrf.mxu0
      %v1053 = vadd.f32 0.0, %v1052
      %v1054 = vpop.f32.mrf.mxu0
      %1055 = vmatprep.mubr.bf16.mxu0 0
      %1056 = vmatmul.mubr.bf16.gmra.mxu0 %v927
      %v1057 = vpop.f32.mrf.mxu0
      %v1058 = vadd.f32 0.0, %v1057
      %v1059 = vpop.f32.mrf.mxu0
      %v1060 = vpop.f32.mrf.mxu0
      %v1061 = vadd.f32 0.0, %v1060
      %v1062 = vpop.f32.mrf.mxu0
      %1063 = vmatprep.mubr.bf16.mxu0 0
      %1064 = vmatmul.mubr.bf16.gmra.mxu0 %v930
      %v1065 = vpop.f32.mrf.mxu0
      %v1066 = vadd.f32 0.0, %v1065
      %v1067 = vpop.f32.mrf.mxu0
      %v1068 = vpop.f32.mrf.mxu0
      %v1069 = vadd.f32 0.0, %v1068
      %v1070 = vpop.f32.mrf.mxu0
      %1071 = vmatprep.mubr.bf16.mxu0 0
      %1072 = vmatmul.mubr.bf16.gmra.mxu0 %v933
      %v1073 = vpop.f32.mrf.mxu0
      %v1074 = vadd.f32 0.0, %v1073
      %v1075 = vpop.f32.mrf.mxu0
      %v1076 = vpop.f32.mrf.mxu0
      %v1077 = vadd.f32 0.0, %v1076
      %v1078 = vpop.f32.mrf.mxu0
      %1079 = vmatprep.mubr.bf16.mxu0 0
      %1080 = vmatmul.mubr.bf16.gmra.mxu0 %v936
      %v1081 = vpop.f32.mrf.mxu0
      %v1082 = vadd.f32 0.0, %v1081
      %v1083 = vpop.f32.mrf.mxu0
      %v1084 = vpop.f32.mrf.mxu0
      %v1085 = vadd.f32 0.0, %v1084
      %v1086 = vpop.f32.mrf.mxu0
      %1087 = vmatprep.mubr.bf16.mxu0 0
      %1088 = vmatmul.mubr.bf16.gmra.mxu0 %v939
      %v1089 = vpop.f32.mrf.mxu0
      %v1090 = vadd.f32 0.0, %v1089
      %v1091 = vpop.f32.mrf.mxu0
      %v1092 = vpop.f32.mrf.mxu0
      %v1093 = vadd.f32 0.0, %v1092
      %v1094 = vpop.f32.mrf.mxu0
      %1095 = vmatprep.mubr.bf16.mxu0 0
      %1096 = vmatmul.mubr.bf16.gmra.mxu0 %v942
      %v1097 = vpop.f32.mrf.mxu0
      %v1098 = vadd.f32 0.0, %v1097
      %v1099 = vpop.f32.mrf.mxu0
      %v1100 = vpop.f32.mrf.mxu0
      %v1101 = vadd.f32 0.0, %v1100
      %v1102 = vpop.f32.mrf.mxu0
      %1103 = vmatprep.mubr.bf16.mxu0 0
      %1104 = vmatmul.mubr.bf16.gmra.mxu0 %v945
      %v1105 = vpop.f32.mrf.mxu0
      %v1106 = vadd.f32 0.0, %v1105
      %v1107 = vpop.f32.mrf.mxu0
      %v1108 = vpop.f32.mrf.mxu0
      %v1109 = vadd.f32 0.0, %v1108
      %v1110 = vpop.f32.mrf.mxu0
      %1111 = vdwg.mxu0
      %v1144 = vunpack.c.l.b16 %v406
      %v1145 = vunpack.c.l.b16 %v407
      %v1146 = vunpack.c.l.b16 %v409
      %v1147 = vunpack.c.l.b16 %v410
      %v1148 = vunpack.c.l.b16 %v412
      %v1149 = vunpack.c.l.b16 %v413
      %v1150 = vunpack.c.l.b16 %v415
      %v1151 = vunpack.c.l.b16 %v416
      %v1152 = vunpack.c.l.b16 %v418
      %v1153 = vunpack.c.l.b16 %v419
      %v1154 = vunpack.c.l.b16 %v421
      %v1155 = vunpack.c.l.b16 %v422
      %v1156 = vunpack.c.l.b16 %v424
      %v1157 = vunpack.c.l.b16 %v425
      %v1158 = vunpack.c.l.b16 %v427
      %v1159 = vunpack.c.l.b16 %v428
      %v1160 = vunpack.c.l.b16 %v430
      %v1161 = vunpack.c.l.b16 %v431
      %v1162 = vunpack.c.l.b16 %v433
      %v1163 = vunpack.c.l.b16 %v434
      %v1164 = vunpack.c.l.b16 %v436
      %v1165 = vunpack.c.l.b16 %v437
      %v1166 = vunpack.c.l.b16 %v439
      %v1167 = vunpack.c.l.b16 %v440
      %v1168 = vunpack.c.l.b16 %v442
      %v1169 = vunpack.c.l.b16 %v443
      %v1170 = vunpack.c.l.b16 %v445
      %v1171 = vunpack.c.l.b16 %v446
      %v1172 = vunpack.c.l.b16 %v448
      %v1173 = vunpack.c.l.b16 %v449
      %v1174 = vunpack.c.l.b16 %v451
      %v1175 = vunpack.c.l.b16 %v452
      %v1176 = vpack.c.b16 %v1145, %v1144
      %v1177 = vpack.c.b16 %v1147, %v1146
      %v1178 = vpack.c.b16 %v1149, %v1148
      %v1179 = vpack.c.b16 %v1151, %v1150
      %v1180 = vpack.c.b16 %v1153, %v1152
      %v1181 = vpack.c.b16 %v1155, %v1154
      %v1182 = vpack.c.b16 %v1157, %v1156
      %v1183 = vpack.c.b16 %v1159, %v1158
      %v1184 = vpack.c.b16 %v1161, %v1160
      %v1185 = vpack.c.b16 %v1163, %v1162
      %v1186 = vpack.c.b16 %v1165, %v1164
      %v1187 = vpack.c.b16 %v1167, %v1166
      %v1188 = vpack.c.b16 %v1169, %v1168
      %v1189 = vpack.c.b16 %v1171, %v1170
      %v1190 = vpack.c.b16 %v1173, %v1172
      %v1191 = vpack.c.b16 %v1175, %v1174
      %v1193 = vsel %vm898, %v1176, 0
      %v1196 = vsel %vm898, %v1177, 0
      %v1199 = vsel %vm898, %v1178, 0
      %v1202 = vsel %vm898, %v1179, 0
      %v1205 = vsel %vm898, %v1180, 0
      %v1208 = vsel %vm898, %v1181, 0
      %v1211 = vsel %vm898, %v1182, 0
      %v1214 = vsel %vm898, %v1183, 0
      %v1217 = vsel %vm898, %v1184, 0
      %v1220 = vsel %vm898, %v1185, 0
      %v1223 = vsel %vm898, %v1186, 0
      %v1226 = vsel %vm898, %v1187, 0
      %v1229 = vsel %vm898, %v1188, 0
      %v1232 = vsel %vm898, %v1189, 0
      %v1235 = vsel %vm898, %v1190, 0
      %v1238 = vsel %vm898, %v1191, 0
      %v1241 = vsel %vm947, %v460, 0
      %1243 = vmatprep.subr.bf16.mxu0 0
      %1244 = vmatpush1.bf16.msra.mxu0 0
      %1245 = vmatprep.subr.bf16.mxu0 0
      %1246 = vmatpush1.bf16.msra.mxu0 0
      %1247 = vmatprep.subr.bf16.mxu0 0
      %1248 = vmatpush1.bf16.msra.mxu0 0
      %1249 = vmatprep.subr.bf16.mxu0 0
      %1250 = vmatpush1.bf16.msra.mxu0 0
      %1251 = vmatprep.subr.bf16.mxu0 0
      %1252 = vmatpush1.bf16.msra.mxu0 0
      %1253 = vmatprep.subr.bf16.mxu0 0
      %1254 = vmatpush1.bf16.msra.mxu0 0
      %1255 = vmatprep.subr.bf16.mxu0 0
      %1256 = vmatpush1.bf16.msra.mxu0 0
      %1257 = vmatprep.subr.bf16.mxu0 0
      %1258 = vmatpush1.bf16.msra.mxu0 %v1241
      %1259 = vmatprep.subr.bf16.mxu0 0
      %1260 = vmatpush2.bf16.msra.mxu0 0
      %1261 = vmatprep.subr.bf16.mxu0 0
      %1262 = vmatpush2.bf16.msra.mxu0 0
      %1263 = vmatprep.subr.bf16.mxu0 0
      %1264 = vmatpush2.bf16.msra.mxu0 0
      %1265 = vmatprep.subr.bf16.mxu0 0
      %1266 = vmatpush2.bf16.msra.mxu0 0
      %1267 = vmatprep.subr.bf16.mxu0 0
      %1268 = vmatpush2.bf16.msra.mxu0 0
      %1269 = vmatprep.subr.bf16.mxu0 0
      %1270 = vmatpush2.bf16.msra.mxu0 0
      %1271 = vmatprep.subr.bf16.mxu0 0
      %1272 = vmatpush2.bf16.msra.mxu0 0
      %1273 = vmatprep.subr.bf16.mxu0 0
      %1274 = vmatpush2.bf16.msra.mxu0 0
      %1275 = vmatprep.mubr.bf16.mxu0 0
      %1276 = vmatmul.mubr.bf16.gmra.mxu0 %v1193
      %v1277 = vpop.f32.mrf.mxu0
      %v1278 = vadd.f32 %v986, %v1277
      %v1279 = vpop.f32.mrf.mxu0
      %v1280 = vpop.f32.mrf.mxu0
      %v1281 = vadd.f32 %v989, %v1280
      %v1282 = vpop.f32.mrf.mxu0
      %1283 = vmatprep.mubr.bf16.mxu0 0
      %1284 = vmatmul.mubr.bf16.gmra.mxu0 %v1196
      %v1285 = vpop.f32.mrf.mxu0
      %v1286 = vadd.f32 %v994, %v1285
      %v1287 = vpop.f32.mrf.mxu0
      %v1288 = vpop.f32.mrf.mxu0
      %v1289 = vadd.f32 %v997, %v1288
      %v1290 = vpop.f32.mrf.mxu0
      %1291 = vmatprep.mubr.bf16.mxu0 0
      %1292 = vmatmul.mubr.bf16.gmra.mxu0 %v1199
      %v1293 = vpop.f32.mrf.mxu0
      %v1294 = vadd.f32 %v1002, %v1293
      %v1295 = vpop.f32.mrf.mxu0
      %v1296 = vpop.f32.mrf.mxu0
      %v1297 = vadd.f32 %v1005, %v1296
      %v1298 = vpop.f32.mrf.mxu0
      %1299 = vmatprep.mubr.bf16.mxu0 0
      %1300 = vmatmul.mubr.bf16.gmra.mxu0 %v1202
      %v1301 = vpop.f32.mrf.mxu0
      %v1302 = vadd.f32 %v1010, %v1301
      %v1303 = vpop.f32.mrf.mxu0
      %v1304 = vpop.f32.mrf.mxu0
      %v1305 = vadd.f32 %v1013, %v1304
      %v1306 = vpop.f32.mrf.mxu0
      %1307 = vmatprep.mubr.bf16.mxu0 0
      %1308 = vmatmul.mubr.bf16.gmra.mxu0 %v1205
      %v1309 = vpop.f32.mrf.mxu0
      %v1310 = vadd.f32 %v1018, %v1309
      %v1311 = vpop.f32.mrf.mxu0
      %v1312 = vpop.f32.mrf.mxu0
      %v1313 = vadd.f32 %v1021, %v1312
      %v1314 = vpop.f32.mrf.mxu0
      %1315 = vmatprep.mubr.bf16.mxu0 0
      %1316 = vmatmul.mubr.bf16.gmra.mxu0 %v1208
      %v1317 = vpop.f32.mrf.mxu0
      %v1318 = vadd.f32 %v1026, %v1317
      %v1319 = vpop.f32.mrf.mxu0
      %v1320 = vpop.f32.mrf.mxu0
      %v1321 = vadd.f32 %v1029, %v1320
      %v1322 = vpop.f32.mrf.mxu0
      %1323 = vmatprep.mubr.bf16.mxu0 0
      %1324 = vmatmul.mubr.bf16.gmra.mxu0 %v1211
      %v1325 = vpop.f32.mrf.mxu0
      %v1326 = vadd.f32 %v1034, %v1325
      %v1327 = vpop.f32.mrf.mxu0
      %v1328 = vpop.f32.mrf.mxu0
      %v1329 = vadd.f32 %v1037, %v1328
      %v1330 = vpop.f32.mrf.mxu0
      %1331 = vmatprep.mubr.bf16.mxu0 0
      %1332 = vmatmul.mubr.bf16.gmra.mxu0 %v1214
      %v1333 = vpop.f32.mrf.mxu0
      %v1334 = vadd.f32 %v1042, %v1333
      %v1335 = vpop.f32.mrf.mxu0
      %v1336 = vpop.f32.mrf.mxu0
      %v1337 = vadd.f32 %v1045, %v1336
      %v1338 = vpop.f32.mrf.mxu0
      %1339 = vmatprep.mubr.bf16.mxu0 0
      %1340 = vmatmul.mubr.bf16.gmra.mxu0 %v1217
      %v1341 = vpop.f32.mrf.mxu0
      %v1342 = vadd.f32 %v1050, %v1341
      %v1343 = vpop.f32.mrf.mxu0
      %v1344 = vpop.f32.mrf.mxu0
      %v1345 = vadd.f32 %v1053, %v1344
      %v1346 = vpop.f32.mrf.mxu0
      %1347 = vmatprep.mubr.bf16.mxu0 0
      %1348 = vmatmul.mubr.bf16.gmra.mxu0 %v1220
      %v1349 = vpop.f32.mrf.mxu0
      %v1350 = vadd.f32 %v1058, %v1349
      %v1351 = vpop.f32.mrf.mxu0
      %v1352 = vpop.f32.mrf.mxu0
      %v1353 = vadd.f32 %v1061, %v1352
      %v1354 = vpop.f32.mrf.mxu0
      %1355 = vmatprep.mubr.bf16.mxu0 0
      %1356 = vmatmul.mubr.bf16.gmra.mxu0 %v1223
      %v1357 = vpop.f32.mrf.mxu0
      %v1358 = vadd.f32 %v1066, %v1357
      %v1359 = vpop.f32.mrf.mxu0
      %v1360 = vpop.f32.mrf.mxu0
      %v1361 = vadd.f32 %v1069, %v1360
      %v1362 = vpop.f32.mrf.mxu0
      %1363 = vmatprep.mubr.bf16.mxu0 0
      %1364 = vmatmul.mubr.bf16.gmra.mxu0 %v1226
      %v1365 = vpop.f32.mrf.mxu0
      %v1366 = vadd.f32 %v1074, %v1365
      %v1367 = vpop.f32.mrf.mxu0
      %v1368 = vpop.f32.mrf.mxu0
      %v1369 = vadd.f32 %v1077, %v1368
      %v1370 = vpop.f32.mrf.mxu0
      %1371 = vmatprep.mubr.bf16.mxu0 0
      %1372 = vmatmul.mubr.bf16.gmra.mxu0 %v1229
      %v1373 = vpop.f32.mrf.mxu0
      %v1374 = vadd.f32 %v1082, %v1373
      %v1375 = vpop.f32.mrf.mxu0
      %v1376 = vpop.f32.mrf.mxu0
      %v1377 = vadd.f32 %v1085, %v1376
      %v1378 = vpop.f32.mrf.mxu0
      %1379 = vmatprep.mubr.bf16.mxu0 0
      %1380 = vmatmul.mubr.bf16.gmra.mxu0 %v1232
      %v1381 = vpop.f32.mrf.mxu0
      %v1382 = vadd.f32 %v1090, %v1381
      %v1383 = vpop.f32.mrf.mxu0
      %v1384 = vpop.f32.mrf.mxu0
      %v1385 = vadd.f32 %v1093, %v1384
      %v1386 = vpop.f32.mrf.mxu0
      %1387 = vmatprep.mubr.bf16.mxu0 0
      %1388 = vmatmul.mubr.bf16.gmra.mxu0 %v1235
      %v1389 = vpop.f32.mrf.mxu0
      %v1390 = vadd.f32 %v1098, %v1389
      %v1391 = vpop.f32.mrf.mxu0
      %v1392 = vpop.f32.mrf.mxu0
      %v1393 = vadd.f32 %v1101, %v1392
      %v1394 = vpop.f32.mrf.mxu0
      %1395 = vmatprep.mubr.bf16.mxu0 0
      %1396 = vmatmul.mubr.bf16.gmra.mxu0 %v1238
      %v1397 = vpop.f32.mrf.mxu0
      %v1398 = vadd.f32 %v1106, %v1397
      %v1399 = vpop.f32.mrf.mxu0
      %v1400 = vpop.f32.mrf.mxu0
      %v1401 = vadd.f32 %v1109, %v1400
      %v1402 = vpop.f32.mrf.mxu0
      %1403 = vdwg.mxu0
      %vm1420 = vcmask 1042432
      %vm1421 = vcmask 1046532
      %vm1422 = vmor %vm1420, %vm1421
      %v1423 = vrot.slane %v406, 5
      %v1424 = vrot.slane %v1423, 4
      %v1425 = vrot.slane %v407, 5
      %v1426 = vsel %vm1422, %v1424, %v1425
      %v1427 = vrot.slane %v1425, 4
      %v1428 = vrot.slane %v408, 5
      %v1429 = vsel %vm1422, %v1427, %v1428
      %v1430 = vrot.slane %v409, 5
      %v1431 = vrot.slane %v1430, 4
      %v1432 = vrot.slane %v410, 5
      %v1433 = vsel %vm1422, %v1431, %v1432
      %v1434 = vrot.slane %v1432, 4
      %v1435 = vrot.slane %v411, 5
      %v1436 = vsel %vm1422, %v1434, %v1435
      %v1437 = vrot.slane %v412, 5
      %v1438 = vrot.slane %v1437, 4
      %v1439 = vrot.slane %v413, 5
      %v1440 = vsel %vm1422, %v1438, %v1439
      %v1441 = vrot.slane %v1439, 4
      %v1442 = vrot.slane %v414, 5
      %v1443 = vsel %vm1422, %v1441, %v1442
      %v1444 = vrot.slane %v415, 5
      %v1445 = vrot.slane %v1444, 4
      %v1446 = vrot.slane %v416, 5
      %v1447 = vsel %vm1422, %v1445, %v1446
      %v1448 = vrot.slane %v1446, 4
      %v1449 = vrot.slane %v417, 5
      %v1450 = vsel %vm1422, %v1448, %v1449
      %v1451 = vrot.slane %v418, 5
      %v1452 = vrot.slane %v1451, 4
      %v1453 = vrot.slane %v419, 5
      %v1454 = vsel %vm1422, %v1452, %v1453
      %v1455 = vrot.slane %v1453, 4
      %v1456 = vrot.slane %v420, 5
      %v1457 = vsel %vm1422, %v1455, %v1456
      %v1458 = vrot.slane %v421, 5
      %v1459 = vrot.slane %v1458, 4
      %v1460 = vrot.slane %v422, 5
      %v1461 = vsel %vm1422, %v1459, %v1460
      %v1462 = vrot.slane %v1460, 4
      %v1463 = vrot.slane %v423, 5
      %v1464 = vsel %vm1422, %v1462, %v1463
      %v1465 = vrot.slane %v424, 5
      %v1466 = vrot.slane %v1465, 4
      %v1467 = vrot.slane %v425, 5
      %v1468 = vsel %vm1422, %v1466, %v1467
      %v1469 = vrot.slane %v1467, 4
      %v1470 = vrot.slane %v426, 5
      %v1471 = vsel %vm1422, %v1469, %v1470
      %v1472 = vrot.slane %v427, 5
      %v1473 = vrot.slane %v1472, 4
      %v1474 = vrot.slane %v428, 5
      %v1475 = vsel %vm1422, %v1473, %v1474
      %v1476 = vrot.slane %v1474, 4
      %v1477 = vrot.slane %v429, 5
      %v1478 = vsel %vm1422, %v1476, %v1477
      %v1479 = vrot.slane %v430, 5
      %v1480 = vrot.slane %v1479, 4
      %v1481 = vrot.slane %v431, 5
      %v1482 = vsel %vm1422, %v1480, %v1481
      %v1483 = vrot.slane %v1481, 4
      %v1484 = vrot.slane %v432, 5
      %v1485 = vsel %vm1422, %v1483, %v1484
      %v1486 = vrot.slane %v433, 5
      %v1487 = vrot.slane %v1486, 4
      %v1488 = vrot.slane %v434, 5
      %v1489 = vsel %vm1422, %v1487, %v1488
      %v1490 = vrot.slane %v1488, 4
      %v1491 = vrot.slane %v435, 5
      %v1492 = vsel %vm1422, %v1490, %v1491
      %v1493 = vrot.slane %v436, 5
      %v1494 = vrot.slane %v1493, 4
      %v1495 = vrot.slane %v437, 5
      %v1496 = vsel %vm1422, %v1494, %v1495
      %v1497 = vrot.slane %v1495, 4
      %v1498 = vrot.slane %v438, 5
      %v1499 = vsel %vm1422, %v1497, %v1498
      %v1500 = vrot.slane %v439, 5
      %v1501 = vrot.slane %v1500, 4
      %v1502 = vrot.slane %v440, 5
      %v1503 = vsel %vm1422, %v1501, %v1502
      %v1504 = vrot.slane %v1502, 4
      %v1505 = vrot.slane %v441, 5
      %v1506 = vsel %vm1422, %v1504, %v1505
      %v1507 = vrot.slane %v442, 5
      %v1508 = vrot.slane %v1507, 4
      %v1509 = vrot.slane %v443, 5
      %v1510 = vsel %vm1422, %v1508, %v1509
      %v1511 = vrot.slane %v1509, 4
      %v1512 = vrot.slane %v444, 5
      %v1513 = vsel %vm1422, %v1511, %v1512
      %v1514 = vrot.slane %v445, 5
      %v1515 = vrot.slane %v1514, 4
      %v1516 = vrot.slane %v446, 5
      %v1517 = vsel %vm1422, %v1515, %v1516
      %v1518 = vrot.slane %v1516, 4
      %v1519 = vrot.slane %v447, 5
      %v1520 = vsel %vm1422, %v1518, %v1519
      %v1521 = vrot.slane %v448, 5
      %v1522 = vrot.slane %v1521, 4
      %v1523 = vrot.slane %v449, 5
      %v1524 = vsel %vm1422, %v1522, %v1523
      %v1525 = vrot.slane %v1523, 4
      %v1526 = vrot.slane %v450, 5
      %v1527 = vsel %vm1422, %v1525, %v1526
      %v1528 = vrot.slane %v451, 5
      %v1529 = vrot.slane %v1528, 4
      %v1530 = vrot.slane %v452, 5
      %v1531 = vsel %vm1422, %v1529, %v1530
      %v1532 = vrot.slane %v1530, 4
      %v1533 = vrot.slane %v453, 5
      %v1534 = vsel %vm1422, %v1532, %v1533
      %s1535 = scalar_lea.vmem %s3, 4
      %v1536 = vld [vmem:[%s1535] sm:$0x3]
      %v1537 = vunpack.c.l.b16 %v1426
      %v1538 = vunpack.c.l.b16 %v1429
      %v1539 = vunpack.c.l.b16 %v1433
      %v1540 = vunpack.c.l.b16 %v1436
      %v1541 = vunpack.c.l.b16 %v1440
      %v1542 = vunpack.c.l.b16 %v1443
      %v1543 = vunpack.c.l.b16 %v1447
      %v1544 = vunpack.c.l.b16 %v1450
      %v1545 = vunpack.c.l.b16 %v1454
      %v1546 = vunpack.c.l.b16 %v1457
      %v1547 = vunpack.c.l.b16 %v1461
      %v1548 = vunpack.c.l.b16 %v1464
      %v1549 = vunpack.c.l.b16 %v1468
      %v1550 = vunpack.c.l.b16 %v1471
      %v1551 = vunpack.c.l.b16 %v1475
      %v1552 = vunpack.c.l.b16 %v1478
      %v1553 = vunpack.c.l.b16 %v1482
      %v1554 = vunpack.c.l.b16 %v1485
      %v1555 = vunpack.c.l.b16 %v1489
      %v1556 = vunpack.c.l.b16 %v1492
      %v1557 = vunpack.c.l.b16 %v1496
      %v1558 = vunpack.c.l.b16 %v1499
      %v1559 = vunpack.c.l.b16 %v1503
      %v1560 = vunpack.c.l.b16 %v1506
      %v1561 = vunpack.c.l.b16 %v1510
      %v1562 = vunpack.c.l.b16 %v1513
      %v1563 = vunpack.c.l.b16 %v1517
      %v1564 = vunpack.c.l.b16 %v1520
      %v1565 = vunpack.c.l.b16 %v1524
      %v1566 = vunpack.c.l.b16 %v1527
      %v1567 = vunpack.c.l.b16 %v1531
      %v1568 = vunpack.c.l.b16 %v1534
      %v1569 = vpack.c.b16 %v1538, %v1537
      %v1570 = vpack.c.b16 %v1540, %v1539
      %v1571 = vpack.c.b16 %v1542, %v1541
      %v1572 = vpack.c.b16 %v1544, %v1543
      %v1573 = vpack.c.b16 %v1546, %v1545
      %v1574 = vpack.c.b16 %v1548, %v1547
      %v1575 = vpack.c.b16 %v1550, %v1549
      %v1576 = vpack.c.b16 %v1552, %v1551
      %v1577 = vpack.c.b16 %v1554, %v1553
      %v1578 = vpack.c.b16 %v1556, %v1555
      %v1579 = vpack.c.b16 %v1558, %v1557
      %v1580 = vpack.c.b16 %v1560, %v1559
      %v1581 = vpack.c.b16 %v1562, %v1561
      %v1582 = vpack.c.b16 %v1564, %v1563
      %v1583 = vpack.c.b16 %v1566, %v1565
      %v1584 = vpack.c.b16 %v1568, %v1567
      %v1586 = vsel %vm898, %v1569, 0
      %v1589 = vsel %vm898, %v1570, 0
      %v1592 = vsel %vm898, %v1571, 0
      %v1595 = vsel %vm898, %v1572, 0
      %v1598 = vsel %vm898, %v1573, 0
      %v1601 = vsel %vm898, %v1574, 0
      %v1604 = vsel %vm898, %v1575, 0
      %v1607 = vsel %vm898, %v1576, 0
      %v1610 = vsel %vm898, %v1577, 0
      %v1613 = vsel %vm898, %v1578, 0
      %v1616 = vsel %vm898, %v1579, 0
      %v1619 = vsel %vm898, %v1580, 0
      %v1622 = vsel %vm898, %v1581, 0
      %v1625 = vsel %vm898, %v1582, 0
      %v1628 = vsel %vm898, %v1583, 0
      %v1631 = vsel %vm898, %v1584, 0
      %v1634 = vsel %vm947, %v1536, 0
      %1636 = vmatprep.subr.bf16.mxu0 0
      %1637 = vmatpush1.bf16.msra.mxu0 0
      %1638 = vmatprep.subr.bf16.mxu0 0
      %1639 = vmatpush1.bf16.msra.mxu0 0
      %1640 = vmatprep.subr.bf16.mxu0 0
      %1641 = vmatpush1.bf16.msra.mxu0 0
      %1642 = vmatprep.subr.bf16.mxu0 0
      %1643 = vmatpush1.bf16.msra.mxu0 0
      %1644 = vmatprep.subr.bf16.mxu0 0
      %1645 = vmatpush1.bf16.msra.mxu0 0
      %1646 = vmatprep.subr.bf16.mxu0 0
      %1647 = vmatpush1.bf16.msra.mxu0 0
      %1648 = vmatprep.subr.bf16.mxu0 0
      %1649 = vmatpush1.bf16.msra.mxu0 0
      %1650 = vmatprep.subr.bf16.mxu0 0
      %1651 = vmatpush1.bf16.msra.mxu0 %v1634
      %1652 = vmatprep.subr.bf16.mxu0 0
      %1653 = vmatpush2.bf16.msra.mxu0 0
      %1654 = vmatprep.subr.bf16.mxu0 0
      %1655 = vmatpush2.bf16.msra.mxu0 0
      %1656 = vmatprep.subr.bf16.mxu0 0
      %1657 = vmatpush2.bf16.msra.mxu0 0
      %1658 = vmatprep.subr.bf16.mxu0 0
      %1659 = vmatpush2.bf16.msra.mxu0 0
      %1660 = vmatprep.subr.bf16.mxu0 0
      %1661 = vmatpush2.bf16.msra.mxu0 0
      %1662 = vmatprep.subr.bf16.mxu0 0
      %1663 = vmatpush2.bf16.msra.mxu0 0
      %1664 = vmatprep.subr.bf16.mxu0 0
      %1665 = vmatpush2.bf16.msra.mxu0 0
      %1666 = vmatprep.subr.bf16.mxu0 0
      %1667 = vmatpush2.bf16.msra.mxu0 0
      %1668 = vmatprep.mubr.bf16.mxu0 0
      %1669 = vmatmul.mubr.bf16.gmra.mxu0 %v1586
      %v1670 = vpop.f32.mrf.mxu0
      %v1671 = vadd.f32 0.0, %v1670
      %v1672 = vpop.f32.mrf.mxu0
      %v1673 = vpop.f32.mrf.mxu0
      %v1674 = vadd.f32 0.0, %v1673
      %v1675 = vpop.f32.mrf.mxu0
      %1676 = vmatprep.mubr.bf16.mxu0 0
      %1677 = vmatmul.mubr.bf16.gmra.mxu0 %v1589
      %v1678 = vpop.f32.mrf.mxu0
      %v1679 = vadd.f32 0.0, %v1678
      %v1680 = vpop.f32.mrf.mxu0
      %v1681 = vpop.f32.mrf.mxu0
      %v1682 = vadd.f32 0.0, %v1681
      %v1683 = vpop.f32.mrf.mxu0
      %1684 = vmatprep.mubr.bf16.mxu0 0
      %1685 = vmatmul.mubr.bf16.gmra.mxu0 %v1592
      %v1686 = vpop.f32.mrf.mxu0
      %v1687 = vadd.f32 0.0, %v1686
      %v1688 = vpop.f32.mrf.mxu0
      %v1689 = vpop.f32.mrf.mxu0
      %v1690 = vadd.f32 0.0, %v1689
      %v1691 = vpop.f32.mrf.mxu0
      %1692 = vmatprep.mubr.bf16.mxu0 0
      %1693 = vmatmul.mubr.bf16.gmra.mxu0 %v1595
      %v1694 = vpop.f32.mrf.mxu0
      %v1695 = vadd.f32 0.0, %v1694
      %v1696 = vpop.f32.mrf.mxu0
      %v1697 = vpop.f32.mrf.mxu0
      %v1698 = vadd.f32 0.0, %v1697
      %v1699 = vpop.f32.mrf.mxu0
      %1700 = vmatprep.mubr.bf16.mxu0 0
      %1701 = vmatmul.mubr.bf16.gmra.mxu0 %v1598
      %v1702 = vpop.f32.mrf.mxu0
      %v1703 = vadd.f32 0.0, %v1702
      %v1704 = vpop.f32.mrf.mxu0
      %v1705 = vpop.f32.mrf.mxu0
      %v1706 = vadd.f32 0.0, %v1705
      %v1707 = vpop.f32.mrf.mxu0
      %1708 = vmatprep.mubr.bf16.mxu0 0
      %1709 = vmatmul.mubr.bf16.gmra.mxu0 %v1601
      %v1710 = vpop.f32.mrf.mxu0
      %v1711 = vadd.f32 0.0, %v1710
      %v1712 = vpop.f32.mrf.mxu0
      %v1713 = vpop.f32.mrf.mxu0
      %v1714 = vadd.f32 0.0, %v1713
      %v1715 = vpop.f32.mrf.mxu0
      %1716 = vmatprep.mubr.bf16.mxu0 0
      %1717 = vmatmul.mubr.bf16.gmra.mxu0 %v1604
      %v1718 = vpop.f32.mrf.mxu0
      %v1719 = vadd.f32 0.0, %v1718
      %v1720 = vpop.f32.mrf.mxu0
      %v1721 = vpop.f32.mrf.mxu0
      %v1722 = vadd.f32 0.0, %v1721
      %v1723 = vpop.f32.mrf.mxu0
      %1724 = vmatprep.mubr.bf16.mxu0 0
      %1725 = vmatmul.mubr.bf16.gmra.mxu0 %v1607
      %v1726 = vpop.f32.mrf.mxu0
      %v1727 = vadd.f32 0.0, %v1726
      %v1728 = vpop.f32.mrf.mxu0
      %v1729 = vpop.f32.mrf.mxu0
      %v1730 = vadd.f32 0.0, %v1729
      %v1731 = vpop.f32.mrf.mxu0
      %1732 = vmatprep.mubr.bf16.mxu0 0
      %1733 = vmatmul.mubr.bf16.gmra.mxu0 %v1610
      %v1734 = vpop.f32.mrf.mxu0
      %v1735 = vadd.f32 0.0, %v1734
      %v1736 = vpop.f32.mrf.mxu0
      %v1737 = vpop.f32.mrf.mxu0
      %v1738 = vadd.f32 0.0, %v1737
      %v1739 = vpop.f32.mrf.mxu0
      %1740 = vmatprep.mubr.bf16.mxu0 0
      %1741 = vmatmul.mubr.bf16.gmra.mxu0 %v1613
      %v1742 = vpop.f32.mrf.mxu0
      %v1743 = vadd.f32 0.0, %v1742
      %v1744 = vpop.f32.mrf.mxu0
      %v1745 = vpop.f32.mrf.mxu0
      %v1746 = vadd.f32 0.0, %v1745
      %v1747 = vpop.f32.mrf.mxu0
      %1748 = vmatprep.mubr.bf16.mxu0 0
      %1749 = vmatmul.mubr.bf16.gmra.mxu0 %v1616
      %v1750 = vpop.f32.mrf.mxu0
      %v1751 = vadd.f32 0.0, %v1750
      %v1752 = vpop.f32.mrf.mxu0
      %v1753 = vpop.f32.mrf.mxu0
      %v1754 = vadd.f32 0.0, %v1753
      %v1755 = vpop.f32.mrf.mxu0
      %1756 = vmatprep.mubr.bf16.mxu0 0
      %1757 = vmatmul.mubr.bf16.gmra.mxu0 %v1619
      %v1758 = vpop.f32.mrf.mxu0
      %v1759 = vadd.f32 0.0, %v1758
      %v1760 = vpop.f32.mrf.mxu0
      %v1761 = vpop.f32.mrf.mxu0
      %v1762 = vadd.f32 0.0, %v1761
      %v1763 = vpop.f32.mrf.mxu0
      %1764 = vmatprep.mubr.bf16.mxu0 0
      %1765 = vmatmul.mubr.bf16.gmra.mxu0 %v1622
      %v1766 = vpop.f32.mrf.mxu0
      %v1767 = vadd.f32 0.0, %v1766
      %v1768 = vpop.f32.mrf.mxu0
      %v1769 = vpop.f32.mrf.mxu0
      %v1770 = vadd.f32 0.0, %v1769
      %v1771 = vpop.f32.mrf.mxu0
      %1772 = vmatprep.mubr.bf16.mxu0 0
      %1773 = vmatmul.mubr.bf16.gmra.mxu0 %v1625
      %v1774 = vpop.f32.mrf.mxu0
      %v1775 = vadd.f32 0.0, %v1774
      %v1776 = vpop.f32.mrf.mxu0
      %v1777 = vpop.f32.mrf.mxu0
      %v1778 = vadd.f32 0.0, %v1777
      %v1779 = vpop.f32.mrf.mxu0
      %1780 = vmatprep.mubr.bf16.mxu0 0
      %1781 = vmatmul.mubr.bf16.gmra.mxu0 %v1628
      %v1782 = vpop.f32.mrf.mxu0
      %v1783 = vadd.f32 0.0, %v1782
      %v1784 = vpop.f32.mrf.mxu0
      %v1785 = vpop.f32.mrf.mxu0
      %v1786 = vadd.f32 0.0, %v1785
      %v1787 = vpop.f32.mrf.mxu0
      %1788 = vmatprep.mubr.bf16.mxu0 0
      %1789 = vmatmul.mubr.bf16.gmra.mxu0 %v1631
      %v1790 = vpop.f32.mrf.mxu0
      %v1791 = vadd.f32 0.0, %v1790
      %v1792 = vpop.f32.mrf.mxu0
      %v1793 = vpop.f32.mrf.mxu0
      %v1794 = vadd.f32 0.0, %v1793
      %v1795 = vpop.f32.mrf.mxu0
      %1796 = vdwg.mxu0
      %v1797 = vadd.f32 %v1278, %v1671
      %v1798 = vadd.f32 %v1281, %v1674
      %v1799 = vadd.f32 %v1286, %v1679
      %v1800 = vadd.f32 %v1289, %v1682
      %v1801 = vadd.f32 %v1294, %v1687
      %v1802 = vadd.f32 %v1297, %v1690
      %v1803 = vadd.f32 %v1302, %v1695
      %v1804 = vadd.f32 %v1305, %v1698
      %v1805 = vadd.f32 %v1310, %v1703
      %v1806 = vadd.f32 %v1313, %v1706
      %v1807 = vadd.f32 %v1318, %v1711
      %v1808 = vadd.f32 %v1321, %v1714
      %v1809 = vadd.f32 %v1326, %v1719
      %v1810 = vadd.f32 %v1329, %v1722
      %v1811 = vadd.f32 %v1334, %v1727
      %v1812 = vadd.f32 %v1337, %v1730
      %v1813 = vadd.f32 %v1342, %v1735
      %v1814 = vadd.f32 %v1345, %v1738
      %v1815 = vadd.f32 %v1350, %v1743
      %v1816 = vadd.f32 %v1353, %v1746
      %v1817 = vadd.f32 %v1358, %v1751
      %v1818 = vadd.f32 %v1361, %v1754
      %v1819 = vadd.f32 %v1366, %v1759
      %v1820 = vadd.f32 %v1369, %v1762
      %v1821 = vadd.f32 %v1374, %v1767
      %v1822 = vadd.f32 %v1377, %v1770
      %v1823 = vadd.f32 %v1382, %v1775
      %v1824 = vadd.f32 %v1385, %v1778
      %v1825 = vadd.f32 %v1390, %v1783
      %v1826 = vadd.f32 %v1393, %v1786
      %v1827 = vadd.f32 %v1398, %v1791
      %v1828 = vadd.f32 %v1401, %v1794
      %s1829 = scalar_lea.vmem %s3, 6
      %v1830 = vld [vmem:[%s1829] sm:$0x3]
      %v1833 = vunpack.c.l.b16 %v454
      %v1834 = vunpack.c.l.b16 %v455
      %v1835 = vpack.c.b16 %v1834, %v1833
      %v1837 = vsel %vm898, %v1835, 0
      %v1840 = vsel %vm947, %v1830, 0
      %1842 = vmatprep.subr.bf16.mxu0 0
      %1843 = vmatpush1.bf16.msra.mxu0 0
      %1844 = vmatprep.subr.bf16.mxu0 0
      %1845 = vmatpush1.bf16.msra.mxu0 0
      %1846 = vmatprep.subr.bf16.mxu0 0
      %1847 = vmatpush1.bf16.msra.mxu0 0
      %1848 = vmatprep.subr.bf16.mxu0 0
      %1849 = vmatpush1.bf16.msra.mxu0 0
      %1850 = vmatprep.subr.bf16.mxu0 0
      %1851 = vmatpush1.bf16.msra.mxu0 0
      %1852 = vmatprep.subr.bf16.mxu0 0
      %1853 = vmatpush1.bf16.msra.mxu0 0
      %1854 = vmatprep.subr.bf16.mxu0 0
      %1855 = vmatpush1.bf16.msra.mxu0 0
      %1856 = vmatprep.subr.bf16.mxu0 0
      %1857 = vmatpush1.bf16.msra.mxu0 %v1840
      %1858 = vmatprep.subr.bf16.mxu0 0
      %1859 = vmatpush2.bf16.msra.mxu0 0
      %1860 = vmatprep.subr.bf16.mxu0 0
      %1861 = vmatpush2.bf16.msra.mxu0 0
      %1862 = vmatprep.subr.bf16.mxu0 0
      %1863 = vmatpush2.bf16.msra.mxu0 0
      %1864 = vmatprep.subr.bf16.mxu0 0
      %1865 = vmatpush2.bf16.msra.mxu0 0
      %1866 = vmatprep.subr.bf16.mxu0 0
      %1867 = vmatpush2.bf16.msra.mxu0 0
      %1868 = vmatprep.subr.bf16.mxu0 0
      %1869 = vmatpush2.bf16.msra.mxu0 0
      %1870 = vmatprep.subr.bf16.mxu0 0
      %1871 = vmatpush2.bf16.msra.mxu0 0
      %1872 = vmatprep.subr.bf16.mxu0 0
      %1873 = vmatpush2.bf16.msra.mxu0 0
      %1874 = vmatprep.mubr.bf16.mxu0 0
      %1875 = vmatmul.mubr.bf16.gmra.mxu0 %v1196
      %v1876 = vpop.f32.mrf.mxu0
      %v1877 = vadd.f32 0.0, %v1876
      %v1878 = vpop.f32.mrf.mxu0
      %v1879 = vpop.f32.mrf.mxu0
      %v1880 = vadd.f32 0.0, %v1879
      %v1881 = vpop.f32.mrf.mxu0
      %1882 = vmatprep.mubr.bf16.mxu0 0
      %1883 = vmatmul.mubr.bf16.gmra.mxu0 %v1199
      %v1884 = vpop.f32.mrf.mxu0
      %v1885 = vadd.f32 0.0, %v1884
      %v1886 = vpop.f32.mrf.mxu0
      %v1887 = vpop.f32.mrf.mxu0
      %v1888 = vadd.f32 0.0, %v1887
      %v1889 = vpop.f32.mrf.mxu0
      %1890 = vmatprep.mubr.bf16.mxu0 0
      %1891 = vmatmul.mubr.bf16.gmra.mxu0 %v1202
      %v1892 = vpop.f32.mrf.mxu0
      %v1893 = vadd.f32 0.0, %v1892
      %v1894 = vpop.f32.mrf.mxu0
      %v1895 = vpop.f32.mrf.mxu0
      %v1896 = vadd.f32 0.0, %v1895
      %v1897 = vpop.f32.mrf.mxu0
      %1898 = vmatprep.mubr.bf16.mxu0 0
      %1899 = vmatmul.mubr.bf16.gmra.mxu0 %v1205
      %v1900 = vpop.f32.mrf.mxu0
      %v1901 = vadd.f32 0.0, %v1900
      %v1902 = vpop.f32.mrf.mxu0
      %v1903 = vpop.f32.mrf.mxu0
      %v1904 = vadd.f32 0.0, %v1903
      %v1905 = vpop.f32.mrf.mxu0
      %1906 = vmatprep.mubr.bf16.mxu0 0
      %1907 = vmatmul.mubr.bf16.gmra.mxu0 %v1208
      %v1908 = vpop.f32.mrf.mxu0
      %v1909 = vadd.f32 0.0, %v1908
      %v1910 = vpop.f32.mrf.mxu0
      %v1911 = vpop.f32.mrf.mxu0
      %v1912 = vadd.f32 0.0, %v1911
      %v1913 = vpop.f32.mrf.mxu0
      %1914 = vmatprep.mubr.bf16.mxu0 0
      %1915 = vmatmul.mubr.bf16.gmra.mxu0 %v1211
      %v1916 = vpop.f32.mrf.mxu0
      %v1917 = vadd.f32 0.0, %v1916
      %v1918 = vpop.f32.mrf.mxu0
      %v1919 = vpop.f32.mrf.mxu0
      %v1920 = vadd.f32 0.0, %v1919
      %v1921 = vpop.f32.mrf.mxu0
      %1922 = vmatprep.mubr.bf16.mxu0 0
      %1923 = vmatmul.mubr.bf16.gmra.mxu0 %v1214
      %v1924 = vpop.f32.mrf.mxu0
      %v1925 = vadd.f32 0.0, %v1924
      %v1926 = vpop.f32.mrf.mxu0
      %v1927 = vpop.f32.mrf.mxu0
      %v1928 = vadd.f32 0.0, %v1927
      %v1929 = vpop.f32.mrf.mxu0
      %1930 = vmatprep.mubr.bf16.mxu0 0
      %1931 = vmatmul.mubr.bf16.gmra.mxu0 %v1217
      %v1932 = vpop.f32.mrf.mxu0
      %v1933 = vadd.f32 0.0, %v1932
      %v1934 = vpop.f32.mrf.mxu0
      %v1935 = vpop.f32.mrf.mxu0
      %v1936 = vadd.f32 0.0, %v1935
      %v1937 = vpop.f32.mrf.mxu0
      %1938 = vmatprep.mubr.bf16.mxu0 0
      %1939 = vmatmul.mubr.bf16.gmra.mxu0 %v1220
      %v1940 = vpop.f32.mrf.mxu0
      %v1941 = vadd.f32 0.0, %v1940
      %v1942 = vpop.f32.mrf.mxu0
      %v1943 = vpop.f32.mrf.mxu0
      %v1944 = vadd.f32 0.0, %v1943
      %v1945 = vpop.f32.mrf.mxu0
      %1946 = vmatprep.mubr.bf16.mxu0 0
      %1947 = vmatmul.mubr.bf16.gmra.mxu0 %v1223
      %v1948 = vpop.f32.mrf.mxu0
      %v1949 = vadd.f32 0.0, %v1948
      %v1950 = vpop.f32.mrf.mxu0
      %v1951 = vpop.f32.mrf.mxu0
      %v1952 = vadd.f32 0.0, %v1951
      %v1953 = vpop.f32.mrf.mxu0
      %1954 = vmatprep.mubr.bf16.mxu0 0
      %1955 = vmatmul.mubr.bf16.gmra.mxu0 %v1226
      %v1956 = vpop.f32.mrf.mxu0
      %v1957 = vadd.f32 0.0, %v1956
      %v1958 = vpop.f32.mrf.mxu0
      %v1959 = vpop.f32.mrf.mxu0
      %v1960 = vadd.f32 0.0, %v1959
      %v1961 = vpop.f32.mrf.mxu0
      %1962 = vmatprep.mubr.bf16.mxu0 0
      %1963 = vmatmul.mubr.bf16.gmra.mxu0 %v1229
      %v1964 = vpop.f32.mrf.mxu0
      %v1965 = vadd.f32 0.0, %v1964
      %v1966 = vpop.f32.mrf.mxu0
      %v1967 = vpop.f32.mrf.mxu0
      %v1968 = vadd.f32 0.0, %v1967
      %v1969 = vpop.f32.mrf.mxu0
      %1970 = vmatprep.mubr.bf16.mxu0 0
      %1971 = vmatmul.mubr.bf16.gmra.mxu0 %v1232
      %v1972 = vpop.f32.mrf.mxu0
      %v1973 = vadd.f32 0.0, %v1972
      %v1974 = vpop.f32.mrf.mxu0
      %v1975 = vpop.f32.mrf.mxu0
      %v1976 = vadd.f32 0.0, %v1975
      %v1977 = vpop.f32.mrf.mxu0
      %1978 = vmatprep.mubr.bf16.mxu0 0
      %1979 = vmatmul.mubr.bf16.gmra.mxu0 %v1235
      %v1980 = vpop.f32.mrf.mxu0
      %v1981 = vadd.f32 0.0, %v1980
      %v1982 = vpop.f32.mrf.mxu0
      %v1983 = vpop.f32.mrf.mxu0
      %v1984 = vadd.f32 0.0, %v1983
      %v1985 = vpop.f32.mrf.mxu0
      %1986 = vmatprep.mubr.bf16.mxu0 0
      %1987 = vmatmul.mubr.bf16.gmra.mxu0 %v1238
      %v1988 = vpop.f32.mrf.mxu0
      %v1989 = vadd.f32 0.0, %v1988
      %v1990 = vpop.f32.mrf.mxu0
      %v1991 = vpop.f32.mrf.mxu0
      %v1992 = vadd.f32 0.0, %v1991
      %v1993 = vpop.f32.mrf.mxu0
      %1994 = vmatprep.mubr.bf16.mxu0 0
      %1995 = vmatmul.mubr.bf16.gmra.mxu0 %v1837
      %v1996 = vpop.f32.mrf.mxu0
      %v1997 = vadd.f32 0.0, %v1996
      %v1998 = vpop.f32.mrf.mxu0
      %v1999 = vpop.f32.mrf.mxu0
      %v2000 = vadd.f32 0.0, %v1999
      %v2001 = vpop.f32.mrf.mxu0
      %2002 = vdwg.mxu0
      %v2003 = vadd.f32 %v1797, %v1877
      %v2004 = vadd.f32 %v1798, %v1880
      %v2005 = vadd.f32 %v1799, %v1885
      %v2006 = vadd.f32 %v1800, %v1888
      %v2007 = vadd.f32 %v1801, %v1893
      %v2008 = vadd.f32 %v1802, %v1896
      %v2009 = vadd.f32 %v1803, %v1901
      %v2010 = vadd.f32 %v1804, %v1904
      %v2011 = vadd.f32 %v1805, %v1909
      %v2012 = vadd.f32 %v1806, %v1912
      %v2013 = vadd.f32 %v1807, %v1917
      %v2014 = vadd.f32 %v1808, %v1920
      %v2015 = vadd.f32 %v1809, %v1925
      %v2016 = vadd.f32 %v1810, %v1928
      %v2017 = vadd.f32 %v1811, %v1933
      %v2018 = vadd.f32 %v1812, %v1936
      %v2019 = vadd.f32 %v1813, %v1941
      %v2020 = vadd.f32 %v1814, %v1944
      %v2021 = vadd.f32 %v1815, %v1949
      %v2022 = vadd.f32 %v1816, %v1952
      %v2023 = vadd.f32 %v1817, %v1957
      %v2024 = vadd.f32 %v1818, %v1960
      %v2025 = vadd.f32 %v1819, %v1965
      %v2026 = vadd.f32 %v1820, %v1968
      %v2027 = vadd.f32 %v1821, %v1973
      %v2028 = vadd.f32 %v1822, %v1976
      %v2029 = vadd.f32 %v1823, %v1981
      %v2030 = vadd.f32 %v1824, %v1984
      %v2031 = vadd.f32 %v1825, %v1989
      %v2032 = vadd.f32 %v1826, %v1992
      %v2033 = vadd.f32 %v1827, %v1997
      %v2034 = vadd.f32 %v1828, %v2000
      %v2036 = vshrl.u32 %v454, 16
      %v2038 = vrot.slane %v2036, 4
      %v2039 = vshll.u32 %v454, 16
      %v2041 = vrot.slane %v2039, 5
      %v2042 = vor.u32 %v2038, %v2041
      %v2043 = vrot.slane %v2042, 4
      %v2045 = vshll.u32 %v455, 16
      %v2047 = vrot.slane %v2045, 5
      %v2048 = vsel %vm463, %v2043, %v2047
      %v2049 = vshrl.u32 %v455, 16
      %v2051 = vrot.slane %v2049, 4
      %v2052 = vor.u32 %v2051, %v2047
      %v2053 = vrot.slane %v2052, 4
      %v2055 = vshll.u32 %v456, 16
      %v2057 = vrot.slane %v2055, 5
      %v2058 = vsel %vm463, %v2053, %v2057
      %s2059 = scalar_lea.vmem %s3, 8
      %v2060 = vld [vmem:[%s2059] sm:$0x3]
      %v2061 = vunpack.c.l.b16 %v2048
      %v2062 = vunpack.c.l.b16 %v2058
      %v2063 = vpack.c.b16 %v2062, %v2061
      %v2065 = vsel %vm898, %v2063, 0
      %v2068 = vsel %vm947, %v2060, 0
      %2070 = vmatprep.subr.bf16.mxu0 0
      %2071 = vmatpush1.bf16.msra.mxu0 0
      %2072 = vmatprep.subr.bf16.mxu0 0
      %2073 = vmatpush1.bf16.msra.mxu0 0
      %2074 = vmatprep.subr.bf16.mxu0 0
      %2075 = vmatpush1.bf16.msra.mxu0 0
      %2076 = vmatprep.subr.bf16.mxu0 0
      %2077 = vmatpush1.bf16.msra.mxu0 0
      %2078 = vmatprep.subr.bf16.mxu0 0
      %2079 = vmatpush1.bf16.msra.mxu0 0
      %2080 = vmatprep.subr.bf16.mxu0 0
      %2081 = vmatpush1.bf16.msra.mxu0 0
      %2082 = vmatprep.subr.bf16.mxu0 0
      %2083 = vmatpush1.bf16.msra.mxu0 0
      %2084 = vmatprep.subr.bf16.mxu0 0
      %2085 = vmatpush1.bf16.msra.mxu0 %v2068
      %2086 = vmatprep.subr.bf16.mxu0 0
      %2087 = vmatpush2.bf16.msra.mxu0 0
      %2088 = vmatprep.subr.bf16.mxu0 0
      %2089 = vmatpush2.bf16.msra.mxu0 0
      %2090 = vmatprep.subr.bf16.mxu0 0
      %2091 = vmatpush2.bf16.msra.mxu0 0
      %2092 = vmatprep.subr.bf16.mxu0 0
      %2093 = vmatpush2.bf16.msra.mxu0 0
      %2094 = vmatprep.subr.bf16.mxu0 0
      %2095 = vmatpush2.bf16.msra.mxu0 0
      %2096 = vmatprep.subr.bf16.mxu0 0
      %2097 = vmatpush2.bf16.msra.mxu0 0
      %2098 = vmatprep.subr.bf16.mxu0 0
      %2099 = vmatpush2.bf16.msra.mxu0 0
      %2100 = vmatprep.subr.bf16.mxu0 0
      %2101 = vmatpush2.bf16.msra.mxu0 0
      %2102 = vmatprep.mubr.bf16.mxu0 0
      %2103 = vmatmul.mubr.bf16.gmra.mxu0 %v903
      %v2104 = vpop.f32.mrf.mxu0
      %v2105 = vadd.f32 0.0, %v2104
      %v2106 = vpop.f32.mrf.mxu0
      %v2107 = vpop.f32.mrf.mxu0
      %v2108 = vadd.f32 0.0, %v2107
      %v2109 = vpop.f32.mrf.mxu0
      %2110 = vmatprep.mubr.bf16.mxu0 0
      %2111 = vmatmul.mubr.bf16.gmra.mxu0 %v906
      %v2112 = vpop.f32.mrf.mxu0
      %v2113 = vadd.f32 0.0, %v2112
      %v2114 = vpop.f32.mrf.mxu0
      %v2115 = vpop.f32.mrf.mxu0
      %v2116 = vadd.f32 0.0, %v2115
      %v2117 = vpop.f32.mrf.mxu0
      %2118 = vmatprep.mubr.bf16.mxu0 0
      %2119 = vmatmul.mubr.bf16.gmra.mxu0 %v909
      %v2120 = vpop.f32.mrf.mxu0
      %v2121 = vadd.f32 0.0, %v2120
      %v2122 = vpop.f32.mrf.mxu0
      %v2123 = vpop.f32.mrf.mxu0
      %v2124 = vadd.f32 0.0, %v2123
      %v2125 = vpop.f32.mrf.mxu0
      %2126 = vmatprep.mubr.bf16.mxu0 0
      %2127 = vmatmul.mubr.bf16.gmra.mxu0 %v912
      %v2128 = vpop.f32.mrf.mxu0
      %v2129 = vadd.f32 0.0, %v2128
      %v2130 = vpop.f32.mrf.mxu0
      %v2131 = vpop.f32.mrf.mxu0
      %v2132 = vadd.f32 0.0, %v2131
      %v2133 = vpop.f32.mrf.mxu0
      %2134 = vmatprep.mubr.bf16.mxu0 0
      %2135 = vmatmul.mubr.bf16.gmra.mxu0 %v915
      %v2136 = vpop.f32.mrf.mxu0
      %v2137 = vadd.f32 0.0, %v2136
      %v2138 = vpop.f32.mrf.mxu0
      %v2139 = vpop.f32.mrf.mxu0
      %v2140 = vadd.f32 0.0, %v2139
      %v2141 = vpop.f32.mrf.mxu0
      %2142 = vmatprep.mubr.bf16.mxu0 0
      %2143 = vmatmul.mubr.bf16.gmra.mxu0 %v918
      %v2144 = vpop.f32.mrf.mxu0
      %v2145 = vadd.f32 0.0, %v2144
      %v2146 = vpop.f32.mrf.mxu0
      %v2147 = vpop.f32.mrf.mxu0
      %v2148 = vadd.f32 0.0, %v2147
      %v2149 = vpop.f32.mrf.mxu0
      %2150 = vmatprep.mubr.bf16.mxu0 0
      %2151 = vmatmul.mubr.bf16.gmra.mxu0 %v921
      %v2152 = vpop.f32.mrf.mxu0
      %v2153 = vadd.f32 0.0, %v2152
      %v2154 = vpop.f32.mrf.mxu0
      %v2155 = vpop.f32.mrf.mxu0
      %v2156 = vadd.f32 0.0, %v2155
      %v2157 = vpop.f32.mrf.mxu0
      %2158 = vmatprep.mubr.bf16.mxu0 0
      %2159 = vmatmul.mubr.bf16.gmra.mxu0 %v924
      %v2160 = vpop.f32.mrf.mxu0
      %v2161 = vadd.f32 0.0, %v2160
      %v2162 = vpop.f32.mrf.mxu0
      %v2163 = vpop.f32.mrf.mxu0
      %v2164 = vadd.f32 0.0, %v2163
      %v2165 = vpop.f32.mrf.mxu0
      %2166 = vmatprep.mubr.bf16.mxu0 0
      %2167 = vmatmul.mubr.bf16.gmra.mxu0 %v927
      %v2168 = vpop.f32.mrf.mxu0
      %v2169 = vadd.f32 0.0, %v2168
      %v2170 = vpop.f32.mrf.mxu0
      %v2171 = vpop.f32.mrf.mxu0
      %v2172 = vadd.f32 0.0, %v2171
      %v2173 = vpop.f32.mrf.mxu0
      %2174 = vmatprep.mubr.bf16.mxu0 0
      %2175 = vmatmul.mubr.bf16.gmra.mxu0 %v930
      %v2176 = vpop.f32.mrf.mxu0
      %v2177 = vadd.f32 0.0, %v2176
      %v2178 = vpop.f32.mrf.mxu0
      %v2179 = vpop.f32.mrf.mxu0
      %v2180 = vadd.f32 0.0, %v2179
      %v2181 = vpop.f32.mrf.mxu0
      %2182 = vmatprep.mubr.bf16.mxu0 0
      %2183 = vmatmul.mubr.bf16.gmra.mxu0 %v933
      %v2184 = vpop.f32.mrf.mxu0
      %v2185 = vadd.f32 0.0, %v2184
      %v2186 = vpop.f32.mrf.mxu0
      %v2187 = vpop.f32.mrf.mxu0
      %v2188 = vadd.f32 0.0, %v2187
      %v2189 = vpop.f32.mrf.mxu0
      %2190 = vmatprep.mubr.bf16.mxu0 0
      %2191 = vmatmul.mubr.bf16.gmra.mxu0 %v936
      %v2192 = vpop.f32.mrf.mxu0
      %v2193 = vadd.f32 0.0, %v2192
      %v2194 = vpop.f32.mrf.mxu0
      %v2195 = vpop.f32.mrf.mxu0
      %v2196 = vadd.f32 0.0, %v2195
      %v2197 = vpop.f32.mrf.mxu0
      %2198 = vmatprep.mubr.bf16.mxu0 0
      %2199 = vmatmul.mubr.bf16.gmra.mxu0 %v939
      %v2200 = vpop.f32.mrf.mxu0
      %v2201 = vadd.f32 0.0, %v2200
      %v2202 = vpop.f32.mrf.mxu0
      %v2203 = vpop.f32.mrf.mxu0
      %v2204 = vadd.f32 0.0, %v2203
      %v2205 = vpop.f32.mrf.mxu0
      %2206 = vmatprep.mubr.bf16.mxu0 0
      %2207 = vmatmul.mubr.bf16.gmra.mxu0 %v942
      %v2208 = vpop.f32.mrf.mxu0
      %v2209 = vadd.f32 0.0, %v2208
      %v2210 = vpop.f32.mrf.mxu0
      %v2211 = vpop.f32.mrf.mxu0
      %v2212 = vadd.f32 0.0, %v2211
      %v2213 = vpop.f32.mrf.mxu0
      %2214 = vmatprep.mubr.bf16.mxu0 0
      %2215 = vmatmul.mubr.bf16.gmra.mxu0 %v945
      %v2216 = vpop.f32.mrf.mxu0
      %v2217 = vadd.f32 0.0, %v2216
      %v2218 = vpop.f32.mrf.mxu0
      %v2219 = vpop.f32.mrf.mxu0
      %v2220 = vadd.f32 0.0, %v2219
      %v2221 = vpop.f32.mrf.mxu0
      %2222 = vmatprep.mubr.bf16.mxu0 0
      %2223 = vmatmul.mubr.bf16.gmra.mxu0 %v2065
      %v2224 = vpop.f32.mrf.mxu0
      %v2225 = vadd.f32 0.0, %v2224
      %v2226 = vpop.f32.mrf.mxu0
      %v2227 = vpop.f32.mrf.mxu0
      %v2228 = vadd.f32 0.0, %v2227
      %v2229 = vpop.f32.mrf.mxu0
      %2230 = vdwg.mxu0
      %v2231 = vadd.f32 %v2003, %v2105
      %v2232 = vadd.f32 %v2004, %v2108
      %v2233 = vadd.f32 %v2005, %v2113
      %v2234 = vadd.f32 %v2006, %v2116
      %v2235 = vadd.f32 %v2007, %v2121
      %v2236 = vadd.f32 %v2008, %v2124
      %v2237 = vadd.f32 %v2009, %v2129
      %v2238 = vadd.f32 %v2010, %v2132
      %v2239 = vadd.f32 %v2011, %v2137
      %v2240 = vadd.f32 %v2012, %v2140
      %v2241 = vadd.f32 %v2013, %v2145
      %v2242 = vadd.f32 %v2014, %v2148
      %v2243 = vadd.f32 %v2015, %v2153
      %v2244 = vadd.f32 %v2016, %v2156
      %v2245 = vadd.f32 %v2017, %v2161
      %v2246 = vadd.f32 %v2018, %v2164
      %v2247 = vadd.f32 %v2019, %v2169
      %v2248 = vadd.f32 %v2020, %v2172
      %v2249 = vadd.f32 %v2021, %v2177
      %v2250 = vadd.f32 %v2022, %v2180
      %v2251 = vadd.f32 %v2023, %v2185
      %v2252 = vadd.f32 %v2024, %v2188
      %v2253 = vadd.f32 %v2025, %v2193
      %v2254 = vadd.f32 %v2026, %v2196
      %v2255 = vadd.f32 %v2027, %v2201
      %v2256 = vadd.f32 %v2028, %v2204
      %v2257 = vadd.f32 %v2029, %v2209
      %v2258 = vadd.f32 %v2030, %v2212
      %v2259 = vadd.f32 %v2031, %v2217
      %v2260 = vadd.f32 %v2032, %v2220
      %v2261 = vadd.f32 %v2033, %v2225
      %v2262 = vadd.f32 %v2034, %v2228
      %v2264 = vrot.slane %v454, 5
      %v2265 = vrot.slane %v2264, 4
      %v2266 = vrot.slane %v455, 5
      %v2267 = vsel %vm1422, %v2265, %v2266
      %v2268 = vrot.slane %v2266, 4
      %v2269 = vrot.slane %v456, 5
      %v2270 = vsel %vm1422, %v2268, %v2269
      %s2271 = scalar_lea.vmem %s3, 10
      %v2272 = vld [vmem:[%s2271] sm:$0x3]
      %v2273 = vunpack.c.l.b16 %v2267
      %v2274 = vunpack.c.l.b16 %v2270
      %v2275 = vpack.c.b16 %v2274, %v2273
      %v2277 = vsel %vm898, %v2275, 0
      %v2280 = vsel %vm947, %v2272, 0
      %2282 = vmatprep.subr.bf16.mxu0 0
      %2283 = vmatpush1.bf16.msra.mxu0 0
      %2284 = vmatprep.subr.bf16.mxu0 0
      %2285 = vmatpush1.bf16.msra.mxu0 0
      %2286 = vmatprep.subr.bf16.mxu0 0
      %2287 = vmatpush1.bf16.msra.mxu0 0
      %2288 = vmatprep.subr.bf16.mxu0 0
      %2289 = vmatpush1.bf16.msra.mxu0 0
      %2290 = vmatprep.subr.bf16.mxu0 0
      %2291 = vmatpush1.bf16.msra.mxu0 0
      %2292 = vmatprep.subr.bf16.mxu0 0
      %2293 = vmatpush1.bf16.msra.mxu0 0
      %2294 = vmatprep.subr.bf16.mxu0 0
      %2295 = vmatpush1.bf16.msra.mxu0 0
      %2296 = vmatprep.subr.bf16.mxu0 0
      %2297 = vmatpush1.bf16.msra.mxu0 %v2280
      %2298 = vmatprep.subr.bf16.mxu0 0
      %2299 = vmatpush2.bf16.msra.mxu0 0
      %2300 = vmatprep.subr.bf16.mxu0 0
      %2301 = vmatpush2.bf16.msra.mxu0 0
      %2302 = vmatprep.subr.bf16.mxu0 0
      %2303 = vmatpush2.bf16.msra.mxu0 0
      %2304 = vmatprep.subr.bf16.mxu0 0
      %2305 = vmatpush2.bf16.msra.mxu0 0
      %2306 = vmatprep.subr.bf16.mxu0 0
      %2307 = vmatpush2.bf16.msra.mxu0 0
      %2308 = vmatprep.subr.bf16.mxu0 0
      %2309 = vmatpush2.bf16.msra.mxu0 0
      %2310 = vmatprep.subr.bf16.mxu0 0
      %2311 = vmatpush2.bf16.msra.mxu0 0
      %2312 = vmatprep.subr.bf16.mxu0 0
      %2313 = vmatpush2.bf16.msra.mxu0 0
      %2314 = vmatprep.mubr.bf16.mxu0 0
      %2315 = vmatmul.mubr.bf16.gmra.mxu0 %v1589
      %v2316 = vpop.f32.mrf.mxu0
      %v2317 = vadd.f32 0.0, %v2316
      %v2318 = vpop.f32.mrf.mxu0
      %v2319 = vpop.f32.mrf.mxu0
      %v2320 = vadd.f32 0.0, %v2319
      %v2321 = vpop.f32.mrf.mxu0
      %2322 = vmatprep.mubr.bf16.mxu0 0
      %2323 = vmatmul.mubr.bf16.gmra.mxu0 %v1592
      %v2324 = vpop.f32.mrf.mxu0
      %v2325 = vadd.f32 0.0, %v2324
      %v2326 = vpop.f32.mrf.mxu0
      %v2327 = vpop.f32.mrf.mxu0
      %v2328 = vadd.f32 0.0, %v2327
      %v2329 = vpop.f32.mrf.mxu0
      %2330 = vmatprep.mubr.bf16.mxu0 0
      %2331 = vmatmul.mubr.bf16.gmra.mxu0 %v1595
      %v2332 = vpop.f32.mrf.mxu0
      %v2333 = vadd.f32 0.0, %v2332
      %v2334 = vpop.f32.mrf.mxu0
      %v2335 = vpop.f32.mrf.mxu0
      %v2336 = vadd.f32 0.0, %v2335
      %v2337 = vpop.f32.mrf.mxu0
      %2338 = vmatprep.mubr.bf16.mxu0 0
      %2339 = vmatmul.mubr.bf16.gmra.mxu0 %v1598
      %v2340 = vpop.f32.mrf.mxu0
      %v2341 = vadd.f32 0.0, %v2340
      %v2342 = vpop.f32.mrf.mxu0
      %v2343 = vpop.f32.mrf.mxu0
      %v2344 = vadd.f32 0.0, %v2343
      %v2345 = vpop.f32.mrf.mxu0
      %2346 = vmatprep.mubr.bf16.mxu0 0
      %2347 = vmatmul.mubr.bf16.gmra.mxu0 %v1601
      %v2348 = vpop.f32.mrf.mxu0
      %v2349 = vadd.f32 0.0, %v2348
      %v2350 = vpop.f32.mrf.mxu0
      %v2351 = vpop.f32.mrf.mxu0
      %v2352 = vadd.f32 0.0, %v2351
      %v2353 = vpop.f32.mrf.mxu0
      %2354 = vmatprep.mubr.bf16.mxu0 0
      %2355 = vmatmul.mubr.bf16.gmra.mxu0 %v1604
      %v2356 = vpop.f32.mrf.mxu0
      %v2357 = vadd.f32 0.0, %v2356
      %v2358 = vpop.f32.mrf.mxu0
      %v2359 = vpop.f32.mrf.mxu0
      %v2360 = vadd.f32 0.0, %v2359
      %v2361 = vpop.f32.mrf.mxu0
      %2362 = vmatprep.mubr.bf16.mxu0 0
      %2363 = vmatmul.mubr.bf16.gmra.mxu0 %v1607
      %v2364 = vpop.f32.mrf.mxu0
      %v2365 = vadd.f32 0.0, %v2364
      %v2366 = vpop.f32.mrf.mxu0
      %v2367 = vpop.f32.mrf.mxu0
      %v2368 = vadd.f32 0.0, %v2367
      %v2369 = vpop.f32.mrf.mxu0
      %2370 = vmatprep.mubr.bf16.mxu0 0
      %2371 = vmatmul.mubr.bf16.gmra.mxu0 %v1610
      %v2372 = vpop.f32.mrf.mxu0
      %v2373 = vadd.f32 0.0, %v2372
      %v2374 = vpop.f32.mrf.mxu0
      %v2375 = vpop.f32.mrf.mxu0
      %v2376 = vadd.f32 0.0, %v2375
      %v2377 = vpop.f32.mrf.mxu0
      %2378 = vmatprep.mubr.bf16.mxu0 0
      %2379 = vmatmul.mubr.bf16.gmra.mxu0 %v1613
      %v2380 = vpop.f32.mrf.mxu0
      %v2381 = vadd.f32 0.0, %v2380
      %v2382 = vpop.f32.mrf.mxu0
      %v2383 = vpop.f32.mrf.mxu0
      %v2384 = vadd.f32 0.0, %v2383
      %v2385 = vpop.f32.mrf.mxu0
      %2386 = vmatprep.mubr.bf16.mxu0 0
      %2387 = vmatmul.mubr.bf16.gmra.mxu0 %v1616
      %v2388 = vpop.f32.mrf.mxu0
      %v2389 = vadd.f32 0.0, %v2388
      %v2390 = vpop.f32.mrf.mxu0
      %v2391 = vpop.f32.mrf.mxu0
      %v2392 = vadd.f32 0.0, %v2391
      %v2393 = vpop.f32.mrf.mxu0
      %2394 = vmatprep.mubr.bf16.mxu0 0
      %2395 = vmatmul.mubr.bf16.gmra.mxu0 %v1619
      %v2396 = vpop.f32.mrf.mxu0
      %v2397 = vadd.f32 0.0, %v2396
      %v2398 = vpop.f32.mrf.mxu0
      %v2399 = vpop.f32.mrf.mxu0
      %v2400 = vadd.f32 0.0, %v2399
      %v2401 = vpop.f32.mrf.mxu0
      %2402 = vmatprep.mubr.bf16.mxu0 0
      %2403 = vmatmul.mubr.bf16.gmra.mxu0 %v1622
      %v2404 = vpop.f32.mrf.mxu0
      %v2405 = vadd.f32 0.0, %v2404
      %v2406 = vpop.f32.mrf.mxu0
      %v2407 = vpop.f32.mrf.mxu0
      %v2408 = vadd.f32 0.0, %v2407
      %v2409 = vpop.f32.mrf.mxu0
      %2410 = vmatprep.mubr.bf16.mxu0 0
      %2411 = vmatmul.mubr.bf16.gmra.mxu0 %v1625
      %v2412 = vpop.f32.mrf.mxu0
      %v2413 = vadd.f32 0.0, %v2412
      %v2414 = vpop.f32.mrf.mxu0
      %v2415 = vpop.f32.mrf.mxu0
      %v2416 = vadd.f32 0.0, %v2415
      %v2417 = vpop.f32.mrf.mxu0
      %2418 = vmatprep.mubr.bf16.mxu0 0
      %2419 = vmatmul.mubr.bf16.gmra.mxu0 %v1628
      %v2420 = vpop.f32.mrf.mxu0
      %v2421 = vadd.f32 0.0, %v2420
      %v2422 = vpop.f32.mrf.mxu0
      %v2423 = vpop.f32.mrf.mxu0
      %v2424 = vadd.f32 0.0, %v2423
      %v2425 = vpop.f32.mrf.mxu0
      %2426 = vmatprep.mubr.bf16.mxu0 0
      %2427 = vmatmul.mubr.bf16.gmra.mxu0 %v1631
      %v2428 = vpop.f32.mrf.mxu0
      %v2429 = vadd.f32 0.0, %v2428
      %v2430 = vpop.f32.mrf.mxu0
      %v2431 = vpop.f32.mrf.mxu0
      %v2432 = vadd.f32 0.0, %v2431
      %v2433 = vpop.f32.mrf.mxu0
      %2434 = vmatprep.mubr.bf16.mxu0 0
      %2435 = vmatmul.mubr.bf16.gmra.mxu0 %v2277
      %v2436 = vpop.f32.mrf.mxu0
      %v2437 = vadd.f32 0.0, %v2436
      %v2438 = vpop.f32.mrf.mxu0
      %v2439 = vpop.f32.mrf.mxu0
      %v2440 = vadd.f32 0.0, %v2439
      %v2441 = vpop.f32.mrf.mxu0
      %2442 = vdwg.mxu0
      %v2443 = vadd.f32 %v2231, %v2317
      %v2444 = vadd.f32 %v2232, %v2320
      %v2445 = vadd.f32 %v2233, %v2325
      %v2446 = vadd.f32 %v2234, %v2328
      %v2447 = vadd.f32 %v2235, %v2333
      %v2448 = vadd.f32 %v2236, %v2336
      %v2449 = vadd.f32 %v2237, %v2341
      %v2450 = vadd.f32 %v2238, %v2344
      %v2451 = vadd.f32 %v2239, %v2349
      %v2452 = vadd.f32 %v2240, %v2352
      %v2453 = vadd.f32 %v2241, %v2357
      %v2454 = vadd.f32 %v2242, %v2360
      %v2455 = vadd.f32 %v2243, %v2365
      %v2456 = vadd.f32 %v2244, %v2368
      %v2457 = vadd.f32 %v2245, %v2373
      %v2458 = vadd.f32 %v2246, %v2376
      %v2459 = vadd.f32 %v2247, %v2381
      %v2460 = vadd.f32 %v2248, %v2384
      %v2461 = vadd.f32 %v2249, %v2389
      %v2462 = vadd.f32 %v2250, %v2392
      %v2463 = vadd.f32 %v2251, %v2397
      %v2464 = vadd.f32 %v2252, %v2400
      %v2465 = vadd.f32 %v2253, %v2405
      %v2466 = vadd.f32 %v2254, %v2408
      %v2467 = vadd.f32 %v2255, %v2413
      %v2468 = vadd.f32 %v2256, %v2416
      %v2469 = vadd.f32 %v2257, %v2421
      %v2470 = vadd.f32 %v2258, %v2424
      %v2471 = vadd.f32 %v2259, %v2429
      %v2472 = vadd.f32 %v2260, %v2432
      %v2473 = vadd.f32 %v2261, %v2437
      %v2474 = vadd.f32 %v2262, %v2440
      %s2475 = scalar_lea.vmem %s3, 12
      %v2476 = vld [vmem:[%s2475] sm:$0x3]
      %v2479 = vunpack.c.l.b16 %v457
      %v2480 = vunpack.c.l.b16 %v458
      %v2481 = vpack.c.b16 %v2480, %v2479
      %v2483 = vsel %vm898, %v2481, 0
      %v2486 = vsel %vm947, %v2476, 0
      %2488 = vmatprep.subr.bf16.mxu0 0
      %2489 = vmatpush1.bf16.msra.mxu0 0
      %2490 = vmatprep.subr.bf16.mxu0 0
      %2491 = vmatpush1.bf16.msra.mxu0 0
      %2492 = vmatprep.subr.bf16.mxu0 0
      %2493 = vmatpush1.bf16.msra.mxu0 0
      %2494 = vmatprep.subr.bf16.mxu0 0
      %2495 = vmatpush1.bf16.msra.mxu0 0
      %2496 = vmatprep.subr.bf16.mxu0 0
      %2497 = vmatpush1.bf16.msra.mxu0 0
      %2498 = vmatprep.subr.bf16.mxu0 0
      %2499 = vmatpush1.bf16.msra.mxu0 0
      %2500 = vmatprep.subr.bf16.mxu0 0
      %2501 = vmatpush1.bf16.msra.mxu0 0
      %2502 = vmatprep.subr.bf16.mxu0 0
      %2503 = vmatpush1.bf16.msra.mxu0 %v2486
      %2504 = vmatprep.subr.bf16.mxu0 0
      %2505 = vmatpush2.bf16.msra.mxu0 0
      %2506 = vmatprep.subr.bf16.mxu0 0
      %2507 = vmatpush2.bf16.msra.mxu0 0
      %2508 = vmatprep.subr.bf16.mxu0 0
      %2509 = vmatpush2.bf16.msra.mxu0 0
      %2510 = vmatprep.subr.bf16.mxu0 0
      %2511 = vmatpush2.bf16.msra.mxu0 0
      %2512 = vmatprep.subr.bf16.mxu0 0
      %2513 = vmatpush2.bf16.msra.mxu0 0
      %2514 = vmatprep.subr.bf16.mxu0 0
      %2515 = vmatpush2.bf16.msra.mxu0 0
      %2516 = vmatprep.subr.bf16.mxu0 0
      %2517 = vmatpush2.bf16.msra.mxu0 0
      %2518 = vmatprep.subr.bf16.mxu0 0
      %2519 = vmatpush2.bf16.msra.mxu0 0
      %2520 = vmatprep.mubr.bf16.mxu0 0
      %2521 = vmatmul.mubr.bf16.gmra.mxu0 %v1199
      %v2522 = vpop.f32.mrf.mxu0
      %v2523 = vadd.f32 0.0, %v2522
      %v2524 = vpop.f32.mrf.mxu0
      %v2525 = vpop.f32.mrf.mxu0
      %v2526 = vadd.f32 0.0, %v2525
      %v2527 = vpop.f32.mrf.mxu0
      %2528 = vmatprep.mubr.bf16.mxu0 0
      %2529 = vmatmul.mubr.bf16.gmra.mxu0 %v1202
      %v2530 = vpop.f32.mrf.mxu0
      %v2531 = vadd.f32 0.0, %v2530
      %v2532 = vpop.f32.mrf.mxu0
      %v2533 = vpop.f32.mrf.mxu0
      %v2534 = vadd.f32 0.0, %v2533
      %v2535 = vpop.f32.mrf.mxu0
      %2536 = vmatprep.mubr.bf16.mxu0 0
      %2537 = vmatmul.mubr.bf16.gmra.mxu0 %v1205
      %v2538 = vpop.f32.mrf.mxu0
      %v2539 = vadd.f32 0.0, %v2538
      %v2540 = vpop.f32.mrf.mxu0
      %v2541 = vpop.f32.mrf.mxu0
      %v2542 = vadd.f32 0.0, %v2541
      %v2543 = vpop.f32.mrf.mxu0
      %2544 = vmatprep.mubr.bf16.mxu0 0
      %2545 = vmatmul.mubr.bf16.gmra.mxu0 %v1208
      %v2546 = vpop.f32.mrf.mxu0
      %v2547 = vadd.f32 0.0, %v2546
      %v2548 = vpop.f32.mrf.mxu0
      %v2549 = vpop.f32.mrf.mxu0
      %v2550 = vadd.f32 0.0, %v2549
      %v2551 = vpop.f32.mrf.mxu0
      %2552 = vmatprep.mubr.bf16.mxu0 0
      %2553 = vmatmul.mubr.bf16.gmra.mxu0 %v1211
      %v2554 = vpop.f32.mrf.mxu0
      %v2555 = vadd.f32 0.0, %v2554
      %v2556 = vpop.f32.mrf.mxu0
      %v2557 = vpop.f32.mrf.mxu0
      %v2558 = vadd.f32 0.0, %v2557
      %v2559 = vpop.f32.mrf.mxu0
      %2560 = vmatprep.mubr.bf16.mxu0 0
      %2561 = vmatmul.mubr.bf16.gmra.mxu0 %v1214
      %v2562 = vpop.f32.mrf.mxu0
      %v2563 = vadd.f32 0.0, %v2562
      %v2564 = vpop.f32.mrf.mxu0
      %v2565 = vpop.f32.mrf.mxu0
      %v2566 = vadd.f32 0.0, %v2565
      %v2567 = vpop.f32.mrf.mxu0
      %2568 = vmatprep.mubr.bf16.mxu0 0
      %2569 = vmatmul.mubr.bf16.gmra.mxu0 %v1217
      %v2570 = vpop.f32.mrf.mxu0
      %v2571 = vadd.f32 0.0, %v2570
      %v2572 = vpop.f32.mrf.mxu0
      %v2573 = vpop.f32.mrf.mxu0
      %v2574 = vadd.f32 0.0, %v2573
      %v2575 = vpop.f32.mrf.mxu0
      %2576 = vmatprep.mubr.bf16.mxu0 0
      %2577 = vmatmul.mubr.bf16.gmra.mxu0 %v1220
      %v2578 = vpop.f32.mrf.mxu0
      %v2579 = vadd.f32 0.0, %v2578
      %v2580 = vpop.f32.mrf.mxu0
      %v2581 = vpop.f32.mrf.mxu0
      %v2582 = vadd.f32 0.0, %v2581
      %v2583 = vpop.f32.mrf.mxu0
      %2584 = vmatprep.mubr.bf16.mxu0 0
      %2585 = vmatmul.mubr.bf16.gmra.mxu0 %v1223
      %v2586 = vpop.f32.mrf.mxu0
      %v2587 = vadd.f32 0.0, %v2586
      %v2588 = vpop.f32.mrf.mxu0
      %v2589 = vpop.f32.mrf.mxu0
      %v2590 = vadd.f32 0.0, %v2589
      %v2591 = vpop.f32.mrf.mxu0
      %2592 = vmatprep.mubr.bf16.mxu0 0
      %2593 = vmatmul.mubr.bf16.gmra.mxu0 %v1226
      %v2594 = vpop.f32.mrf.mxu0
      %v2595 = vadd.f32 0.0, %v2594
      %v2596 = vpop.f32.mrf.mxu0
      %v2597 = vpop.f32.mrf.mxu0
      %v2598 = vadd.f32 0.0, %v2597
      %v2599 = vpop.f32.mrf.mxu0
      %2600 = vmatprep.mubr.bf16.mxu0 0
      %2601 = vmatmul.mubr.bf16.gmra.mxu0 %v1229
      %v2602 = vpop.f32.mrf.mxu0
      %v2603 = vadd.f32 0.0, %v2602
      %v2604 = vpop.f32.mrf.mxu0
      %v2605 = vpop.f32.mrf.mxu0
      %v2606 = vadd.f32 0.0, %v2605
      %v2607 = vpop.f32.mrf.mxu0
      %2608 = vmatprep.mubr.bf16.mxu0 0
      %2609 = vmatmul.mubr.bf16.gmra.mxu0 %v1232
      %v2610 = vpop.f32.mrf.mxu0
      %v2611 = vadd.f32 0.0, %v2610
      %v2612 = vpop.f32.mrf.mxu0
      %v2613 = vpop.f32.mrf.mxu0
      %v2614 = vadd.f32 0.0, %v2613
      %v2615 = vpop.f32.mrf.mxu0
      %2616 = vmatprep.mubr.bf16.mxu0 0
      %2617 = vmatmul.mubr.bf16.gmra.mxu0 %v1235
      %v2618 = vpop.f32.mrf.mxu0
      %v2619 = vadd.f32 0.0, %v2618
      %v2620 = vpop.f32.mrf.mxu0
      %v2621 = vpop.f32.mrf.mxu0
      %v2622 = vadd.f32 0.0, %v2621
      %v2623 = vpop.f32.mrf.mxu0
      %2624 = vmatprep.mubr.bf16.mxu0 0
      %2625 = vmatmul.mubr.bf16.gmra.mxu0 %v1238
      %v2626 = vpop.f32.mrf.mxu0
      %v2627 = vadd.f32 0.0, %v2626
      %v2628 = vpop.f32.mrf.mxu0
      %v2629 = vpop.f32.mrf.mxu0
      %v2630 = vadd.f32 0.0, %v2629
      %v2631 = vpop.f32.mrf.mxu0
      %2632 = vmatprep.mubr.bf16.mxu0 0
      %2633 = vmatmul.mubr.bf16.gmra.mxu0 %v1837
      %v2634 = vpop.f32.mrf.mxu0
      %v2635 = vadd.f32 0.0, %v2634
      %v2636 = vpop.f32.mrf.mxu0
      %v2637 = vpop.f32.mrf.mxu0
      %v2638 = vadd.f32 0.0, %v2637
      %v2639 = vpop.f32.mrf.mxu0
      %2640 = vmatprep.mubr.bf16.mxu0 0
      %2641 = vmatmul.mubr.bf16.gmra.mxu0 %v2483
      %v2642 = vpop.f32.mrf.mxu0
      %v2643 = vadd.f32 0.0, %v2642
      %v2644 = vpop.f32.mrf.mxu0
      %v2645 = vpop.f32.mrf.mxu0
      %v2646 = vadd.f32 0.0, %v2645
      %v2647 = vpop.f32.mrf.mxu0
      %2648 = vdwg.mxu0
      %v2649 = vadd.f32 %v2443, %v2523
      %v2650 = vadd.f32 %v2444, %v2526
      %v2651 = vadd.f32 %v2445, %v2531
      %v2652 = vadd.f32 %v2446, %v2534
      %v2653 = vadd.f32 %v2447, %v2539
      %v2654 = vadd.f32 %v2448, %v2542
      %v2655 = vadd.f32 %v2449, %v2547
      %v2656 = vadd.f32 %v2450, %v2550
      %v2657 = vadd.f32 %v2451, %v2555
      %v2658 = vadd.f32 %v2452, %v2558
      %v2659 = vadd.f32 %v2453, %v2563
      %v2660 = vadd.f32 %v2454, %v2566
      %v2661 = vadd.f32 %v2455, %v2571
      %v2662 = vadd.f32 %v2456, %v2574
      %v2663 = vadd.f32 %v2457, %v2579
      %v2664 = vadd.f32 %v2458, %v2582
      %v2665 = vadd.f32 %v2459, %v2587
      %v2666 = vadd.f32 %v2460, %v2590
      %v2667 = vadd.f32 %v2461, %v2595
      %v2668 = vadd.f32 %v2462, %v2598
      %v2669 = vadd.f32 %v2463, %v2603
      %v2670 = vadd.f32 %v2464, %v2606
      %v2671 = vadd.f32 %v2465, %v2611
      %v2672 = vadd.f32 %v2466, %v2614
      %v2673 = vadd.f32 %v2467, %v2619
      %v2674 = vadd.f32 %v2468, %v2622
      %v2675 = vadd.f32 %v2469, %v2627
      %v2676 = vadd.f32 %v2470, %v2630
      %v2677 = vadd.f32 %v2471, %v2635
      %v2678 = vadd.f32 %v2472, %v2638
      %v2679 = vadd.f32 %v2473, %v2643
      %v2680 = vadd.f32 %v2474, %v2646
      %v2682 = vshrl.u32 %v457, 16
      %v2684 = vrot.slane %v2682, 4
      %v2685 = vshll.u32 %v457, 16
      %v2687 = vrot.slane %v2685, 5
      %v2688 = vor.u32 %v2684, %v2687
      %v2689 = vrot.slane %v2688, 4
      %v2691 = vshll.u32 %v458, 16
      %v2693 = vrot.slane %v2691, 5
      %v2694 = vsel %vm463, %v2689, %v2693
      %v2695 = vshrl.u32 %v458, 16
      %v2697 = vrot.slane %v2695, 4
      %v2698 = vor.u32 %v2697, %v2693
      %v2699 = vrot.slane %v2698, 4
      %v2701 = vshll.u32 %v459, 16
      %v2703 = vrot.slane %v2701, 5
      %v2704 = vsel %vm463, %v2699, %v2703
      %s2705 = scalar_lea.vmem %s3, 14
      %v2706 = vld [vmem:[%s2705] sm:$0x3]
      %v2707 = vunpack.c.l.b16 %v2694
      %v2708 = vunpack.c.l.b16 %v2704
      %v2709 = vpack.c.b16 %v2708, %v2707
      %v2711 = vsel %vm898, %v2709, 0
      %v2714 = vsel %vm947, %v2706, 0
      %2716 = vmatprep.subr.bf16.mxu0 0
      %2717 = vmatpush1.bf16.msra.mxu0 0
      %2718 = vmatprep.subr.bf16.mxu0 0
      %2719 = vmatpush1.bf16.msra.mxu0 0
      %2720 = vmatprep.subr.bf16.mxu0 0
      %2721 = vmatpush1.bf16.msra.mxu0 0
      %2722 = vmatprep.subr.bf16.mxu0 0
      %2723 = vmatpush1.bf16.msra.mxu0 0
      %2724 = vmatprep.subr.bf16.mxu0 0
      %2725 = vmatpush1.bf16.msra.mxu0 0
      %2726 = vmatprep.subr.bf16.mxu0 0
      %2727 = vmatpush1.bf16.msra.mxu0 0
      %2728 = vmatprep.subr.bf16.mxu0 0
      %2729 = vmatpush1.bf16.msra.mxu0 0
      %2730 = vmatprep.subr.bf16.mxu0 0
      %2731 = vmatpush1.bf16.msra.mxu0 %v2714
      %2732 = vmatprep.subr.bf16.mxu0 0
      %2733 = vmatpush2.bf16.msra.mxu0 0
      %2734 = vmatprep.subr.bf16.mxu0 0
      %2735 = vmatpush2.bf16.msra.mxu0 0
      %2736 = vmatprep.subr.bf16.mxu0 0
      %2737 = vmatpush2.bf16.msra.mxu0 0
      %2738 = vmatprep.subr.bf16.mxu0 0
      %2739 = vmatpush2.bf16.msra.mxu0 0
      %2740 = vmatprep.subr.bf16.mxu0 0
      %2741 = vmatpush2.bf16.msra.mxu0 0
      %2742 = vmatprep.subr.bf16.mxu0 0
      %2743 = vmatpush2.bf16.msra.mxu0 0
      %2744 = vmatprep.subr.bf16.mxu0 0
      %2745 = vmatpush2.bf16.msra.mxu0 0
      %2746 = vmatprep.subr.bf16.mxu0 0
      %2747 = vmatpush2.bf16.msra.mxu0 0
      %2748 = vmatprep.mubr.bf16.mxu0 0
      %2749 = vmatmul.mubr.bf16.gmra.mxu0 %v906
      %v2750 = vpop.f32.mrf.mxu0
      %v2751 = vadd.f32 0.0, %v2750
      %v2752 = vpop.f32.mrf.mxu0
      %v2753 = vpop.f32.mrf.mxu0
      %v2754 = vadd.f32 0.0, %v2753
      %v2755 = vpop.f32.mrf.mxu0
      %2756 = vmatprep.mubr.bf16.mxu0 0
      %2757 = vmatmul.mubr.bf16.gmra.mxu0 %v909
      %v2758 = vpop.f32.mrf.mxu0
      %v2759 = vadd.f32 0.0, %v2758
      %v2760 = vpop.f32.mrf.mxu0
      %v2761 = vpop.f32.mrf.mxu0
      %v2762 = vadd.f32 0.0, %v2761
      %v2763 = vpop.f32.mrf.mxu0
      %2764 = vmatprep.mubr.bf16.mxu0 0
      %2765 = vmatmul.mubr.bf16.gmra.mxu0 %v912
      %v2766 = vpop.f32.mrf.mxu0
      %v2767 = vadd.f32 0.0, %v2766
      %v2768 = vpop.f32.mrf.mxu0
      %v2769 = vpop.f32.mrf.mxu0
      %v2770 = vadd.f32 0.0, %v2769
      %v2771 = vpop.f32.mrf.mxu0
      %2772 = vmatprep.mubr.bf16.mxu0 0
      %2773 = vmatmul.mubr.bf16.gmra.mxu0 %v915
      %v2774 = vpop.f32.mrf.mxu0
      %v2775 = vadd.f32 0.0, %v2774
      %v2776 = vpop.f32.mrf.mxu0
      %v2777 = vpop.f32.mrf.mxu0
      %v2778 = vadd.f32 0.0, %v2777
      %v2779 = vpop.f32.mrf.mxu0
      %2780 = vmatprep.mubr.bf16.mxu0 0
      %2781 = vmatmul.mubr.bf16.gmra.mxu0 %v918
      %v2782 = vpop.f32.mrf.mxu0
      %v2783 = vadd.f32 0.0, %v2782
      %v2784 = vpop.f32.mrf.mxu0
      %v2785 = vpop.f32.mrf.mxu0
      %v2786 = vadd.f32 0.0, %v2785
      %v2787 = vpop.f32.mrf.mxu0
      %2788 = vmatprep.mubr.bf16.mxu0 0
      %2789 = vmatmul.mubr.bf16.gmra.mxu0 %v921
      %v2790 = vpop.f32.mrf.mxu0
      %v2791 = vadd.f32 0.0, %v2790
      %v2792 = vpop.f32.mrf.mxu0
      %v2793 = vpop.f32.mrf.mxu0
      %v2794 = vadd.f32 0.0, %v2793
      %v2795 = vpop.f32.mrf.mxu0
      %2796 = vmatprep.mubr.bf16.mxu0 0
      %2797 = vmatmul.mubr.bf16.gmra.mxu0 %v924
      %v2798 = vpop.f32.mrf.mxu0
      %v2799 = vadd.f32 0.0, %v2798
      %v2800 = vpop.f32.mrf.mxu0
      %v2801 = vpop.f32.mrf.mxu0
      %v2802 = vadd.f32 0.0, %v2801
      %v2803 = vpop.f32.mrf.mxu0
      %2804 = vmatprep.mubr.bf16.mxu0 0
      %2805 = vmatmul.mubr.bf16.gmra.mxu0 %v927
      %v2806 = vpop.f32.mrf.mxu0
      %v2807 = vadd.f32 0.0, %v2806
      %v2808 = vpop.f32.mrf.mxu0
      %v2809 = vpop.f32.mrf.mxu0
      %v2810 = vadd.f32 0.0, %v2809
      %v2811 = vpop.f32.mrf.mxu0
      %2812 = vmatprep.mubr.bf16.mxu0 0
      %2813 = vmatmul.mubr.bf16.gmra.mxu0 %v930
      %v2814 = vpop.f32.mrf.mxu0
      %v2815 = vadd.f32 0.0, %v2814
      %v2816 = vpop.f32.mrf.mxu0
      %v2817 = vpop.f32.mrf.mxu0
      %v2818 = vadd.f32 0.0, %v2817
      %v2819 = vpop.f32.mrf.mxu0
      %2820 = vmatprep.mubr.bf16.mxu0 0
      %2821 = vmatmul.mubr.bf16.gmra.mxu0 %v933
      %v2822 = vpop.f32.mrf.mxu0
      %v2823 = vadd.f32 0.0, %v2822
      %v2824 = vpop.f32.mrf.mxu0
      %v2825 = vpop.f32.mrf.mxu0
      %v2826 = vadd.f32 0.0, %v2825
      %v2827 = vpop.f32.mrf.mxu0
      %2828 = vmatprep.mubr.bf16.mxu0 0
      %2829 = vmatmul.mubr.bf16.gmra.mxu0 %v936
      %v2830 = vpop.f32.mrf.mxu0
      %v2831 = vadd.f32 0.0, %v2830
      %v2832 = vpop.f32.mrf.mxu0
      %v2833 = vpop.f32.mrf.mxu0
      %v2834 = vadd.f32 0.0, %v2833
      %v2835 = vpop.f32.mrf.mxu0
      %2836 = vmatprep.mubr.bf16.mxu0 0
      %2837 = vmatmul.mubr.bf16.gmra.mxu0 %v939
      %v2838 = vpop.f32.mrf.mxu0
      %v2839 = vadd.f32 0.0, %v2838
      %v2840 = vpop.f32.mrf.mxu0
      %v2841 = vpop.f32.mrf.mxu0
      %v2842 = vadd.f32 0.0, %v2841
      %v2843 = vpop.f32.mrf.mxu0
      %2844 = vmatprep.mubr.bf16.mxu0 0
      %2845 = vmatmul.mubr.bf16.gmra.mxu0 %v942
      %v2846 = vpop.f32.mrf.mxu0
      %v2847 = vadd.f32 0.0, %v2846
      %v2848 = vpop.f32.mrf.mxu0
      %v2849 = vpop.f32.mrf.mxu0
      %v2850 = vadd.f32 0.0, %v2849
      %v2851 = vpop.f32.mrf.mxu0
      %2852 = vmatprep.mubr.bf16.mxu0 0
      %2853 = vmatmul.mubr.bf16.gmra.mxu0 %v945
      %v2854 = vpop.f32.mrf.mxu0
      %v2855 = vadd.f32 0.0, %v2854
      %v2856 = vpop.f32.mrf.mxu0
      %v2857 = vpop.f32.mrf.mxu0
      %v2858 = vadd.f32 0.0, %v2857
      %v2859 = vpop.f32.mrf.mxu0
      %2860 = vmatprep.mubr.bf16.mxu0 0
      %2861 = vmatmul.mubr.bf16.gmra.mxu0 %v2065
      %v2862 = vpop.f32.mrf.mxu0
      %v2863 = vadd.f32 0.0, %v2862
      %v2864 = vpop.f32.mrf.mxu0
      %v2865 = vpop.f32.mrf.mxu0
      %v2866 = vadd.f32 0.0, %v2865
      %v2867 = vpop.f32.mrf.mxu0
      %2868 = vmatprep.mubr.bf16.mxu0 0
      %2869 = vmatmul.mubr.bf16.gmra.mxu0 %v2711
      %v2870 = vpop.f32.mrf.mxu0
      %v2871 = vadd.f32 0.0, %v2870
      %v2872 = vpop.f32.mrf.mxu0
      %v2873 = vpop.f32.mrf.mxu0
      %v2874 = vadd.f32 0.0, %v2873
      %v2875 = vpop.f32.mrf.mxu0
      %2876 = vdwg.mxu0
      %v2877 = vadd.f32 %v2649, %v2751
      %v2878 = vadd.f32 %v2650, %v2754
      %v2879 = vadd.f32 %v2651, %v2759
      %v2880 = vadd.f32 %v2652, %v2762
      %v2881 = vadd.f32 %v2653, %v2767
      %v2882 = vadd.f32 %v2654, %v2770
      %v2883 = vadd.f32 %v2655, %v2775
      %v2884 = vadd.f32 %v2656, %v2778
      %v2885 = vadd.f32 %v2657, %v2783
      %v2886 = vadd.f32 %v2658, %v2786
      %v2887 = vadd.f32 %v2659, %v2791
      %v2888 = vadd.f32 %v2660, %v2794
      %v2889 = vadd.f32 %v2661, %v2799
      %v2890 = vadd.f32 %v2662, %v2802
      %v2891 = vadd.f32 %v2663, %v2807
      %v2892 = vadd.f32 %v2664, %v2810
      %v2893 = vadd.f32 %v2665, %v2815
      %v2894 = vadd.f32 %v2666, %v2818
      %v2895 = vadd.f32 %v2667, %v2823
      %v2896 = vadd.f32 %v2668, %v2826
      %v2897 = vadd.f32 %v2669, %v2831
      %v2898 = vadd.f32 %v2670, %v2834
      %v2899 = vadd.f32 %v2671, %v2839
      %v2900 = vadd.f32 %v2672, %v2842
      %v2901 = vadd.f32 %v2673, %v2847
      %v2902 = vadd.f32 %v2674, %v2850
      %v2903 = vadd.f32 %v2675, %v2855
      %v2904 = vadd.f32 %v2676, %v2858
      %v2905 = vadd.f32 %v2677, %v2863
      %v2906 = vadd.f32 %v2678, %v2866
      %v2907 = vadd.f32 %v2679, %v2871
      %v2908 = vadd.f32 %v2680, %v2874
      %v2910 = vrot.slane %v457, 5
      %v2911 = vrot.slane %v2910, 4
      %v2912 = vrot.slane %v458, 5
      %v2913 = vsel %vm1422, %v2911, %v2912
      %v2914 = vrot.slane %v2912, 4
      %v2915 = vrot.slane %v459, 5
      %v2916 = vsel %vm1422, %v2914, %v2915
      %s2917 = scalar_lea.vmem %s3, 16
      %v2918 = vld [vmem:[%s2917] sm:$0x3]
      %v2919 = vunpack.c.l.b16 %v2913
      %v2920 = vunpack.c.l.b16 %v2916
      %v2921 = vpack.c.b16 %v2920, %v2919
      %v2923 = vsel %vm898, %v2921, 0
      %v2926 = vsel %vm947, %v2918, 0
      %2928 = vmatprep.subr.bf16.mxu0 0
      %2929 = vmatpush1.bf16.msra.mxu0 0
      %2930 = vmatprep.subr.bf16.mxu0 0
      %2931 = vmatpush1.bf16.msra.mxu0 0
      %2932 = vmatprep.subr.bf16.mxu0 0
      %2933 = vmatpush1.bf16.msra.mxu0 0
      %2934 = vmatprep.subr.bf16.mxu0 0
      %2935 = vmatpush1.bf16.msra.mxu0 0
      %2936 = vmatprep.subr.bf16.mxu0 0
      %2937 = vmatpush1.bf16.msra.mxu0 0
      %2938 = vmatprep.subr.bf16.mxu0 0
      %2939 = vmatpush1.bf16.msra.mxu0 0
      %2940 = vmatprep.subr.bf16.mxu0 0
      %2941 = vmatpush1.bf16.msra.mxu0 0
      %2942 = vmatprep.subr.bf16.mxu0 0
      %2943 = vmatpush1.bf16.msra.mxu0 %v2926
      %2944 = vmatprep.subr.bf16.mxu0 0
      %2945 = vmatpush2.bf16.msra.mxu0 0
      %2946 = vmatprep.subr.bf16.mxu0 0
      %2947 = vmatpush2.bf16.msra.mxu0 0
      %2948 = vmatprep.subr.bf16.mxu0 0
      %2949 = vmatpush2.bf16.msra.mxu0 0
      %2950 = vmatprep.subr.bf16.mxu0 0
      %2951 = vmatpush2.bf16.msra.mxu0 0
      %2952 = vmatprep.subr.bf16.mxu0 0
      %2953 = vmatpush2.bf16.msra.mxu0 0
      %2954 = vmatprep.subr.bf16.mxu0 0
      %2955 = vmatpush2.bf16.msra.mxu0 0
      %2956 = vmatprep.subr.bf16.mxu0 0
      %2957 = vmatpush2.bf16.msra.mxu0 0
      %2958 = vmatprep.subr.bf16.mxu0 0
      %2959 = vmatpush2.bf16.msra.mxu0 0
      %2960 = vmatprep.mubr.bf16.mxu0 0
      %2961 = vmatmul.mubr.bf16.gmra.mxu0 %v1592
      %v2962 = vpop.f32.mrf.mxu0
      %v2963 = vadd.f32 0.0, %v2962
      %v2964 = vpop.f32.mrf.mxu0
      %v2965 = vpop.f32.mrf.mxu0
      %v2966 = vadd.f32 0.0, %v2965
      %v2967 = vpop.f32.mrf.mxu0
      %2968 = vmatprep.mubr.bf16.mxu0 0
      %2969 = vmatmul.mubr.bf16.gmra.mxu0 %v1595
      %v2970 = vpop.f32.mrf.mxu0
      %v2971 = vadd.f32 0.0, %v2970
      %v2972 = vpop.f32.mrf.mxu0
      %v2973 = vpop.f32.mrf.mxu0
      %v2974 = vadd.f32 0.0, %v2973
      %v2975 = vpop.f32.mrf.mxu0
      %2976 = vmatprep.mubr.bf16.mxu0 0
      %2977 = vmatmul.mubr.bf16.gmra.mxu0 %v1598
      %v2978 = vpop.f32.mrf.mxu0
      %v2979 = vadd.f32 0.0, %v2978
      %v2980 = vpop.f32.mrf.mxu0
      %v2981 = vpop.f32.mrf.mxu0
      %v2982 = vadd.f32 0.0, %v2981
      %v2983 = vpop.f32.mrf.mxu0
      %2984 = vmatprep.mubr.bf16.mxu0 0
      %2985 = vmatmul.mubr.bf16.gmra.mxu0 %v1601
      %v2986 = vpop.f32.mrf.mxu0
      %v2987 = vadd.f32 0.0, %v2986
      %v2988 = vpop.f32.mrf.mxu0
      %v2989 = vpop.f32.mrf.mxu0
      %v2990 = vadd.f32 0.0, %v2989
      %v2991 = vpop.f32.mrf.mxu0
      %2992 = vmatprep.mubr.bf16.mxu0 0
      %2993 = vmatmul.mubr.bf16.gmra.mxu0 %v1604
      %v2994 = vpop.f32.mrf.mxu0
      %v2995 = vadd.f32 0.0, %v2994
      %v2996 = vpop.f32.mrf.mxu0
      %v2997 = vpop.f32.mrf.mxu0
      %v2998 = vadd.f32 0.0, %v2997
      %v2999 = vpop.f32.mrf.mxu0
      %3000 = vmatprep.mubr.bf16.mxu0 0
      %3001 = vmatmul.mubr.bf16.gmra.mxu0 %v1607
      %v3002 = vpop.f32.mrf.mxu0
      %v3003 = vadd.f32 0.0, %v3002
      %v3004 = vpop.f32.mrf.mxu0
      %v3005 = vpop.f32.mrf.mxu0
      %v3006 = vadd.f32 0.0, %v3005
      %v3007 = vpop.f32.mrf.mxu0
      %3008 = vmatprep.mubr.bf16.mxu0 0
      %3009 = vmatmul.mubr.bf16.gmra.mxu0 %v1610
      %v3010 = vpop.f32.mrf.mxu0
      %v3011 = vadd.f32 0.0, %v3010
      %v3012 = vpop.f32.mrf.mxu0
      %v3013 = vpop.f32.mrf.mxu0
      %v3014 = vadd.f32 0.0, %v3013
      %v3015 = vpop.f32.mrf.mxu0
      %3016 = vmatprep.mubr.bf16.mxu0 0
      %3017 = vmatmul.mubr.bf16.gmra.mxu0 %v1613
      %v3018 = vpop.f32.mrf.mxu0
      %v3019 = vadd.f32 0.0, %v3018
      %v3020 = vpop.f32.mrf.mxu0
      %v3021 = vpop.f32.mrf.mxu0
      %v3022 = vadd.f32 0.0, %v3021
      %v3023 = vpop.f32.mrf.mxu0
      %3024 = vmatprep.mubr.bf16.mxu0 0
      %3025 = vmatmul.mubr.bf16.gmra.mxu0 %v1616
      %v3026 = vpop.f32.mrf.mxu0
      %v3027 = vadd.f32 0.0, %v3026
      %v3028 = vpop.f32.mrf.mxu0
      %v3029 = vpop.f32.mrf.mxu0
      %v3030 = vadd.f32 0.0, %v3029
      %v3031 = vpop.f32.mrf.mxu0
      %3032 = vmatprep.mubr.bf16.mxu0 0
      %3033 = vmatmul.mubr.bf16.gmra.mxu0 %v1619
      %v3034 = vpop.f32.mrf.mxu0
      %v3035 = vadd.f32 0.0, %v3034
      %v3036 = vpop.f32.mrf.mxu0
      %v3037 = vpop.f32.mrf.mxu0
      %v3038 = vadd.f32 0.0, %v3037
      %v3039 = vpop.f32.mrf.mxu0
      %3040 = vmatprep.mubr.bf16.mxu0 0
      %3041 = vmatmul.mubr.bf16.gmra.mxu0 %v1622
      %v3042 = vpop.f32.mrf.mxu0
      %v3043 = vadd.f32 0.0, %v3042
      %v3044 = vpop.f32.mrf.mxu0
      %v3045 = vpop.f32.mrf.mxu0
      %v3046 = vadd.f32 0.0, %v3045
      %v3047 = vpop.f32.mrf.mxu0
      %3048 = vmatprep.mubr.bf16.mxu0 0
      %3049 = vmatmul.mubr.bf16.gmra.mxu0 %v1625
      %v3050 = vpop.f32.mrf.mxu0
      %v3051 = vadd.f32 0.0, %v3050
      %v3052 = vpop.f32.mrf.mxu0
      %v3053 = vpop.f32.mrf.mxu0
      %v3054 = vadd.f32 0.0, %v3053
      %v3055 = vpop.f32.mrf.mxu0
      %3056 = vmatprep.mubr.bf16.mxu0 0
      %3057 = vmatmul.mubr.bf16.gmra.mxu0 %v1628
      %v3058 = vpop.f32.mrf.mxu0
      %v3059 = vadd.f32 0.0, %v3058
      %v3060 = vpop.f32.mrf.mxu0
      %v3061 = vpop.f32.mrf.mxu0
      %v3062 = vadd.f32 0.0, %v3061
      %v3063 = vpop.f32.mrf.mxu0
      %3064 = vmatprep.mubr.bf16.mxu0 0
      %3065 = vmatmul.mubr.bf16.gmra.mxu0 %v1631
      %v3066 = vpop.f32.mrf.mxu0
      %v3067 = vadd.f32 0.0, %v3066
      %v3068 = vpop.f32.mrf.mxu0
      %v3069 = vpop.f32.mrf.mxu0
      %v3070 = vadd.f32 0.0, %v3069
      %v3071 = vpop.f32.mrf.mxu0
      %3072 = vmatprep.mubr.bf16.mxu0 0
      %3073 = vmatmul.mubr.bf16.gmra.mxu0 %v2277
      %v3074 = vpop.f32.mrf.mxu0
      %v3075 = vadd.f32 0.0, %v3074
      %v3076 = vpop.f32.mrf.mxu0
      %v3077 = vpop.f32.mrf.mxu0
      %v3078 = vadd.f32 0.0, %v3077
      %v3079 = vpop.f32.mrf.mxu0
      %3080 = vmatprep.mubr.bf16.mxu0 0
      %3081 = vmatmul.mubr.bf16.gmra.mxu0 %v2923
      %v3082 = vpop.f32.mrf.mxu0
      %v3083 = vadd.f32 0.0, %v3082
      %v3084 = vpop.f32.mrf.mxu0
      %v3085 = vpop.f32.mrf.mxu0
      %v3086 = vadd.f32 0.0, %v3085
      %v3087 = vpop.f32.mrf.mxu0
      %3088 = vdwg.mxu0
      %v3089 = vadd.f32 %v2877, %v2963
      %v3090 = vadd.f32 %v2878, %v2966
      %v3091 = vadd.f32 %v2879, %v2971
      %v3092 = vadd.f32 %v2880, %v2974
      %v3093 = vadd.f32 %v2881, %v2979
      %v3094 = vadd.f32 %v2882, %v2982
      %v3095 = vadd.f32 %v2883, %v2987
      %v3096 = vadd.f32 %v2884, %v2990
      %v3097 = vadd.f32 %v2885, %v2995
      %v3098 = vadd.f32 %v2886, %v2998
      %v3099 = vadd.f32 %v2887, %v3003
      %v3100 = vadd.f32 %v2888, %v3006
      %v3101 = vadd.f32 %v2889, %v3011
      %v3102 = vadd.f32 %v2890, %v3014
      %v3103 = vadd.f32 %v2891, %v3019
      %v3104 = vadd.f32 %v2892, %v3022
      %v3105 = vadd.f32 %v2893, %v3027
      %v3106 = vadd.f32 %v2894, %v3030
      %v3107 = vadd.f32 %v2895, %v3035
      %v3108 = vadd.f32 %v2896, %v3038
      %v3109 = vadd.f32 %v2897, %v3043
      %v3110 = vadd.f32 %v2898, %v3046
      %v3111 = vadd.f32 %v2899, %v3051
      %v3112 = vadd.f32 %v2900, %v3054
      %v3113 = vadd.f32 %v2901, %v3059
      %v3114 = vadd.f32 %v2902, %v3062
      %v3115 = vadd.f32 %v2903, %v3067
      %v3116 = vadd.f32 %v2904, %v3070
      %v3117 = vadd.f32 %v2905, %v3075
      %v3118 = vadd.f32 %v2906, %v3078
      %v3119 = vadd.f32 %v2907, %v3083
      %v3120 = vadd.f32 %v2908, %v3086
      %v3121 = vadd.f32 %v3089, %v3090
      %v3122 = vadd.f32 %v3121, %v3091
      %v3123 = vadd.f32 %v3122, %v3092
      %v3124 = vadd.f32 %v3123, %v3093
      %v3125 = vadd.f32 %v3124, %v3094
      %v3126 = vadd.f32 %v3125, %v3095
      %v3127 = vadd.f32 %v3126, %v3096
      %v3128 = vadd.f32 %v3127, %v3097
      %v3129 = vadd.f32 %v3128, %v3098
      %v3130 = vadd.f32 %v3129, %v3099
      %v3131 = vadd.f32 %v3130, %v3100
      %v3132 = vadd.f32 %v3131, %v3101
      %v3133 = vadd.f32 %v3132, %v3102
      %v3134 = vadd.f32 %v3133, %v3103
      %v3135 = vadd.f32 %v3134, %v3104
      %v3136 = vadd.f32 %v3135, %v3105
      %v3137 = vadd.f32 %v3136, %v3106
      %v3138 = vadd.f32 %v3137, %v3107
      %v3139 = vadd.f32 %v3138, %v3108
      %v3140 = vadd.f32 %v3139, %v3109
      %v3141 = vadd.f32 %v3140, %v3110
      %v3142 = vadd.f32 %v3141, %v3111
      %v3143 = vadd.f32 %v3142, %v3112
      %v3144 = vadd.f32 %v3143, %v3113
      %v3145 = vadd.f32 %v3144, %v3114
      %v3146 = vadd.f32 %v3145, %v3115
      %v3147 = vadd.f32 %v3146, %v3116
      %v3148 = vadd.f32 %v3147, %v3117
      %v3149 = vadd.f32 %v3148, %v3118
      %v3150 = vadd.f32 %v3149, %v3119
      %v3151 = vadd.f32 %v3150, %v3120
      %v3152 = vrot.slane %v3151, 4
      %v3153 = vadd.f32 %v3151, %v3152
      %v3154 = vrot.slane %v3153, 2
      %v3155 = vadd.f32 %v3153, %v3154
      %v3156 = vrot.slane %v3155, 1
      %v3157 = vadd.f32 %v3155, %v3156
      %3158 = vst [vmem:[%s398] sm:$0x1] %v3157
      %v3159 = vmul.f32 %v3089, %v3089
      %v3160 = vmul.f32 %v3090, %v3090
      %v3161 = vmul.f32 %v3091, %v3091
      %v3162 = vmul.f32 %v3092, %v3092
      %v3163 = vmul.f32 %v3093, %v3093
      %v3164 = vmul.f32 %v3094, %v3094
      %v3165 = vmul.f32 %v3095, %v3095
      %v3166 = vmul.f32 %v3096, %v3096
      %v3167 = vmul.f32 %v3097, %v3097
      %v3168 = vmul.f32 %v3098, %v3098
      %v3169 = vmul.f32 %v3099, %v3099
      %v3170 = vmul.f32 %v3100, %v3100
      %v3171 = vmul.f32 %v3101, %v3101
      %v3172 = vmul.f32 %v3102, %v3102
      %v3173 = vmul.f32 %v3103, %v3103
      %v3174 = vmul.f32 %v3104, %v3104
      %v3175 = vmul.f32 %v3105, %v3105
      %v3176 = vmul.f32 %v3106, %v3106
      %v3177 = vmul.f32 %v3107, %v3107
      %v3178 = vmul.f32 %v3108, %v3108
      %v3179 = vmul.f32 %v3109, %v3109
      %v3180 = vmul.f32 %v3110, %v3110
      %v3181 = vmul.f32 %v3111, %v3111
      %v3182 = vmul.f32 %v3112, %v3112
      %v3183 = vmul.f32 %v3113, %v3113
      %v3184 = vmul.f32 %v3114, %v3114
      %v3185 = vmul.f32 %v3115, %v3115
      %v3186 = vmul.f32 %v3116, %v3116
      %v3187 = vmul.f32 %v3117, %v3117
      %v3188 = vmul.f32 %v3118, %v3118
      %v3189 = vmul.f32 %v3119, %v3119
      %v3190 = vmul.f32 %v3120, %v3120
      %v3191 = vadd.f32 %v3159, %v3160
      %v3192 = vadd.f32 %v3191, %v3161
      %v3193 = vadd.f32 %v3192, %v3162
      %v3194 = vadd.f32 %v3193, %v3163
      %v3195 = vadd.f32 %v3194, %v3164
      %v3196 = vadd.f32 %v3195, %v3165
      %v3197 = vadd.f32 %v3196, %v3166
      %v3198 = vadd.f32 %v3197, %v3167
      %v3199 = vadd.f32 %v3198, %v3168
      %v3200 = vadd.f32 %v3199, %v3169
      %v3201 = vadd.f32 %v3200, %v3170
      %v3202 = vadd.f32 %v3201, %v3171
      %v3203 = vadd.f32 %v3202, %v3172
      %v3204 = vadd.f32 %v3203, %v3173
      %v3205 = vadd.f32 %v3204, %v3174
      %v3206 = vadd.f32 %v3205, %v3175
      %v3207 = vadd.f32 %v3206, %v3176
      %v3208 = vadd.f32 %v3207, %v3177
      %v3209 = vadd.f32 %v3208, %v3178
      %v3210 = vadd.f32 %v3209, %v3179
      %v3211 = vadd.f32 %v3210, %v3180
      %v3212 = vadd.f32 %v3211, %v3181
      %v3213 = vadd.f32 %v3212, %v3182
      %v3214 = vadd.f32 %v3213, %v3183
      %v3215 = vadd.f32 %v3214, %v3184
      %v3216 = vadd.f32 %v3215, %v3185
      %v3217 = vadd.f32 %v3216, %v3186
      %v3218 = vadd.f32 %v3217, %v3187
      %v3219 = vadd.f32 %v3218, %v3188
      %v3220 = vadd.f32 %v3219, %v3189
      %v3221 = vadd.f32 %v3220, %v3190
      %v3222 = vrot.slane %v3221, 4
      %v3223 = vadd.f32 %v3221, %v3222
      %v3224 = vrot.slane %v3223, 2
      %v3225 = vadd.f32 %v3223, %v3224
      %v3226 = vrot.slane %v3225, 1
      %v3227 = vadd.f32 %v3225, %v3226
      %3228 = vst [vmem:[%s404] sm:$0x1] %v3227
      %p3229 = scmp.lt.s32.totalorder %s21, 1
      %s3230 = scalar_select %p3229, %s21, 1
      %p3231 = scmp.lt.s32.totalorder %s22, 0
      %s3232 = scalar_select %p3231, %s22, 0
      %s3233 = sadd.s32 %s3232, %s3230
      %s3234 = scalar_lea.vmem %s4, %s3233
      %p3235 = scmp.lt.s32.totalorder %s21, 1
      %s3236 = scalar_select %p3235, %s21, 1
      %p3237 = scmp.lt.s32.totalorder %s22, 0
      %s3238 = scalar_select %p3237, %s22, 0
      %s3239 = sadd.s32 %s3238, %s3236
      %s3240 = scalar_lea.vmem %s5, %s3239
      // Predicated region
      $region37: #{convolutional_block.2} parent=35 // pred_check
        %p3241 = pneg %p164
      $region38: #{convolutional_block.2} parent=35 // pred_check_branch
        %3243 = sbr.rel (%p3241) target = $region40
      $region39: #{convolutional_block.2} parent=35 // pred_region
        _
      $region40: #{convolutional_block.2} parent=35 // pred_fallthru
        _
      // Predicated region
      $region41: #{convolutional_block.2} parent=35 // pred_check
        %p3244 = pneg %p192
      $region42: #{convolutional_block.2} parent=35 // pred_check_branch
        %3246 = sbr.rel (%p3244) target = $region44
      $region43: #{convolutional_block.2} parent=35 // pred_region
        _
      $region44: #{convolutional_block.2} parent=35 // pred_fallthru
        _
    $region36: #{convolutional_block.2} parent=5 // pred_fallthru
      _
    %p3247 = scmp.le.s32.totalorder 2, %s12
    // Predicated region
    $region45: #{convolutional_block.2} parent=5 // pred_check
      %p3248 = pneg %p3247
    $region46: #{convolutional_block.2} parent=5 // pred_check_branch
      %3250 = sbr.rel (%p3248) target = $region48
    $region47: #{convolutional_block.2} parent=5 // pred_region
      %s3251 = ssub.s32 %s12, 2
      // Predicated region
      $region49: #{convolutional_block.2} parent=47 // pred_check
        %p3252 = pneg %p170
      $region50: #{convolutional_block.2} parent=47 // pred_check_branch
        %3254 = sbr.rel (%p3252) target = $region52
      $region51: #{convolutional_block.2} parent=47 // pred_region
        %p3255 = scmp.lt.s32.totalorder %s23, 1
        %s3256 = scalar_select %p3255, %s23, 1
        %p3257 = scmp.lt.s32.totalorder %s24, 0
        %s3258 = scalar_select %p3257, %s24, 0
        %s3259 = sadd.s32 %s3258, %s3256
        %s3260 = scalar_lea.vmem %s4, %s3259
      $region52: #{convolutional_block.2} parent=47 // pred_fallthru
        _
      // Predicated region
      $region53: #{convolutional_block.2} parent=47 // pred_check
        %p3261 = pneg %p198
      $region54: #{convolutional_block.2} parent=47 // pred_check_branch
        %3263 = sbr.rel (%p3261) target = $region56
      $region55: #{convolutional_block.2} parent=47 // pred_region
        %p3264 = scmp.lt.s32.totalorder %s23, 1
        %s3265 = scalar_select %p3264, %s23, 1
        %p3266 = scmp.lt.s32.totalorder %s24, 0
        %s3267 = scalar_select %p3266, %s24, 0
        %s3268 = sadd.s32 %s3267, %s3265
        %s3269 = scalar_lea.vmem %s5, %s3268
      $region56: #{convolutional_block.2} parent=47 // pred_fallthru
        _
    $region48: #{convolutional_block.2} parent=5 // pred_fallthru
      _
  $region6: #{convolutional_block.2} parent=0 // loop_footer
    %s16 = sadd.s32 1, %s12
  $region7: #{convolutional_block.2} parent=0 // loop_footer_branch
    %11 = sbr.rel target = $region3
  $region8: #{convolutional_block.2} parent=0 // loop_exit
    _

// kernel: convolutional_block.3
$region0: #{convolutional_block.3}
  #allocation0 [shape = 'u32[]', space=smem, size = 0x4, offset = 0x4, fixed_abs, tag = 'smem constant byte address 0x4 - core index']
  #allocation1 [shape = 'u32[144,128]{1,0:T(1,128)}', space=vmem, size = 0x12000, scoped, tag = 'internal scratch']
  %s0 = inlined_call_operand.vmem [shape: bf16[2,18,18,4], index: 0, kind: input, shape index: {}, may-alias: {0,1,2}]
  %s1 = inlined_call_operand.vmem [shape: bf16[2,18,18,4], index: 1, kind: input, shape index: {}, may-alias: {0,1,2}]
  %s2 = inlined_call_operand.vmem [shape: bf16[2,18,18,4], index: 2, kind: input, shape index: {}, may-alias: {0,1,2}]
  %s3 = inlined_call_operand.vmem [shape: bf16[3,3,4,128], index: 3, kind: input, shape index: {}]
  %s4 = inlined_call_operand.vmem [shape: f32[1,8], index: 4, kind: input, shape index: {}]
  %s5 = inlined_call_operand.vmem [shape: f32[1,8], index: 5, kind: input, shape index: {}]
  %s6 = inlined_call_operand.vmem [shape: f32[2,256,8], index: 6, kind: output, shape index: {}]
  %s7 = sld [smem:[#allocation0]]
  $region57: #{convolutional_block.3} parent=0
    _
  %s9 = ssub.s32 1, %s7
  %s10 = scalar_select 0, %s9, %s7
  loop: start=0, step=1, limit=4
  $region2: #{convolutional_block.3} parent=0 // loop_pre_header
    _
  $region3: #{convolutional_block.3} parent=0 // loop_header
    %s12 = sphi 0, %s16
    %p13 = scmp.ge.s32.totalorder %s12, 4
    %s19 = sphi 0, %s31
    %s20 = sphi 0, %s27
    %s21 = sphi 0, %s19
    %s22 = sphi 0, %s20
    %s23 = sphi 0, %s21
    %s24 = sphi 0, %s22
    %s36 = sphi 0, %s38
    %s39 = sphi 0, %s36
    %s40 = sphi 0, %s39
    %s56 = sphi 0, %s40
    %s68 = sphi 0, %s70
    %s71 = sphi 0, %s68
    %s72 = sphi 0, %s71
    %s88 = sphi 0, %s72
    %s102 = sphi 0, %s104
    %s105 = sphi 0, %s102
    %s106 = sphi 0, %s105
    %s122 = sphi 0, %s106
    %s126 = sphi 0, %s126
    %s128 = sphi 0, %s126
    %s129 = sphi 0, %s128
    %s143 = sphi 0, %s129
    %s147 = sphi 0, %s147
    %s149 = sphi 0, %s147
    %s150 = sphi 0, %s149
    %s164 = sphi 0, %s150
    %s168 = sphi 0, %s168
    %s170 = sphi 0, %s168
    %s171 = sphi 0, %s170
    %s185 = sphi 0, %s171
    %s193 = sphi 0, %s195
    %s196 = sphi 0, %s193
    %s197 = sphi 0, %s196
    %s213 = sphi 0, %s197
  $region4: #{convolutional_block.3} parent=0 // loop_header_branch
    %15 = sbr.rel (%p13) target = $region8
  $region5: #{convolutional_block.3} parent=0 // loop_body
    %s17 = ssub.s32 %s12, 1
    %s18 = ssub.s32 %s12, 2
    %s25 = sadd.s32 1, %s20
    %p26 = scmp.ge.s32.totalorder %s25, 1
    %s27 = scalar_select %p26, 0, %s25
    %s28 = sadd.s32 1, %s19
    %s29 = scalar_select %p26, %s28, %s19
    %p30 = scmp.ge.s32.totalorder %s29, 2
    %s31 = scalar_select %p30, 0, %s29
    %s32 = ssub.s32 %s19, %s31
    %s33 = ssub.s32 %s20, %s27
    %s34 = sor.u32 %s32, %s33
    %p35 = scmp.eq.s32.totalorder %s34, 0
    %s37 = sadd.s32 %s36, 1
    %s38 = scalar_select %p35, %s36, %s37
    %p41 = pneg %p35
    %p42 = scmp.eq.s32.totalorder %s12, 1
    %p43 = por %p41, %p42
    %p44 = scmp.ne.s32.totalorder %s36, %s39
    %p45 = scmp.eq.s32.totalorder %s12, 0
    %p46 = por %p44, %p45
    %p47 = scmp.ne.s32.totalorder %s36, %s39
    %p48 = scmp.eq.s32.totalorder %s17, 1
    %p49 = por %p47, %p48
    %p50 = scmp.ne.s32.totalorder %s39, %s40
    %p51 = scmp.eq.s32.totalorder %s17, 0
    %p52 = por %p50, %p51
    %p53 = scmp.ne.s32.totalorder %s39, %s40
    %p54 = scmp.eq.s32.totalorder %s18, 1
    %p55 = por %p53, %p54
    %p57 = scmp.ne.s32.totalorder %s40, %s56
    %p58 = scmp.eq.s32.totalorder %s18, 0
    %p59 = por %p57, %p58
    %s60 = sadd.s32 %s20, 1
    %s61 = smul.u32 %s60, 16
    %s62 = sadd.s32 %s27, 1
    %s63 = smul.u32 %s62, 16
    %s64 = ssub.s32 %s19, %s31
    %s65 = ssub.s32 %s61, %s63
    %s66 = sor.u32 %s64, %s65
    %p67 = scmp.eq.s32.totalorder %s66, 0
    %s69 = sadd.s32 %s68, 1
    %s70 = scalar_select %p67, %s68, %s69
    %p73 = pneg %p67
    %p74 = scmp.eq.s32.totalorder %s12, 1
    %p75 = por %p73, %p74
    %p76 = scmp.ne.s32.totalorder %s68, %s71
    %p77 = scmp.eq.s32.totalorder %s12, 0
    %p78 = por %p76, %p77
    %p79 = scmp.ne.s32.totalorder %s68, %s71
    %p80 = scmp.eq.s32.totalorder %s17, 1
    %p81 = por %p79, %p80
    %p82 = scmp.ne.s32.totalorder %s71, %s72
    %p83 = scmp.eq.s32.totalorder %s17, 0
    %p84 = por %p82, %p83
    %p85 = scmp.ne.s32.totalorder %s71, %s72
    %p86 = scmp.eq.s32.totalorder %s18, 1
    %p87 = por %p85, %p86
    %p89 = scmp.ne.s32.totalorder %s72, %s88
    %p90 = scmp.eq.s32.totalorder %s18, 0
    %p91 = por %p89, %p90
    %s92 = sadd.s32 %s20, 1
    %s93 = smul.u32 %s92, 16
    %s94 = sadd.s32 %s93, 1
    %s95 = sadd.s32 %s27, 1
    %s96 = smul.u32 %s95, 16
    %s97 = sadd.s32 %s96, 1
    %s98 = ssub.s32 %s19, %s31
    %s99 = ssub.s32 %s94, %s97
    %s100 = sor.u32 %s98, %s99
    %p101 = scmp.eq.s32.totalorder %s100, 0
    %s103 = sadd.s32 %s102, 1
    %s104 = scalar_select %p101, %s102, %s103
    %p107 = pneg %p101
    %p108 = scmp.eq.s32.totalorder %s12, 1
    %p109 = por %p107, %p108
    %p110 = scmp.ne.s32.totalorder %s102, %s105
    %p111 = scmp.eq.s32.totalorder %s12, 0
    %p112 = por %p110, %p111
    %p113 = scmp.ne.s32.totalorder %s102, %s105
    %p114 = scmp.eq.s32.totalorder %s17, 1
    %p115 = por %p113, %p114
    %p116 = scmp.ne.s32.totalorder %s105, %s106
    %p117 = scmp.eq.s32.totalorder %s17, 0
    %p118 = por %p116, %p117
    %p119 = scmp.ne.s32.totalorder %s105, %s106
    %p120 = scmp.eq.s32.totalorder %s18, 1
    %p121 = por %p119, %p120
    %p123 = scmp.ne.s32.totalorder %s106, %s122
    %p124 = scmp.eq.s32.totalorder %s18, 0
    %p125 = por %p123, %p124
    %s127 = sadd.s32 %s126, 1
    %p130 = scmp.eq.s32.totalorder %s12, 1
    %p131 = scmp.ne.s32.totalorder %s126, %s128
    %p132 = scmp.eq.s32.totalorder %s12, 0
    %p133 = por %p131, %p132
    %p134 = scmp.ne.s32.totalorder %s126, %s128
    %p135 = scmp.eq.s32.totalorder %s17, 1
    %p136 = por %p134, %p135
    %p137 = scmp.ne.s32.totalorder %s128, %s129
    %p138 = scmp.eq.s32.totalorder %s17, 0
    %p139 = por %p137, %p138
    %p140 = scmp.ne.s32.totalorder %s128, %s129
    %p141 = scmp.eq.s32.totalorder %s18, 1
    %p142 = por %p140, %p141
    %p144 = scmp.ne.s32.totalorder %s129, %s143
    %p145 = scmp.eq.s32.totalorder %s18, 0
    %p146 = por %p144, %p145
    %s148 = sadd.s32 %s147, 1
    %p151 = scmp.eq.s32.totalorder %s12, 1
    %p152 = scmp.ne.s32.totalorder %s147, %s149
    %p153 = scmp.eq.s32.totalorder %s12, 0
    %p154 = por %p152, %p153
    %p155 = scmp.ne.s32.totalorder %s147, %s149
    %p156 = scmp.eq.s32.totalorder %s17, 1
    %p157 = por %p155, %p156
    %p158 = scmp.ne.s32.totalorder %s149, %s150
    %p159 = scmp.eq.s32.totalorder %s17, 0
    %p160 = por %p158, %p159
    %p161 = scmp.ne.s32.totalorder %s149, %s150
    %p162 = scmp.eq.s32.totalorder %s18, 1
    %p163 = por %p161, %p162
    %p165 = scmp.ne.s32.totalorder %s150, %s164
    %p166 = scmp.eq.s32.totalorder %s18, 0
    %p167 = por %p165, %p166
    %s169 = sadd.s32 %s168, 1
    %p172 = scmp.eq.s32.totalorder %s12, 1
    %p173 = scmp.ne.s32.totalorder %s168, %s170
    %p174 = scmp.eq.s32.totalorder %s12, 0
    %p175 = por %p173, %p174
    %p176 = scmp.ne.s32.totalorder %s168, %s170
    %p177 = scmp.eq.s32.totalorder %s17, 1
    %p178 = por %p176, %p177
    %p179 = scmp.ne.s32.totalorder %s170, %s171
    %p180 = scmp.eq.s32.totalorder %s17, 0
    %p181 = por %p179, %p180
    %p182 = scmp.ne.s32.totalorder %s170, %s171
    %p183 = scmp.eq.s32.totalorder %s18, 1
    %p184 = por %p182, %p183
    %p186 = scmp.ne.s32.totalorder %s171, %s185
    %p187 = scmp.eq.s32.totalorder %s18, 0
    %p188 = por %p186, %p187
    %s189 = ssub.s32 %s19, %s31
    %s190 = ssub.s32 %s20, %s27
    %s191 = sor.u32 %s189, %s190
    %p192 = scmp.eq.s32.totalorder %s191, 0
    %s194 = sadd.s32 %s193, 1
    %s195 = scalar_select %p192, %s193, %s194
    %p198 = pneg %p192
    %p199 = scmp.eq.s32.totalorder %s12, 1
    %p200 = por %p198, %p199
    %p201 = scmp.ne.s32.totalorder %s193, %s196
    %p202 = scmp.eq.s32.totalorder %s12, 0
    %p203 = por %p201, %p202
    %p204 = scmp.ne.s32.totalorder %s193, %s196
    %p205 = scmp.eq.s32.totalorder %s17, 1
    %p206 = por %p204, %p205
    %p207 = scmp.ne.s32.totalorder %s196, %s197
    %p208 = scmp.eq.s32.totalorder %s17, 0
    %p209 = por %p207, %p208
    %p210 = scmp.ne.s32.totalorder %s196, %s197
    %p211 = scmp.eq.s32.totalorder %s18, 1
    %p212 = por %p210, %p211
    %p214 = scmp.ne.s32.totalorder %s197, %s213
    %p215 = scmp.eq.s32.totalorder %s18, 0
    %p216 = por %p214, %p215
    %p217 = scmp.le.s32.totalorder 1, %s12
    %p218 = scmp.lt.s32.totalorder %s12, 3
    %p219 = pnand %p217, %p218
    %p220 = pneg %p219
    // Predicated region
    $region9: #{convolutional_block.3} parent=5 // pred_check
      _
    $region10: #{convolutional_block.3} parent=5 // pred_check_branch
      %222 = sbr.rel (%p219) target = $region12
    $region11: #{convolutional_block.3} parent=5 // pred_region
      %s223 = ssub.s32 %s12, 1
      // Predicated region
      $region13: #{convolutional_block.3} parent=11 // pred_check
        %p224 = pneg %p139
      $region14: #{convolutional_block.3} parent=11 // pred_check_branch
        %226 = sbr.rel (%p224) target = $region16
      $region15: #{convolutional_block.3} parent=11 // pred_region
        _
      $region16: #{convolutional_block.3} parent=11 // pred_fallthru
        _
      // Predicated region
      $region17: #{convolutional_block.3} parent=11 // pred_check
        %p227 = pneg %p160
      $region18: #{convolutional_block.3} parent=11 // pred_check_branch
        %229 = sbr.rel (%p227) target = $region20
      $region19: #{convolutional_block.3} parent=11 // pred_region
        _
      $region20: #{convolutional_block.3} parent=11 // pred_fallthru
        _
      // Predicated region
      $region21: #{convolutional_block.3} parent=11 // pred_check
        %p230 = pneg %p181
      $region22: #{convolutional_block.3} parent=11 // pred_check_branch
        %232 = sbr.rel (%p230) target = $region24
      $region23: #{convolutional_block.3} parent=11 // pred_region
        _
      $region24: #{convolutional_block.3} parent=11 // pred_fallthru
        _
    $region12: #{convolutional_block.3} parent=5 // pred_fallthru
      _
    %p233 = scmp.lt.s32.totalorder %s12, 2
    // Predicated region
    $region25: #{convolutional_block.3} parent=5 // pred_check
      %p234 = pneg %p233
    $region26: #{convolutional_block.3} parent=5 // pred_check_branch
      %236 = sbr.rel (%p234) target = $region28
    $region27: #{convolutional_block.3} parent=5 // pred_region
      // Predicated region
      $region29: #{convolutional_block.3} parent=27 // pred_check
        %p237 = pneg %p46
      $region30: #{convolutional_block.3} parent=27 // pred_check_branch
        %239 = sbr.rel (%p237) target = $region32
      $region31: #{convolutional_block.3} parent=27 // pred_region
        %s240 = smul.u32 16, %s20
        %s241 = ssub.s32 18, %s240
        %p242 = scmp.lt.s32.totalorder %s241, 16
        %s243 = scalar_select %p242, %s241, 16
        %s244 = smul.u32 64, %s243
        %s245 = smul.u32 %s244, 3
        %p246 = scmp.lt.s32.totalorder %s19, 1
        %s247 = scalar_select %p246, %s19, 1
        %p248 = scmp.lt.s32.totalorder %s240, 17
        %s249 = scalar_select %p248, %s240, 17
        %s250 = smul.addr %s249, 3
        %s251 = smul.addr %s247, 54
        %s252 = sadd.s32 %s250, %s251
        %s253 = smul.addr %s252, 4
        %s254 = scalar_lea.vmem %s0, %s253
        %s255 = smul.u32 16, %s20
        %s256 = ssub.s32 18, %s255
        %p257 = scmp.lt.s32.totalorder %s256, 16
        %s258 = scalar_select %p257, %s256, 16
        %s259 = smul.u32 64, %s258
        %s260 = smul.u32 %s259, 3
      $region32: #{convolutional_block.3} parent=27 // pred_fallthru
        _
      // Predicated region
      $region33: #{convolutional_block.3} parent=27 // pred_check
        %p261 = pneg %p78
      $region34: #{convolutional_block.3} parent=27 // pred_check_branch
        %263 = sbr.rel (%p261) target = $region36
      $region35: #{convolutional_block.3} parent=27 // pred_region
        %s264 = sadd.s32 %s20, 1
        %s265 = smul.u32 %s264, 16
        %p266 = scmp.lt.s32.totalorder %s19, 1
        %s267 = scalar_select %p266, %s19, 1
        %p268 = scmp.lt.s32.totalorder %s265, 17
        %s269 = scalar_select %p268, %s265, 17
        %s270 = smul.addr %s269, 3
        %s271 = smul.addr %s267, 54
        %s272 = sadd.s32 %s270, %s271
        %s273 = smul.addr %s272, 4
        %s274 = scalar_lea.vmem %s1, %s273
        %s275 = sadd.s32 %s20, 1
        %s276 = smul.u32 %s275, 16
      $region36: #{convolutional_block.3} parent=27 // pred_fallthru
        _
      // Predicated region
      $region37: #{convolutional_block.3} parent=27 // pred_check
        %p277 = pneg %p112
      $region38: #{convolutional_block.3} parent=27 // pred_check_branch
        %279 = sbr.rel (%p277) target = $region40
      $region39: #{convolutional_block.3} parent=27 // pred_region
        %s280 = sadd.s32 %s20, 1
        %s281 = smul.u32 %s280, 16
        %s282 = sadd.s32 %s281, 1
        %p283 = scmp.lt.s32.totalorder %s19, 1
        %s284 = scalar_select %p283, %s19, 1
        %p285 = scmp.lt.s32.totalorder %s282, 17
        %s286 = scalar_select %p285, %s282, 17
        %s287 = smul.addr %s286, 3
        %s288 = smul.addr %s284, 54
        %s289 = sadd.s32 %s287, %s288
        %s290 = smul.addr %s289, 4
        %s291 = scalar_lea.vmem %s2, %s290
        %s292 = sadd.s32 %s20, 1
        %s293 = smul.u32 %s292, 16
        %s294 = sadd.s32 %s293, 1
      $region40: #{convolutional_block.3} parent=27 // pred_fallthru
        _
    $region28: #{convolutional_block.3} parent=5 // pred_fallthru
      _
    %p295 = scmp.le.s32.totalorder 1, %s12
    %p296 = scmp.lt.s32.totalorder %s12, 3
    %p297 = pnand %p295, %p296
    %p298 = pneg %p297
    // Predicated region
    $region41: #{convolutional_block.3} parent=5 // pred_check
      _
    $region42: #{convolutional_block.3} parent=5 // pred_check_branch
      %300 = sbr.rel (%p297) target = $region44
    $region43: #{convolutional_block.3} parent=5 // pred_region
      %s301 = ssub.s32 %s12, 1
      %s302 = smul.u32 16, %s22
      %s303 = ssub.s32 18, %s302
      %p304 = scmp.lt.s32.totalorder %s303, 16
      %s305 = scalar_select %p304, %s303, 16
      %s306 = smul.u32 64, %s305
      %s307 = smul.u32 %s306, 3
      %p308 = scmp.lt.s32.totalorder %s21, 1
      %s309 = scalar_select %p308, %s21, 1
      %p310 = scmp.lt.s32.totalorder %s302, 17
      %s311 = scalar_select %p310, %s302, 17
      %s312 = smul.addr %s311, 3
      %s313 = smul.addr %s309, 54
      %s314 = sadd.s32 %s312, %s313
      %s315 = smul.addr %s314, 4
      %s316 = scalar_lea.vmem %s0, %s315
      %p317 = pneg %p52
      %p318 = pneg %p49
      %s319 = sadd.s32 %s22, 1
      %s320 = smul.u32 %s319, 16
      %p321 = scmp.lt.s32.totalorder %s21, 1
      %s322 = scalar_select %p321, %s21, 1
      %p323 = scmp.lt.s32.totalorder %s320, 17
      %s324 = scalar_select %p323, %s320, 17
      %s325 = smul.addr %s324, 3
      %s326 = smul.addr %s322, 54
      %s327 = sadd.s32 %s325, %s326
      %s328 = smul.addr %s327, 4
      %s329 = scalar_lea.vmem %s1, %s328
      %p330 = pneg %p84
      %p331 = pneg %p81
      %s332 = sadd.s32 %s22, 1
      %s333 = smul.u32 %s332, 16
      %s334 = sadd.s32 %s333, 1
      %p335 = scmp.lt.s32.totalorder %s21, 1
      %s336 = scalar_select %p335, %s21, 1
      %p337 = scmp.lt.s32.totalorder %s334, 17
      %s338 = scalar_select %p337, %s334, 17
      %s339 = smul.addr %s338, 3
      %s340 = smul.addr %s336, 54
      %s341 = sadd.s32 %s339, %s340
      %s342 = smul.addr %s341, 4
      %s343 = scalar_lea.vmem %s2, %s342
      %p344 = pneg %p118
      %p345 = pneg %p115
      %p346 = pneg %p139
      %p347 = pneg %p136
      %p348 = pneg %p160
      %p349 = pneg %p157
      %p350 = pneg %p181
      %p351 = pneg %p178
      %p352 = pneg %p209
      %p353 = pneg %p206
      %s354 = smul.u32 32, %s22
      %p355 = scmp.lt.s32.totalorder %s21, 1
      %s356 = scalar_select %p355, %s21, 1
      %p357 = scmp.lt.s32.totalorder %s354, 31
      %s358 = scalar_select %p357, %s354, 31
      %s359 = smul.addr %s356, 32
      %s360 = sadd.s32 %s358, %s359
      %s361 = smul.addr %s360, 8
      %s362 = scalar_lea.vmem %s6, %s361
      %s363 = smul.u32 16, %s22
      %s364 = ssub.s32 18, %s363
      %p365 = scmp.lt.s32.totalorder %s364, 16
      %s366 = scalar_select %p365, %s364, 16
      %s367 = smul.u32 64, %s366
      %s368 = smul.u32 %s367, 3
      %p369 = scmp.lt.s32.totalorder %s21, 1
      %s370 = scalar_select %p369, %s21, 1
      %p371 = scmp.lt.s32.totalorder %s363, 17
      %s372 = scalar_select %p371, %s363, 17
      %s373 = smul.addr %s372, 3
      %s374 = smul.addr %s370, 54
      %s375 = sadd.s32 %s373, %s374
      %s376 = smul.addr %s375, 4
      %s377 = scalar_lea.vmem %s0, %s376
      %s378 = smul.u32 16, %s22
      %s379 = ssub.s32 18, %s378
      %p380 = scmp.lt.s32.totalorder %s379, 16
      %s381 = scalar_select %p380, %s379, 16
      %s382 = smul.u32 64, %s381
      %s383 = smul.u32 %s382, 3
      %s384 = sadd.s32 %s22, 1
      %s385 = smul.u32 %s384, 16
      %p386 = scmp.lt.s32.totalorder %s21, 1
      %s387 = scalar_select %p386, %s21, 1
      %p388 = scmp.lt.s32.totalorder %s385, 17
      %s389 = scalar_select %p388, %s385, 17
      %s390 = smul.addr %s389, 3
      %s391 = smul.addr %s387, 54
      %s392 = sadd.s32 %s390, %s391
      %s393 = smul.addr %s392, 4
      %s394 = scalar_lea.vmem %s1, %s393
      %s395 = sadd.s32 %s22, 1
      %s396 = smul.u32 %s395, 16
      %s397 = sadd.s32 %s22, 1
      %s398 = smul.u32 %s397, 16
      %s399 = sadd.s32 %s398, 1
      %p400 = scmp.lt.s32.totalorder %s21, 1
      %s401 = scalar_select %p400, %s21, 1
      %p402 = scmp.lt.s32.totalorder %s399, 17
      %s403 = scalar_select %p402, %s399, 17
      %s404 = smul.addr %s403, 3
      %s405 = smul.addr %s401, 54
      %s406 = sadd.s32 %s404, %s405
      %s407 = smul.addr %s406, 4
      %s408 = scalar_lea.vmem %s2, %s407
      %s409 = sadd.s32 %s22, 1
      %s410 = smul.u32 %s409, 16
      %s411 = sadd.s32 %s410, 1
      %s412 = smul.u32 32, %s22
      %p413 = scmp.lt.s32.totalorder %s21, 1
      %s414 = scalar_select %p413, %s21, 1
      %p415 = scmp.lt.s32.totalorder %s412, 31
      %s416 = scalar_select %p415, %s412, 31
      %s417 = smul.addr %s414, 32
      %s418 = sadd.s32 %s416, %s417
      %s419 = smul.addr %s418, 8
      %s420 = scalar_lea.vmem %s6, %s419
      %s421 = smul.u32 32, %s22
      %v423 = vld [vmem:[%s377] sm:$0xf]
      %v424 = vld [vmem:[%s377 + $0x4] sm:$0xf]
      %v425 = vld [vmem:[%s377 + $0x8] sm:$0x1]
      %v426 = vld [vmem:[%s377 + $0xc] sm:$0xf]
      %v427 = vld [vmem:[%s377 + $0x10] sm:$0xf]
      %v428 = vld [vmem:[%s377 + $0x14] sm:$0x1]
      %v429 = vld [vmem:[%s377 + $0x18] sm:$0xf]
      %v430 = vld [vmem:[%s377 + $0x1c] sm:$0xf]
      %v431 = vld [vmem:[%s377 + $0x20] sm:$0x1]
      %v432 = vld [vmem:[%s377 + $0x24] sm:$0xf]
      %v433 = vld [vmem:[%s377 + $0x28] sm:$0xf]
      %v434 = vld [vmem:[%s377 + $0x2c] sm:$0x1]
      %v435 = vld [vmem:[%s377 + $0x30] sm:$0xf]
      %v436 = vld [vmem:[%s377 + $0x34] sm:$0xf]
      %v437 = vld [vmem:[%s377 + $0x38] sm:$0x1]
      %v438 = vld [vmem:[%s377 + $0x3c] sm:$0xf]
      %v439 = vld [vmem:[%s377 + $0x40] sm:$0xf]
      %v440 = vld [vmem:[%s377 + $0x44] sm:$0x1]
      %v441 = vld [vmem:[%s377 + $0x48] sm:$0xf]
      %v442 = vld [vmem:[%s377 + $0x4c] sm:$0xf]
      %v443 = vld [vmem:[%s377 + $0x50] sm:$0x1]
      %v444 = vld [vmem:[%s377 + $0x54] sm:$0xf]
      %v445 = vld [vmem:[%s377 + $0x58] sm:$0xf]
      %v446 = vld [vmem:[%s377 + $0x5c] sm:$0x1]
      %v447 = vld [vmem:[%s377 + $0x60] sm:$0xf]
      %v448 = vld [vmem:[%s377 + $0x64] sm:$0xf]
      %v449 = vld [vmem:[%s377 + $0x68] sm:$0x1]
      %v450 = vld [vmem:[%s377 + $0x6c] sm:$0xf]
      %v451 = vld [vmem:[%s377 + $0x70] sm:$0xf]
      %v452 = vld [vmem:[%s377 + $0x74] sm:$0x1]
      %v453 = vld [vmem:[%s377 + $0x78] sm:$0xf]
      %v454 = vld [vmem:[%s377 + $0x7c] sm:$0xf]
      %v455 = vld [vmem:[%s377 + $0x80] sm:$0x1]
      %v456 = vld [vmem:[%s377 + $0x84] sm:$0xf]
      %v457 = vld [vmem:[%s377 + $0x88] sm:$0xf]
      %v458 = vld [vmem:[%s377 + $0x8c] sm:$0x1]
      %v459 = vld [vmem:[%s377 + $0x90] sm:$0xf]
      %v460 = vld [vmem:[%s377 + $0x94] sm:$0xf]
      %v461 = vld [vmem:[%s377 + $0x98] sm:$0x1]
      %v462 = vld [vmem:[%s377 + $0x9c] sm:$0xf]
      %v463 = vld [vmem:[%s377 + $0xa0] sm:$0xf]
      %v464 = vld [vmem:[%s377 + $0xa4] sm:$0x1]
      %v465 = vld [vmem:[%s377 + $0xa8] sm:$0xf]
      %v466 = vld [vmem:[%s377 + $0xac] sm:$0xf]
      %v467 = vld [vmem:[%s377 + $0xb0] sm:$0x1]
      %v468 = vld [vmem:[%s377 + $0xb4] sm:$0xf]
      %v469 = vld [vmem:[%s377 + $0xb8] sm:$0xf]
      %v470 = vld [vmem:[%s377 + $0xbc] sm:$0x1]
      %v471 = vld [vmem:[%s394] sm:$0xf]
      %v472 = vld [vmem:[%s394 + $0x4] sm:$0xf]
      %v473 = vld [vmem:[%s394 + $0x8] sm:$0x1]
      %v474 = vld [vmem:[%s408] sm:$0xf]
      %v475 = vld [vmem:[%s408 + $0x4] sm:$0xf]
      %v476 = vld [vmem:[%s408 + $0x8] sm:$0x1]
      %v477 = vld [vmem:[%s3] sm:$0x3]
      %vm478 = vsmask.f32 3328
      %vm479 = vsmask.f32 7440
      %vm480 = vmor %vm478, %vm479
      %v482 = vshrl.u32 %v423, 16
      %v484 = vrot.slane %v482, 4
      %v485 = vshll.u32 %v423, 16
      %v487 = vrot.slane %v485, 5
      %v488 = vor.u32 %v484, %v487
      %v489 = vrot.slane %v488, 4
      %v491 = vshll.u32 %v424, 16
      %v493 = vrot.slane %v491, 5
      %v494 = vsel %vm480, %v489, %v493
      %v495 = vshrl.u32 %v424, 16
      %v497 = vrot.slane %v495, 4
      %v498 = vor.u32 %v497, %v493
      %v499 = vrot.slane %v498, 4
      %v501 = vshll.u32 %v425, 16
      %v503 = vrot.slane %v501, 5
      %v504 = vsel %vm480, %v499, %v503
      %v506 = vshrl.u32 %v426, 16
      %v508 = vrot.slane %v506, 4
      %v509 = vshll.u32 %v426, 16
      %v511 = vrot.slane %v509, 5
      %v512 = vor.u32 %v508, %v511
      %v513 = vrot.slane %v512, 4
      %v515 = vshll.u32 %v427, 16
      %v517 = vrot.slane %v515, 5
      %v518 = vsel %vm480, %v513, %v517
      %v519 = vshrl.u32 %v427, 16
      %v521 = vrot.slane %v519, 4
      %v522 = vor.u32 %v521, %v517
      %v523 = vrot.slane %v522, 4
      %v525 = vshll.u32 %v428, 16
      %v527 = vrot.slane %v525, 5
      %v528 = vsel %vm480, %v523, %v527
      %v530 = vshrl.u32 %v429, 16
      %v532 = vrot.slane %v530, 4
      %v533 = vshll.u32 %v429, 16
      %v535 = vrot.slane %v533, 5
      %v536 = vor.u32 %v532, %v535
      %v537 = vrot.slane %v536, 4
      %v539 = vshll.u32 %v430, 16
      %v541 = vrot.slane %v539, 5
      %v542 = vsel %vm480, %v537, %v541
      %v543 = vshrl.u32 %v430, 16
      %v545 = vrot.slane %v543, 4
      %v546 = vor.u32 %v545, %v541
      %v547 = vrot.slane %v546, 4
      %v549 = vshll.u32 %v431, 16
      %v551 = vrot.slane %v549, 5
      %v552 = vsel %vm480, %v547, %v551
      %v554 = vshrl.u32 %v432, 16
      %v556 = vrot.slane %v554, 4
      %v557 = vshll.u32 %v432, 16
      %v559 = vrot.slane %v557, 5
      %v560 = vor.u32 %v556, %v559
      %v561 = vrot.slane %v560, 4
      %v563 = vshll.u32 %v433, 16
      %v565 = vrot.slane %v563, 5
      %v566 = vsel %vm480, %v561, %v565
      %v567 = vshrl.u32 %v433, 16
      %v569 = vrot.slane %v567, 4
      %v570 = vor.u32 %v569, %v565
      %v571 = vrot.slane %v570, 4
      %v573 = vshll.u32 %v434, 16
      %v575 = vrot.slane %v573, 5
      %v576 = vsel %vm480, %v571, %v575
      %v578 = vshrl.u32 %v435, 16
      %v580 = vrot.slane %v578, 4
      %v581 = vshll.u32 %v435, 16
      %v583 = vrot.slane %v581, 5
      %v584 = vor.u32 %v580, %v583
      %v585 = vrot.slane %v584, 4
      %v587 = vshll.u32 %v436, 16
      %v589 = vrot.slane %v587, 5
      %v590 = vsel %vm480, %v585, %v589
      %v591 = vshrl.u32 %v436, 16
      %v593 = vrot.slane %v591, 4
      %v594 = vor.u32 %v593, %v589
      %v595 = vrot.slane %v594, 4
      %v597 = vshll.u32 %v437, 16
      %v599 = vrot.slane %v597, 5
      %v600 = vsel %vm480, %v595, %v599
      %v602 = vshrl.u32 %v438, 16
      %v604 = vrot.slane %v602, 4
      %v605 = vshll.u32 %v438, 16
      %v607 = vrot.slane %v605, 5
      %v608 = vor.u32 %v604, %v607
      %v609 = vrot.slane %v608, 4
      %v611 = vshll.u32 %v439, 16
      %v613 = vrot.slane %v611, 5
      %v614 = vsel %vm480, %v609, %v613
      %v615 = vshrl.u32 %v439, 16
      %v617 = vrot.slane %v615, 4
      %v618 = vor.u32 %v617, %v613
      %v619 = vrot.slane %v618, 4
      %v621 = vshll.u32 %v440, 16
      %v623 = vrot.slane %v621, 5
      %v624 = vsel %vm480, %v619, %v623
      %v626 = vshrl.u32 %v441, 16
      %v628 = vrot.slane %v626, 4
      %v629 = vshll.u32 %v441, 16
      %v631 = vrot.slane %v629, 5
      %v632 = vor.u32 %v628, %v631
      %v633 = vrot.slane %v632, 4
      %v635 = vshll.u32 %v442, 16
      %v637 = vrot.slane %v635, 5
      %v638 = vsel %vm480, %v633, %v637
      %v639 = vshrl.u32 %v442, 16
      %v641 = vrot.slane %v639, 4
      %v642 = vor.u32 %v641, %v637
      %v643 = vrot.slane %v642, 4
      %v645 = vshll.u32 %v443, 16
      %v647 = vrot.slane %v645, 5
      %v648 = vsel %vm480, %v643, %v647
      %v650 = vshrl.u32 %v444, 16
      %v652 = vrot.slane %v650, 4
      %v653 = vshll.u32 %v444, 16
      %v655 = vrot.slane %v653, 5
      %v656 = vor.u32 %v652, %v655
      %v657 = vrot.slane %v656, 4
      %v659 = vshll.u32 %v445, 16
      %v661 = vrot.slane %v659, 5
      %v662 = vsel %vm480, %v657, %v661
      %v663 = vshrl.u32 %v445, 16
      %v665 = vrot.slane %v663, 4
      %v666 = vor.u32 %v665, %v661
      %v667 = vrot.slane %v666, 4
      %v669 = vshll.u32 %v446, 16
      %v671 = vrot.slane %v669, 5
      %v672 = vsel %vm480, %v667, %v671
      %v674 = vshrl.u32 %v447, 16
      %v676 = vrot.slane %v674, 4
      %v677 = vshll.u32 %v447, 16
      %v679 = vrot.slane %v677, 5
      %v680 = vor.u32 %v676, %v679
      %v681 = vrot.slane %v680, 4
      %v683 = vshll.u32 %v448, 16
      %v685 = vrot.slane %v683, 5
      %v686 = vsel %vm480, %v681, %v685
      %v687 = vshrl.u32 %v448, 16
      %v689 = vrot.slane %v687, 4
      %v690 = vor.u32 %v689, %v685
      %v691 = vrot.slane %v690, 4
      %v693 = vshll.u32 %v449, 16
      %v695 = vrot.slane %v693, 5
      %v696 = vsel %vm480, %v691, %v695
      %v698 = vshrl.u32 %v450, 16
      %v700 = vrot.slane %v698, 4
      %v701 = vshll.u32 %v450, 16
      %v703 = vrot.slane %v701, 5
      %v704 = vor.u32 %v700, %v703
      %v705 = vrot.slane %v704, 4
      %v707 = vshll.u32 %v451, 16
      %v709 = vrot.slane %v707, 5
      %v710 = vsel %vm480, %v705, %v709
      %v711 = vshrl.u32 %v451, 16
      %v713 = vrot.slane %v711, 4
      %v714 = vor.u32 %v713, %v709
      %v715 = vrot.slane %v714, 4
      %v717 = vshll.u32 %v452, 16
      %v719 = vrot.slane %v717, 5
      %v720 = vsel %vm480, %v715, %v719
      %v722 = vshrl.u32 %v453, 16
      %v724 = vrot.slane %v722, 4
      %v725 = vshll.u32 %v453, 16
      %v727 = vrot.slane %v725, 5
      %v728 = vor.u32 %v724, %v727
      %v729 = vrot.slane %v728, 4
      %v731 = vshll.u32 %v454, 16
      %v733 = vrot.slane %v731, 5
      %v734 = vsel %vm480, %v729, %v733
      %v735 = vshrl.u32 %v454, 16
      %v737 = vrot.slane %v735, 4
      %v738 = vor.u32 %v737, %v733
      %v739 = vrot.slane %v738, 4
      %v741 = vshll.u32 %v455, 16
      %v743 = vrot.slane %v741, 5
      %v744 = vsel %vm480, %v739, %v743
      %v746 = vshrl.u32 %v456, 16
      %v748 = vrot.slane %v746, 4
      %v749 = vshll.u32 %v456, 16
      %v751 = vrot.slane %v749, 5
      %v752 = vor.u32 %v748, %v751
      %v753 = vrot.slane %v752, 4
      %v755 = vshll.u32 %v457, 16
      %v757 = vrot.slane %v755, 5
      %v758 = vsel %vm480, %v753, %v757
      %v759 = vshrl.u32 %v457, 16
      %v761 = vrot.slane %v759, 4
      %v762 = vor.u32 %v761, %v757
      %v763 = vrot.slane %v762, 4
      %v765 = vshll.u32 %v458, 16
      %v767 = vrot.slane %v765, 5
      %v768 = vsel %vm480, %v763, %v767
      %v770 = vshrl.u32 %v459, 16
      %v772 = vrot.slane %v770, 4
      %v773 = vshll.u32 %v459, 16
      %v775 = vrot.slane %v773, 5
      %v776 = vor.u32 %v772, %v775
      %v777 = vrot.slane %v776, 4
      %v779 = vshll.u32 %v460, 16
      %v781 = vrot.slane %v779, 5
      %v782 = vsel %vm480, %v777, %v781
      %v783 = vshrl.u32 %v460, 16
      %v785 = vrot.slane %v783, 4
      %v786 = vor.u32 %v785, %v781
      %v787 = vrot.slane %v786, 4
      %v789 = vshll.u32 %v461, 16
      %v791 = vrot.slane %v789, 5
      %v792 = vsel %vm480, %v787, %v791
      %v794 = vshrl.u32 %v462, 16
      %v796 = vrot.slane %v794, 4
      %v797 = vshll.u32 %v462, 16
      %v799 = vrot.slane %v797, 5
      %v800 = vor.u32 %v796, %v799
      %v801 = vrot.slane %v800, 4
      %v803 = vshll.u32 %v463, 16
      %v805 = vrot.slane %v803, 5
      %v806 = vsel %vm480, %v801, %v805
      %v807 = vshrl.u32 %v463, 16
      %v809 = vrot.slane %v807, 4
      %v810 = vor.u32 %v809, %v805
      %v811 = vrot.slane %v810, 4
      %v813 = vshll.u32 %v464, 16
      %v815 = vrot.slane %v813, 5
      %v816 = vsel %vm480, %v811, %v815
      %v818 = vshrl.u32 %v465, 16
      %v820 = vrot.slane %v818, 4
      %v821 = vshll.u32 %v465, 16
      %v823 = vrot.slane %v821, 5
      %v824 = vor.u32 %v820, %v823
      %v825 = vrot.slane %v824, 4
      %v827 = vshll.u32 %v466, 16
      %v829 = vrot.slane %v827, 5
      %v830 = vsel %vm480, %v825, %v829
      %v831 = vshrl.u32 %v466, 16
      %v833 = vrot.slane %v831, 4
      %v834 = vor.u32 %v833, %v829
      %v835 = vrot.slane %v834, 4
      %v837 = vshll.u32 %v467, 16
      %v839 = vrot.slane %v837, 5
      %v840 = vsel %vm480, %v835, %v839
      %v842 = vshrl.u32 %v468, 16
      %v844 = vrot.slane %v842, 4
      %v845 = vshll.u32 %v468, 16
      %v847 = vrot.slane %v845, 5
      %v848 = vor.u32 %v844, %v847
      %v849 = vrot.slane %v848, 4
      %v851 = vshll.u32 %v469, 16
      %v853 = vrot.slane %v851, 5
      %v854 = vsel %vm480, %v849, %v853
      %v855 = vshrl.u32 %v469, 16
      %v857 = vrot.slane %v855, 4
      %v858 = vor.u32 %v857, %v853
      %v859 = vrot.slane %v858, 4
      %v861 = vshll.u32 %v470, 16
      %v863 = vrot.slane %v861, 5
      %v864 = vsel %vm480, %v859, %v863
      %s865 = scalar_lea.vmem %s3, 2
      %v866 = vld [vmem:[%s865] sm:$0x3]
      %v867 = vunpack.c.l.b16 %v494
      %v868 = vunpack.c.l.b16 %v504
      %v869 = vunpack.c.l.b16 %v518
      %v870 = vunpack.c.l.b16 %v528
      %v871 = vunpack.c.l.b16 %v542
      %v872 = vunpack.c.l.b16 %v552
      %v873 = vunpack.c.l.b16 %v566
      %v874 = vunpack.c.l.b16 %v576
      %v875 = vunpack.c.l.b16 %v590
      %v876 = vunpack.c.l.b16 %v600
      %v877 = vunpack.c.l.b16 %v614
      %v878 = vunpack.c.l.b16 %v624
      %v879 = vunpack.c.l.b16 %v638
      %v880 = vunpack.c.l.b16 %v648
      %v881 = vunpack.c.l.b16 %v662
      %v882 = vunpack.c.l.b16 %v672
      %v883 = vunpack.c.l.b16 %v686
      %v884 = vunpack.c.l.b16 %v696
      %v885 = vunpack.c.l.b16 %v710
      %v886 = vunpack.c.l.b16 %v720
      %v887 = vunpack.c.l.b16 %v734
      %v888 = vunpack.c.l.b16 %v744
      %v889 = vunpack.c.l.b16 %v758
      %v890 = vunpack.c.l.b16 %v768
      %v891 = vunpack.c.l.b16 %v782
      %v892 = vunpack.c.l.b16 %v792
      %v893 = vunpack.c.l.b16 %v806
      %v894 = vunpack.c.l.b16 %v816
      %v895 = vunpack.c.l.b16 %v830
      %v896 = vunpack.c.l.b16 %v840
      %v897 = vunpack.c.l.b16 %v854
      %v898 = vunpack.c.l.b16 %v864
      %v899 = vpack.c.b16 %v868, %v867
      %v900 = vpack.c.b16 %v870, %v869
      %v901 = vpack.c.b16 %v872, %v871
      %v902 = vpack.c.b16 %v874, %v873
      %v903 = vpack.c.b16 %v876, %v875
      %v904 = vpack.c.b16 %v878, %v877
      %v905 = vpack.c.b16 %v880, %v879
      %v906 = vpack.c.b16 %v882, %v881
      %v907 = vpack.c.b16 %v884, %v883
      %v908 = vpack.c.b16 %v886, %v885
      %v909 = vpack.c.b16 %v888, %v887
      %v910 = vpack.c.b16 %v890, %v889
      %v911 = vpack.c.b16 %v892, %v891
      %v912 = vpack.c.b16 %v894, %v893
      %v913 = vpack.c.b16 %v896, %v895
      %v914 = vpack.c.b16 %v898, %v897
      %vm915 = vcmask 31744
      %v917 = vsel %vm915, %v899, 0
      %v920 = vsel %vm915, %v900, 0
      %v923 = vsel %vm915, %v901, 0
      %v926 = vsel %vm915, %v902, 0
      %v929 = vsel %vm915, %v903, 0
      %v932 = vsel %vm915, %v904, 0
      %v935 = vsel %vm915, %v905, 0
      %v938 = vsel %vm915, %v906, 0
      %v941 = vsel %vm915, %v907, 0
      %v944 = vsel %vm915, %v908, 0
      %v947 = vsel %vm915, %v909, 0
      %v950 = vsel %vm915, %v910, 0
      %v953 = vsel %vm915, %v911, 0
      %v956 = vsel %vm915, %v912, 0
      %v959 = vsel %vm915, %v913, 0
      %v962 = vsel %vm915, %v914, 0
      %vm964 = vcmask 1041408
      %v966 = vsel %vm964, %v866, 0
      %968 = vmatprep.subr.bf16.mxu0 0
      %969 = vmatpush1.bf16.msra.mxu0 0
      %970 = vmatprep.subr.bf16.mxu0 0
      %971 = vmatpush1.bf16.msra.mxu0 0
      %972 = vmatprep.subr.bf16.mxu0 0
      %973 = vmatpush1.bf16.msra.mxu0 0
      %974 = vmatprep.subr.bf16.mxu0 0
      %975 = vmatpush1.bf16.msra.mxu0 0
      %976 = vmatprep.subr.bf16.mxu0 0
      %977 = vmatpush1.bf16.msra.mxu0 0
      %978 = vmatprep.subr.bf16.mxu0 0
      %979 = vmatpush1.bf16.msra.mxu0 0
      %980 = vmatprep.subr.bf16.mxu0 0
      %981 = vmatpush1.bf16.msra.mxu0 0
      %982 = vmatprep.subr.bf16.mxu0 0
      %983 = vmatpush1.bf16.msra.mxu0 %v966
      %984 = vmatprep.subr.bf16.mxu0 0
      %985 = vmatpush2.bf16.msra.mxu0 0
      %986 = vmatprep.subr.bf16.mxu0 0
      %987 = vmatpush2.bf16.msra.mxu0 0
      %988 = vmatprep.subr.bf16.mxu0 0
      %989 = vmatpush2.bf16.msra.mxu0 0
      %990 = vmatprep.subr.bf16.mxu0 0
      %991 = vmatpush2.bf16.msra.mxu0 0
      %992 = vmatprep.subr.bf16.mxu0 0
      %993 = vmatpush2.bf16.msra.mxu0 0
      %994 = vmatprep.subr.bf16.mxu0 0
      %995 = vmatpush2.bf16.msra.mxu0 0
      %996 = vmatprep.subr.bf16.mxu0 0
      %997 = vmatpush2.bf16.msra.mxu0 0
      %998 = vmatprep.subr.bf16.mxu0 0
      %999 = vmatpush2.bf16.msra.mxu0 0
      %1000 = vmatprep.mubr.bf16.mxu0 0
      %1001 = vmatmul.mubr.bf16.gmra.mxu0 %v917
      %v1002 = vpop.f32.mrf.mxu0
      %v1003 = vadd.f32 0.0, %v1002
      %v1004 = vpop.f32.mrf.mxu0
      %v1005 = vpop.f32.mrf.mxu0
      %v1006 = vadd.f32 0.0, %v1005
      %v1007 = vpop.f32.mrf.mxu0
      %1008 = vmatprep.mubr.bf16.mxu0 0
      %1009 = vmatmul.mubr.bf16.gmra.mxu0 %v920
      %v1010 = vpop.f32.mrf.mxu0
      %v1011 = vadd.f32 0.0, %v1010
      %v1012 = vpop.f32.mrf.mxu0
      %v1013 = vpop.f32.mrf.mxu0
      %v1014 = vadd.f32 0.0, %v1013
      %v1015 = vpop.f32.mrf.mxu0
      %1016 = vmatprep.mubr.bf16.mxu0 0
      %1017 = vmatmul.mubr.bf16.gmra.mxu0 %v923
      %v1018 = vpop.f32.mrf.mxu0
      %v1019 = vadd.f32 0.0, %v1018
      %v1020 = vpop.f32.mrf.mxu0
      %v1021 = vpop.f32.mrf.mxu0
      %v1022 = vadd.f32 0.0, %v1021
      %v1023 = vpop.f32.mrf.mxu0
      %1024 = vmatprep.mubr.bf16.mxu0 0
      %1025 = vmatmul.mubr.bf16.gmra.mxu0 %v926
      %v1026 = vpop.f32.mrf.mxu0
      %v1027 = vadd.f32 0.0, %v1026
      %v1028 = vpop.f32.mrf.mxu0
      %v1029 = vpop.f32.mrf.mxu0
      %v1030 = vadd.f32 0.0, %v1029
      %v1031 = vpop.f32.mrf.mxu0
      %1032 = vmatprep.mubr.bf16.mxu0 0
      %1033 = vmatmul.mubr.bf16.gmra.mxu0 %v929
      %v1034 = vpop.f32.mrf.mxu0
      %v1035 = vadd.f32 0.0, %v1034
      %v1036 = vpop.f32.mrf.mxu0
      %v1037 = vpop.f32.mrf.mxu0
      %v1038 = vadd.f32 0.0, %v1037
      %v1039 = vpop.f32.mrf.mxu0
      %1040 = vmatprep.mubr.bf16.mxu0 0
      %1041 = vmatmul.mubr.bf16.gmra.mxu0 %v932
      %v1042 = vpop.f32.mrf.mxu0
      %v1043 = vadd.f32 0.0, %v1042
      %v1044 = vpop.f32.mrf.mxu0
      %v1045 = vpop.f32.mrf.mxu0
      %v1046 = vadd.f32 0.0, %v1045
      %v1047 = vpop.f32.mrf.mxu0
      %1048 = vmatprep.mubr.bf16.mxu0 0
      %1049 = vmatmul.mubr.bf16.gmra.mxu0 %v935
      %v1050 = vpop.f32.mrf.mxu0
      %v1051 = vadd.f32 0.0, %v1050
      %v1052 = vpop.f32.mrf.mxu0
      %v1053 = vpop.f32.mrf.mxu0
      %v1054 = vadd.f32 0.0, %v1053
      %v1055 = vpop.f32.mrf.mxu0
      %1056 = vmatprep.mubr.bf16.mxu0 0
      %1057 = vmatmul.mubr.bf16.gmra.mxu0 %v938
      %v1058 = vpop.f32.mrf.mxu0
      %v1059 = vadd.f32 0.0, %v1058
      %v1060 = vpop.f32.mrf.mxu0
      %v1061 = vpop.f32.mrf.mxu0
      %v1062 = vadd.f32 0.0, %v1061
      %v1063 = vpop.f32.mrf.mxu0
      %1064 = vmatprep.mubr.bf16.mxu0 0
      %1065 = vmatmul.mubr.bf16.gmra.mxu0 %v941
      %v1066 = vpop.f32.mrf.mxu0
      %v1067 = vadd.f32 0.0, %v1066
      %v1068 = vpop.f32.mrf.mxu0
      %v1069 = vpop.f32.mrf.mxu0
      %v1070 = vadd.f32 0.0, %v1069
      %v1071 = vpop.f32.mrf.mxu0
      %1072 = vmatprep.mubr.bf16.mxu0 0
      %1073 = vmatmul.mubr.bf16.gmra.mxu0 %v944
      %v1074 = vpop.f32.mrf.mxu0
      %v1075 = vadd.f32 0.0, %v1074
      %v1076 = vpop.f32.mrf.mxu0
      %v1077 = vpop.f32.mrf.mxu0
      %v1078 = vadd.f32 0.0, %v1077
      %v1079 = vpop.f32.mrf.mxu0
      %1080 = vmatprep.mubr.bf16.mxu0 0
      %1081 = vmatmul.mubr.bf16.gmra.mxu0 %v947
      %v1082 = vpop.f32.mrf.mxu0
      %v1083 = vadd.f32 0.0, %v1082
      %v1084 = vpop.f32.mrf.mxu0
      %v1085 = vpop.f32.mrf.mxu0
      %v1086 = vadd.f32 0.0, %v1085
      %v1087 = vpop.f32.mrf.mxu0
      %1088 = vmatprep.mubr.bf16.mxu0 0
      %1089 = vmatmul.mubr.bf16.gmra.mxu0 %v950
      %v1090 = vpop.f32.mrf.mxu0
      %v1091 = vadd.f32 0.0, %v1090
      %v1092 = vpop.f32.mrf.mxu0
      %v1093 = vpop.f32.mrf.mxu0
      %v1094 = vadd.f32 0.0, %v1093
      %v1095 = vpop.f32.mrf.mxu0
      %1096 = vmatprep.mubr.bf16.mxu0 0
      %1097 = vmatmul.mubr.bf16.gmra.mxu0 %v953
      %v1098 = vpop.f32.mrf.mxu0
      %v1099 = vadd.f32 0.0, %v1098
      %v1100 = vpop.f32.mrf.mxu0
      %v1101 = vpop.f32.mrf.mxu0
      %v1102 = vadd.f32 0.0, %v1101
      %v1103 = vpop.f32.mrf.mxu0
      %1104 = vmatprep.mubr.bf16.mxu0 0
      %1105 = vmatmul.mubr.bf16.gmra.mxu0 %v956
      %v1106 = vpop.f32.mrf.mxu0
      %v1107 = vadd.f32 0.0, %v1106
      %v1108 = vpop.f32.mrf.mxu0
      %v1109 = vpop.f32.mrf.mxu0
      %v1110 = vadd.f32 0.0, %v1109
      %v1111 = vpop.f32.mrf.mxu0
      %1112 = vmatprep.mubr.bf16.mxu0 0
      %1113 = vmatmul.mubr.bf16.gmra.mxu0 %v959
      %v1114 = vpop.f32.mrf.mxu0
      %v1115 = vadd.f32 0.0, %v1114
      %v1116 = vpop.f32.mrf.mxu0
      %v1117 = vpop.f32.mrf.mxu0
      %v1118 = vadd.f32 0.0, %v1117
      %v1119 = vpop.f32.mrf.mxu0
      %1120 = vmatprep.mubr.bf16.mxu0 0
      %1121 = vmatmul.mubr.bf16.gmra.mxu0 %v962
      %v1122 = vpop.f32.mrf.mxu0
      %v1123 = vadd.f32 0.0, %v1122
      %v1124 = vpop.f32.mrf.mxu0
      %v1125 = vpop.f32.mrf.mxu0
      %v1126 = vadd.f32 0.0, %v1125
      %v1127 = vpop.f32.mrf.mxu0
      %1128 = vdwg.mxu0
      %v1161 = vunpack.c.l.b16 %v423
      %v1162 = vunpack.c.l.b16 %v424
      %v1163 = vunpack.c.l.b16 %v426
      %v1164 = vunpack.c.l.b16 %v427
      %v1165 = vunpack.c.l.b16 %v429
      %v1166 = vunpack.c.l.b16 %v430
      %v1167 = vunpack.c.l.b16 %v432
      %v1168 = vunpack.c.l.b16 %v433
      %v1169 = vunpack.c.l.b16 %v435
      %v1170 = vunpack.c.l.b16 %v436
      %v1171 = vunpack.c.l.b16 %v438
      %v1172 = vunpack.c.l.b16 %v439
      %v1173 = vunpack.c.l.b16 %v441
      %v1174 = vunpack.c.l.b16 %v442
      %v1175 = vunpack.c.l.b16 %v444
      %v1176 = vunpack.c.l.b16 %v445
      %v1177 = vunpack.c.l.b16 %v447
      %v1178 = vunpack.c.l.b16 %v448
      %v1179 = vunpack.c.l.b16 %v450
      %v1180 = vunpack.c.l.b16 %v451
      %v1181 = vunpack.c.l.b16 %v453
      %v1182 = vunpack.c.l.b16 %v454
      %v1183 = vunpack.c.l.b16 %v456
      %v1184 = vunpack.c.l.b16 %v457
      %v1185 = vunpack.c.l.b16 %v459
      %v1186 = vunpack.c.l.b16 %v460
      %v1187 = vunpack.c.l.b16 %v462
      %v1188 = vunpack.c.l.b16 %v463
      %v1189 = vunpack.c.l.b16 %v465
      %v1190 = vunpack.c.l.b16 %v466
      %v1191 = vunpack.c.l.b16 %v468
      %v1192 = vunpack.c.l.b16 %v469
      %v1193 = vpack.c.b16 %v1162, %v1161
      %v1194 = vpack.c.b16 %v1164, %v1163
      %v1195 = vpack.c.b16 %v1166, %v1165
      %v1196 = vpack.c.b16 %v1168, %v1167
      %v1197 = vpack.c.b16 %v1170, %v1169
      %v1198 = vpack.c.b16 %v1172, %v1171
      %v1199 = vpack.c.b16 %v1174, %v1173
      %v1200 = vpack.c.b16 %v1176, %v1175
      %v1201 = vpack.c.b16 %v1178, %v1177
      %v1202 = vpack.c.b16 %v1180, %v1179
      %v1203 = vpack.c.b16 %v1182, %v1181
      %v1204 = vpack.c.b16 %v1184, %v1183
      %v1205 = vpack.c.b16 %v1186, %v1185
      %v1206 = vpack.c.b16 %v1188, %v1187
      %v1207 = vpack.c.b16 %v1190, %v1189
      %v1208 = vpack.c.b16 %v1192, %v1191
      %v1210 = vsel %vm915, %v1193, 0
      %v1213 = vsel %vm915, %v1194, 0
      %v1216 = vsel %vm915, %v1195, 0
      %v1219 = vsel %vm915, %v1196, 0
      %v1222 = vsel %vm915, %v1197, 0
      %v1225 = vsel %vm915, %v1198, 0
      %v1228 = vsel %vm915, %v1199, 0
      %v1231 = vsel %vm915, %v1200, 0
      %v1234 = vsel %vm915, %v1201, 0
      %v1237 = vsel %vm915, %v1202, 0
      %v1240 = vsel %vm915, %v1203, 0
      %v1243 = vsel %vm915, %v1204, 0
      %v1246 = vsel %vm915, %v1205, 0
      %v1249 = vsel %vm915, %v1206, 0
      %v1252 = vsel %vm915, %v1207, 0
      %v1255 = vsel %vm915, %v1208, 0
      %v1258 = vsel %vm964, %v477, 0
      %1260 = vmatprep.subr.bf16.mxu0 0
      %1261 = vmatpush1.bf16.msra.mxu0 0
      %1262 = vmatprep.subr.bf16.mxu0 0
      %1263 = vmatpush1.bf16.msra.mxu0 0
      %1264 = vmatprep.subr.bf16.mxu0 0
      %1265 = vmatpush1.bf16.msra.mxu0 0
      %1266 = vmatprep.subr.bf16.mxu0 0
      %1267 = vmatpush1.bf16.msra.mxu0 0
      %1268 = vmatprep.subr.bf16.mxu0 0
      %1269 = vmatpush1.bf16.msra.mxu0 0
      %1270 = vmatprep.subr.bf16.mxu0 0
      %1271 = vmatpush1.bf16.msra.mxu0 0
      %1272 = vmatprep.subr.bf16.mxu0 0
      %1273 = vmatpush1.bf16.msra.mxu0 0
      %1274 = vmatprep.subr.bf16.mxu0 0
      %1275 = vmatpush1.bf16.msra.mxu0 %v1258
      %1276 = vmatprep.subr.bf16.mxu0 0
      %1277 = vmatpush2.bf16.msra.mxu0 0
      %1278 = vmatprep.subr.bf16.mxu0 0
      %1279 = vmatpush2.bf16.msra.mxu0 0
      %1280 = vmatprep.subr.bf16.mxu0 0
      %1281 = vmatpush2.bf16.msra.mxu0 0
      %1282 = vmatprep.subr.bf16.mxu0 0
      %1283 = vmatpush2.bf16.msra.mxu0 0
      %1284 = vmatprep.subr.bf16.mxu0 0
      %1285 = vmatpush2.bf16.msra.mxu0 0
      %1286 = vmatprep.subr.bf16.mxu0 0
      %1287 = vmatpush2.bf16.msra.mxu0 0
      %1288 = vmatprep.subr.bf16.mxu0 0
      %1289 = vmatpush2.bf16.msra.mxu0 0
      %1290 = vmatprep.subr.bf16.mxu0 0
      %1291 = vmatpush2.bf16.msra.mxu0 0
      %1292 = vmatprep.mubr.bf16.mxu0 0
      %1293 = vmatmul.mubr.bf16.gmra.mxu0 %v1210
      %v1294 = vpop.f32.mrf.mxu0
      %v1295 = vadd.f32 %v1003, %v1294
      %v1296 = vpop.f32.mrf.mxu0
      %v1297 = vpop.f32.mrf.mxu0
      %v1298 = vadd.f32 %v1006, %v1297
      %v1299 = vpop.f32.mrf.mxu0
      %1300 = vmatprep.mubr.bf16.mxu0 0
      %1301 = vmatmul.mubr.bf16.gmra.mxu0 %v1213
      %v1302 = vpop.f32.mrf.mxu0
      %v1303 = vadd.f32 %v1011, %v1302
      %v1304 = vpop.f32.mrf.mxu0
      %v1305 = vpop.f32.mrf.mxu0
      %v1306 = vadd.f32 %v1014, %v1305
      %v1307 = vpop.f32.mrf.mxu0
      %1308 = vmatprep.mubr.bf16.mxu0 0
      %1309 = vmatmul.mubr.bf16.gmra.mxu0 %v1216
      %v1310 = vpop.f32.mrf.mxu0
      %v1311 = vadd.f32 %v1019, %v1310
      %v1312 = vpop.f32.mrf.mxu0
      %v1313 = vpop.f32.mrf.mxu0
      %v1314 = vadd.f32 %v1022, %v1313
      %v1315 = vpop.f32.mrf.mxu0
      %1316 = vmatprep.mubr.bf16.mxu0 0
      %1317 = vmatmul.mubr.bf16.gmra.mxu0 %v1219
      %v1318 = vpop.f32.mrf.mxu0
      %v1319 = vadd.f32 %v1027, %v1318
      %v1320 = vpop.f32.mrf.mxu0
      %v1321 = vpop.f32.mrf.mxu0
      %v1322 = vadd.f32 %v1030, %v1321
      %v1323 = vpop.f32.mrf.mxu0
      %1324 = vmatprep.mubr.bf16.mxu0 0
      %1325 = vmatmul.mubr.bf16.gmra.mxu0 %v1222
      %v1326 = vpop.f32.mrf.mxu0
      %v1327 = vadd.f32 %v1035, %v1326
      %v1328 = vpop.f32.mrf.mxu0
      %v1329 = vpop.f32.mrf.mxu0
      %v1330 = vadd.f32 %v1038, %v1329
      %v1331 = vpop.f32.mrf.mxu0
      %1332 = vmatprep.mubr.bf16.mxu0 0
      %1333 = vmatmul.mubr.bf16.gmra.mxu0 %v1225
      %v1334 = vpop.f32.mrf.mxu0
      %v1335 = vadd.f32 %v1043, %v1334
      %v1336 = vpop.f32.mrf.mxu0
      %v1337 = vpop.f32.mrf.mxu0
      %v1338 = vadd.f32 %v1046, %v1337
      %v1339 = vpop.f32.mrf.mxu0
      %1340 = vmatprep.mubr.bf16.mxu0 0
      %1341 = vmatmul.mubr.bf16.gmra.mxu0 %v1228
      %v1342 = vpop.f32.mrf.mxu0
      %v1343 = vadd.f32 %v1051, %v1342
      %v1344 = vpop.f32.mrf.mxu0
      %v1345 = vpop.f32.mrf.mxu0
      %v1346 = vadd.f32 %v1054, %v1345
      %v1347 = vpop.f32.mrf.mxu0
      %1348 = vmatprep.mubr.bf16.mxu0 0
      %1349 = vmatmul.mubr.bf16.gmra.mxu0 %v1231
      %v1350 = vpop.f32.mrf.mxu0
      %v1351 = vadd.f32 %v1059, %v1350
      %v1352 = vpop.f32.mrf.mxu0
      %v1353 = vpop.f32.mrf.mxu0
      %v1354 = vadd.f32 %v1062, %v1353
      %v1355 = vpop.f32.mrf.mxu0
      %1356 = vmatprep.mubr.bf16.mxu0 0
      %1357 = vmatmul.mubr.bf16.gmra.mxu0 %v1234
      %v1358 = vpop.f32.mrf.mxu0
      %v1359 = vadd.f32 %v1067, %v1358
      %v1360 = vpop.f32.mrf.mxu0
      %v1361 = vpop.f32.mrf.mxu0
      %v1362 = vadd.f32 %v1070, %v1361
      %v1363 = vpop.f32.mrf.mxu0
      %1364 = vmatprep.mubr.bf16.mxu0 0
      %1365 = vmatmul.mubr.bf16.gmra.mxu0 %v1237
      %v1366 = vpop.f32.mrf.mxu0
      %v1367 = vadd.f32 %v1075, %v1366
      %v1368 = vpop.f32.mrf.mxu0
      %v1369 = vpop.f32.mrf.mxu0
      %v1370 = vadd.f32 %v1078, %v1369
      %v1371 = vpop.f32.mrf.mxu0
      %1372 = vmatprep.mubr.bf16.mxu0 0
      %1373 = vmatmul.mubr.bf16.gmra.mxu0 %v1240
      %v1374 = vpop.f32.mrf.mxu0
      %v1375 = vadd.f32 %v1083, %v1374
      %v1376 = vpop.f32.mrf.mxu0
      %v1377 = vpop.f32.mrf.mxu0
      %v1378 = vadd.f32 %v1086, %v1377
      %v1379 = vpop.f32.mrf.mxu0
      %1380 = vmatprep.mubr.bf16.mxu0 0
      %1381 = vmatmul.mubr.bf16.gmra.mxu0 %v1243
      %v1382 = vpop.f32.mrf.mxu0
      %v1383 = vadd.f32 %v1091, %v1382
      %v1384 = vpop.f32.mrf.mxu0
      %v1385 = vpop.f32.mrf.mxu0
      %v1386 = vadd.f32 %v1094, %v1385
      %v1387 = vpop.f32.mrf.mxu0
      %1388 = vmatprep.mubr.bf16.mxu0 0
      %1389 = vmatmul.mubr.bf16.gmra.mxu0 %v1246
      %v1390 = vpop.f32.mrf.mxu0
      %v1391 = vadd.f32 %v1099, %v1390
      %v1392 = vpop.f32.mrf.mxu0
      %v1393 = vpop.f32.mrf.mxu0
      %v1394 = vadd.f32 %v1102, %v1393
      %v1395 = vpop.f32.mrf.mxu0
      %1396 = vmatprep.mubr.bf16.mxu0 0
      %1397 = vmatmul.mubr.bf16.gmra.mxu0 %v1249
      %v1398 = vpop.f32.mrf.mxu0
      %v1399 = vadd.f32 %v1107, %v1398
      %v1400 = vpop.f32.mrf.mxu0
      %v1401 = vpop.f32.mrf.mxu0
      %v1402 = vadd.f32 %v1110, %v1401
      %v1403 = vpop.f32.mrf.mxu0
      %1404 = vmatprep.mubr.bf16.mxu0 0
      %1405 = vmatmul.mubr.bf16.gmra.mxu0 %v1252
      %v1406 = vpop.f32.mrf.mxu0
      %v1407 = vadd.f32 %v1115, %v1406
      %v1408 = vpop.f32.mrf.mxu0
      %v1409 = vpop.f32.mrf.mxu0
      %v1410 = vadd.f32 %v1118, %v1409
      %v1411 = vpop.f32.mrf.mxu0
      %1412 = vmatprep.mubr.bf16.mxu0 0
      %1413 = vmatmul.mubr.bf16.gmra.mxu0 %v1255
      %v1414 = vpop.f32.mrf.mxu0
      %v1415 = vadd.f32 %v1123, %v1414
      %v1416 = vpop.f32.mrf.mxu0
      %v1417 = vpop.f32.mrf.mxu0
      %v1418 = vadd.f32 %v1126, %v1417
      %v1419 = vpop.f32.mrf.mxu0
      %1420 = vdwg.mxu0
      %vm1437 = vcmask 1042432
      %vm1438 = vcmask 1046532
      %vm1439 = vmor %vm1437, %vm1438
      %v1440 = vrot.slane %v423, 5
      %v1441 = vrot.slane %v1440, 4
      %v1442 = vrot.slane %v424, 5
      %v1443 = vsel %vm1439, %v1441, %v1442
      %v1444 = vrot.slane %v1442, 4
      %v1445 = vrot.slane %v425, 5
      %v1446 = vsel %vm1439, %v1444, %v1445
      %v1447 = vrot.slane %v426, 5
      %v1448 = vrot.slane %v1447, 4
      %v1449 = vrot.slane %v427, 5
      %v1450 = vsel %vm1439, %v1448, %v1449
      %v1451 = vrot.slane %v1449, 4
      %v1452 = vrot.slane %v428, 5
      %v1453 = vsel %vm1439, %v1451, %v1452
      %v1454 = vrot.slane %v429, 5
      %v1455 = vrot.slane %v1454, 4
      %v1456 = vrot.slane %v430, 5
      %v1457 = vsel %vm1439, %v1455, %v1456
      %v1458 = vrot.slane %v1456, 4
      %v1459 = vrot.slane %v431, 5
      %v1460 = vsel %vm1439, %v1458, %v1459
      %v1461 = vrot.slane %v432, 5
      %v1462 = vrot.slane %v1461, 4
      %v1463 = vrot.slane %v433, 5
      %v1464 = vsel %vm1439, %v1462, %v1463
      %v1465 = vrot.slane %v1463, 4
      %v1466 = vrot.slane %v434, 5
      %v1467 = vsel %vm1439, %v1465, %v1466
      %v1468 = vrot.slane %v435, 5
      %v1469 = vrot.slane %v1468, 4
      %v1470 = vrot.slane %v436, 5
      %v1471 = vsel %vm1439, %v1469, %v1470
      %v1472 = vrot.slane %v1470, 4
      %v1473 = vrot.slane %v437, 5
      %v1474 = vsel %vm1439, %v1472, %v1473
      %v1475 = vrot.slane %v438, 5
      %v1476 = vrot.slane %v1475, 4
      %v1477 = vrot.slane %v439, 5
      %v1478 = vsel %vm1439, %v1476, %v1477
      %v1479 = vrot.slane %v1477, 4
      %v1480 = vrot.slane %v440, 5
      %v1481 = vsel %vm1439, %v1479, %v1480
      %v1482 = vrot.slane %v441, 5
      %v1483 = vrot.slane %v1482, 4
      %v1484 = vrot.slane %v442, 5
      %v1485 = vsel %vm1439, %v1483, %v1484
      %v1486 = vrot.slane %v1484, 4
      %v1487 = vrot.slane %v443, 5
      %v1488 = vsel %vm1439, %v1486, %v1487
      %v1489 = vrot.slane %v444, 5
      %v1490 = vrot.slane %v1489, 4
      %v1491 = vrot.slane %v445, 5
      %v1492 = vsel %vm1439, %v1490, %v1491
      %v1493 = vrot.slane %v1491, 4
      %v1494 = vrot.slane %v446, 5
      %v1495 = vsel %vm1439, %v1493, %v1494
      %v1496 = vrot.slane %v447, 5
      %v1497 = vrot.slane %v1496, 4
      %v1498 = vrot.slane %v448, 5
      %v1499 = vsel %vm1439, %v1497, %v1498
      %v1500 = vrot.slane %v1498, 4
      %v1501 = vrot.slane %v449, 5
      %v1502 = vsel %vm1439, %v1500, %v1501
      %v1503 = vrot.slane %v450, 5
      %v1504 = vrot.slane %v1503, 4
      %v1505 = vrot.slane %v451, 5
      %v1506 = vsel %vm1439, %v1504, %v1505
      %v1507 = vrot.slane %v1505, 4
      %v1508 = vrot.slane %v452, 5
      %v1509 = vsel %vm1439, %v1507, %v1508
      %v1510 = vrot.slane %v453, 5
      %v1511 = vrot.slane %v1510, 4
      %v1512 = vrot.slane %v454, 5
      %v1513 = vsel %vm1439, %v1511, %v1512
      %v1514 = vrot.slane %v1512, 4
      %v1515 = vrot.slane %v455, 5
      %v1516 = vsel %vm1439, %v1514, %v1515
      %v1517 = vrot.slane %v456, 5
      %v1518 = vrot.slane %v1517, 4
      %v1519 = vrot.slane %v457, 5
      %v1520 = vsel %vm1439, %v1518, %v1519
      %v1521 = vrot.slane %v1519, 4
      %v1522 = vrot.slane %v458, 5
      %v1523 = vsel %vm1439, %v1521, %v1522
      %v1524 = vrot.slane %v459, 5
      %v1525 = vrot.slane %v1524, 4
      %v1526 = vrot.slane %v460, 5
      %v1527 = vsel %vm1439, %v1525, %v1526
      %v1528 = vrot.slane %v1526, 4
      %v1529 = vrot.slane %v461, 5
      %v1530 = vsel %vm1439, %v1528, %v1529
      %v1531 = vrot.slane %v462, 5
      %v1532 = vrot.slane %v1531, 4
      %v1533 = vrot.slane %v463, 5
      %v1534 = vsel %vm1439, %v1532, %v1533
      %v1535 = vrot.slane %v1533, 4
      %v1536 = vrot.slane %v464, 5
      %v1537 = vsel %vm1439, %v1535, %v1536
      %v1538 = vrot.slane %v465, 5
      %v1539 = vrot.slane %v1538, 4
      %v1540 = vrot.slane %v466, 5
      %v1541 = vsel %vm1439, %v1539, %v1540
      %v1542 = vrot.slane %v1540, 4
      %v1543 = vrot.slane %v467, 5
      %v1544 = vsel %vm1439, %v1542, %v1543
      %v1545 = vrot.slane %v468, 5
      %v1546 = vrot.slane %v1545, 4
      %v1547 = vrot.slane %v469, 5
      %v1548 = vsel %vm1439, %v1546, %v1547
      %v1549 = vrot.slane %v1547, 4
      %v1550 = vrot.slane %v470, 5
      %v1551 = vsel %vm1439, %v1549, %v1550
      %s1552 = scalar_lea.vmem %s3, 4
      %v1553 = vld [vmem:[%s1552] sm:$0x3]
      %v1554 = vunpack.c.l.b16 %v1443
      %v1555 = vunpack.c.l.b16 %v1446
      %v1556 = vunpack.c.l.b16 %v1450
      %v1557 = vunpack.c.l.b16 %v1453
      %v1558 = vunpack.c.l.b16 %v1457
      %v1559 = vunpack.c.l.b16 %v1460
      %v1560 = vunpack.c.l.b16 %v1464
      %v1561 = vunpack.c.l.b16 %v1467
      %v1562 = vunpack.c.l.b16 %v1471
      %v1563 = vunpack.c.l.b16 %v1474
      %v1564 = vunpack.c.l.b16 %v1478
      %v1565 = vunpack.c.l.b16 %v1481
      %v1566 = vunpack.c.l.b16 %v1485
      %v1567 = vunpack.c.l.b16 %v1488
      %v1568 = vunpack.c.l.b16 %v1492
      %v1569 = vunpack.c.l.b16 %v1495
      %v1570 = vunpack.c.l.b16 %v1499
      %v1571 = vunpack.c.l.b16 %v1502
      %v1572 = vunpack.c.l.b16 %v1506
      %v1573 = vunpack.c.l.b16 %v1509
      %v1574 = vunpack.c.l.b16 %v1513
      %v1575 = vunpack.c.l.b16 %v1516
      %v1576 = vunpack.c.l.b16 %v1520
      %v1577 = vunpack.c.l.b16 %v1523
      %v1578 = vunpack.c.l.b16 %v1527
      %v1579 = vunpack.c.l.b16 %v1530
      %v1580 = vunpack.c.l.b16 %v1534
      %v1581 = vunpack.c.l.b16 %v1537
      %v1582 = vunpack.c.l.b16 %v1541
      %v1583 = vunpack.c.l.b16 %v1544
      %v1584 = vunpack.c.l.b16 %v1548
      %v1585 = vunpack.c.l.b16 %v1551
      %v1586 = vpack.c.b16 %v1555, %v1554
      %v1587 = vpack.c.b16 %v1557, %v1556
      %v1588 = vpack.c.b16 %v1559, %v1558
      %v1589 = vpack.c.b16 %v1561, %v1560
      %v1590 = vpack.c.b16 %v1563, %v1562
      %v1591 = vpack.c.b16 %v1565, %v1564
      %v1592 = vpack.c.b16 %v1567, %v1566
      %v1593 = vpack.c.b16 %v1569, %v1568
      %v1594 = vpack.c.b16 %v1571, %v1570
      %v1595 = vpack.c.b16 %v1573, %v1572
      %v1596 = vpack.c.b16 %v1575, %v1574
      %v1597 = vpack.c.b16 %v1577, %v1576
      %v1598 = vpack.c.b16 %v1579, %v1578
      %v1599 = vpack.c.b16 %v1581, %v1580
      %v1600 = vpack.c.b16 %v1583, %v1582
      %v1601 = vpack.c.b16 %v1585, %v1584
      %v1603 = vsel %vm915, %v1586, 0
      %v1606 = vsel %vm915, %v1587, 0
      %v1609 = vsel %vm915, %v1588, 0
      %v1612 = vsel %vm915, %v1589, 0
      %v1615 = vsel %vm915, %v1590, 0
      %v1618 = vsel %vm915, %v1591, 0
      %v1621 = vsel %vm915, %v1592, 0
      %v1624 = vsel %vm915, %v1593, 0
      %v1627 = vsel %vm915, %v1594, 0
      %v1630 = vsel %vm915, %v1595, 0
      %v1633 = vsel %vm915, %v1596, 0
      %v1636 = vsel %vm915, %v1597, 0
      %v1639 = vsel %vm915, %v1598, 0
      %v1642 = vsel %vm915, %v1599, 0
      %v1645 = vsel %vm915, %v1600, 0
      %v1648 = vsel %vm915, %v1601, 0
      %v1651 = vsel %vm964, %v1553, 0
      %1653 = vmatprep.subr.bf16.mxu0 0
      %1654 = vmatpush1.bf16.msra.mxu0 0
      %1655 = vmatprep.subr.bf16.mxu0 0
      %1656 = vmatpush1.bf16.msra.mxu0 0
      %1657 = vmatprep.subr.bf16.mxu0 0
      %1658 = vmatpush1.bf16.msra.mxu0 0
      %1659 = vmatprep.subr.bf16.mxu0 0
      %1660 = vmatpush1.bf16.msra.mxu0 0
      %1661 = vmatprep.subr.bf16.mxu0 0
      %1662 = vmatpush1.bf16.msra.mxu0 0
      %1663 = vmatprep.subr.bf16.mxu0 0
      %1664 = vmatpush1.bf16.msra.mxu0 0
      %1665 = vmatprep.subr.bf16.mxu0 0
      %1666 = vmatpush1.bf16.msra.mxu0 0
      %1667 = vmatprep.subr.bf16.mxu0 0
      %1668 = vmatpush1.bf16.msra.mxu0 %v1651
      %1669 = vmatprep.subr.bf16.mxu0 0
      %1670 = vmatpush2.bf16.msra.mxu0 0
      %1671 = vmatprep.subr.bf16.mxu0 0
      %1672 = vmatpush2.bf16.msra.mxu0 0
      %1673 = vmatprep.subr.bf16.mxu0 0
      %1674 = vmatpush2.bf16.msra.mxu0 0
      %1675 = vmatprep.subr.bf16.mxu0 0
      %1676 = vmatpush2.bf16.msra.mxu0 0
      %1677 = vmatprep.subr.bf16.mxu0 0
      %1678 = vmatpush2.bf16.msra.mxu0 0
      %1679 = vmatprep.subr.bf16.mxu0 0
      %1680 = vmatpush2.bf16.msra.mxu0 0
      %1681 = vmatprep.subr.bf16.mxu0 0
      %1682 = vmatpush2.bf16.msra.mxu0 0
      %1683 = vmatprep.subr.bf16.mxu0 0
      %1684 = vmatpush2.bf16.msra.mxu0 0
      %1685 = vmatprep.mubr.bf16.mxu0 0
      %1686 = vmatmul.mubr.bf16.gmra.mxu0 %v1603
      %v1687 = vpop.f32.mrf.mxu0
      %v1688 = vadd.f32 0.0, %v1687
      %v1689 = vpop.f32.mrf.mxu0
      %v1690 = vpop.f32.mrf.mxu0
      %v1691 = vadd.f32 0.0, %v1690
      %v1692 = vpop.f32.mrf.mxu0
      %1693 = vmatprep.mubr.bf16.mxu0 0
      %1694 = vmatmul.mubr.bf16.gmra.mxu0 %v1606
      %v1695 = vpop.f32.mrf.mxu0
      %v1696 = vadd.f32 0.0, %v1695
      %v1697 = vpop.f32.mrf.mxu0
      %v1698 = vpop.f32.mrf.mxu0
      %v1699 = vadd.f32 0.0, %v1698
      %v1700 = vpop.f32.mrf.mxu0
      %1701 = vmatprep.mubr.bf16.mxu0 0
      %1702 = vmatmul.mubr.bf16.gmra.mxu0 %v1609
      %v1703 = vpop.f32.mrf.mxu0
      %v1704 = vadd.f32 0.0, %v1703
      %v1705 = vpop.f32.mrf.mxu0
      %v1706 = vpop.f32.mrf.mxu0
      %v1707 = vadd.f32 0.0, %v1706
      %v1708 = vpop.f32.mrf.mxu0
      %1709 = vmatprep.mubr.bf16.mxu0 0
      %1710 = vmatmul.mubr.bf16.gmra.mxu0 %v1612
      %v1711 = vpop.f32.mrf.mxu0
      %v1712 = vadd.f32 0.0, %v1711
      %v1713 = vpop.f32.mrf.mxu0
      %v1714 = vpop.f32.mrf.mxu0
      %v1715 = vadd.f32 0.0, %v1714
      %v1716 = vpop.f32.mrf.mxu0
      %1717 = vmatprep.mubr.bf16.mxu0 0
      %1718 = vmatmul.mubr.bf16.gmra.mxu0 %v1615
      %v1719 = vpop.f32.mrf.mxu0
      %v1720 = vadd.f32 0.0, %v1719
      %v1721 = vpop.f32.mrf.mxu0
      %v1722 = vpop.f32.mrf.mxu0
      %v1723 = vadd.f32 0.0, %v1722
      %v1724 = vpop.f32.mrf.mxu0
      %1725 = vmatprep.mubr.bf16.mxu0 0
      %1726 = vmatmul.mubr.bf16.gmra.mxu0 %v1618
      %v1727 = vpop.f32.mrf.mxu0
      %v1728 = vadd.f32 0.0, %v1727
      %v1729 = vpop.f32.mrf.mxu0
      %v1730 = vpop.f32.mrf.mxu0
      %v1731 = vadd.f32 0.0, %v1730
      %v1732 = vpop.f32.mrf.mxu0
      %1733 = vmatprep.mubr.bf16.mxu0 0
      %1734 = vmatmul.mubr.bf16.gmra.mxu0 %v1621
      %v1735 = vpop.f32.mrf.mxu0
      %v1736 = vadd.f32 0.0, %v1735
      %v1737 = vpop.f32.mrf.mxu0
      %v1738 = vpop.f32.mrf.mxu0
      %v1739 = vadd.f32 0.0, %v1738
      %v1740 = vpop.f32.mrf.mxu0
      %1741 = vmatprep.mubr.bf16.mxu0 0
      %1742 = vmatmul.mubr.bf16.gmra.mxu0 %v1624
      %v1743 = vpop.f32.mrf.mxu0
      %v1744 = vadd.f32 0.0, %v1743
      %v1745 = vpop.f32.mrf.mxu0
      %v1746 = vpop.f32.mrf.mxu0
      %v1747 = vadd.f32 0.0, %v1746
      %v1748 = vpop.f32.mrf.mxu0
      %1749 = vmatprep.mubr.bf16.mxu0 0
      %1750 = vmatmul.mubr.bf16.gmra.mxu0 %v1627
      %v1751 = vpop.f32.mrf.mxu0
      %v1752 = vadd.f32 0.0, %v1751
      %v1753 = vpop.f32.mrf.mxu0
      %v1754 = vpop.f32.mrf.mxu0
      %v1755 = vadd.f32 0.0, %v1754
      %v1756 = vpop.f32.mrf.mxu0
      %1757 = vmatprep.mubr.bf16.mxu0 0
      %1758 = vmatmul.mubr.bf16.gmra.mxu0 %v1630
      %v1759 = vpop.f32.mrf.mxu0
      %v1760 = vadd.f32 0.0, %v1759
      %v1761 = vpop.f32.mrf.mxu0
      %v1762 = vpop.f32.mrf.mxu0
      %v1763 = vadd.f32 0.0, %v1762
      %v1764 = vpop.f32.mrf.mxu0
      %1765 = vmatprep.mubr.bf16.mxu0 0
      %1766 = vmatmul.mubr.bf16.gmra.mxu0 %v1633
      %v1767 = vpop.f32.mrf.mxu0
      %v1768 = vadd.f32 0.0, %v1767
      %v1769 = vpop.f32.mrf.mxu0
      %v1770 = vpop.f32.mrf.mxu0
      %v1771 = vadd.f32 0.0, %v1770
      %v1772 = vpop.f32.mrf.mxu0
      %1773 = vmatprep.mubr.bf16.mxu0 0
      %1774 = vmatmul.mubr.bf16.gmra.mxu0 %v1636
      %v1775 = vpop.f32.mrf.mxu0
      %v1776 = vadd.f32 0.0, %v1775
      %v1777 = vpop.f32.mrf.mxu0
      %v1778 = vpop.f32.mrf.mxu0
      %v1779 = vadd.f32 0.0, %v1778
      %v1780 = vpop.f32.mrf.mxu0
      %1781 = vmatprep.mubr.bf16.mxu0 0
      %1782 = vmatmul.mubr.bf16.gmra.mxu0 %v1639
      %v1783 = vpop.f32.mrf.mxu0
      %v1784 = vadd.f32 0.0, %v1783
      %v1785 = vpop.f32.mrf.mxu0
      %v1786 = vpop.f32.mrf.mxu0
      %v1787 = vadd.f32 0.0, %v1786
      %v1788 = vpop.f32.mrf.mxu0
      %1789 = vmatprep.mubr.bf16.mxu0 0
      %1790 = vmatmul.mubr.bf16.gmra.mxu0 %v1642
      %v1791 = vpop.f32.mrf.mxu0
      %v1792 = vadd.f32 0.0, %v1791
      %v1793 = vpop.f32.mrf.mxu0
      %v1794 = vpop.f32.mrf.mxu0
      %v1795 = vadd.f32 0.0, %v1794
      %v1796 = vpop.f32.mrf.mxu0
      %1797 = vmatprep.mubr.bf16.mxu0 0
      %1798 = vmatmul.mubr.bf16.gmra.mxu0 %v1645
      %v1799 = vpop.f32.mrf.mxu0
      %v1800 = vadd.f32 0.0, %v1799
      %v1801 = vpop.f32.mrf.mxu0
      %v1802 = vpop.f32.mrf.mxu0
      %v1803 = vadd.f32 0.0, %v1802
      %v1804 = vpop.f32.mrf.mxu0
      %1805 = vmatprep.mubr.bf16.mxu0 0
      %1806 = vmatmul.mubr.bf16.gmra.mxu0 %v1648
      %v1807 = vpop.f32.mrf.mxu0
      %v1808 = vadd.f32 0.0, %v1807
      %v1809 = vpop.f32.mrf.mxu0
      %v1810 = vpop.f32.mrf.mxu0
      %v1811 = vadd.f32 0.0, %v1810
      %v1812 = vpop.f32.mrf.mxu0
      %1813 = vdwg.mxu0
      %v1814 = vadd.f32 %v1295, %v1688
      %v1815 = vadd.f32 %v1298, %v1691
      %v1816 = vadd.f32 %v1303, %v1696
      %v1817 = vadd.f32 %v1306, %v1699
      %v1818 = vadd.f32 %v1311, %v1704
      %v1819 = vadd.f32 %v1314, %v1707
      %v1820 = vadd.f32 %v1319, %v1712
      %v1821 = vadd.f32 %v1322, %v1715
      %v1822 = vadd.f32 %v1327, %v1720
      %v1823 = vadd.f32 %v1330, %v1723
      %v1824 = vadd.f32 %v1335, %v1728
      %v1825 = vadd.f32 %v1338, %v1731
      %v1826 = vadd.f32 %v1343, %v1736
      %v1827 = vadd.f32 %v1346, %v1739
      %v1828 = vadd.f32 %v1351, %v1744
      %v1829 = vadd.f32 %v1354, %v1747
      %v1830 = vadd.f32 %v1359, %v1752
      %v1831 = vadd.f32 %v1362, %v1755
      %v1832 = vadd.f32 %v1367, %v1760
      %v1833 = vadd.f32 %v1370, %v1763
      %v1834 = vadd.f32 %v1375, %v1768
      %v1835 = vadd.f32 %v1378, %v1771
      %v1836 = vadd.f32 %v1383, %v1776
      %v1837 = vadd.f32 %v1386, %v1779
      %v1838 = vadd.f32 %v1391, %v1784
      %v1839 = vadd.f32 %v1394, %v1787
      %v1840 = vadd.f32 %v1399, %v1792
      %v1841 = vadd.f32 %v1402, %v1795
      %v1842 = vadd.f32 %v1407, %v1800
      %v1843 = vadd.f32 %v1410, %v1803
      %v1844 = vadd.f32 %v1415, %v1808
      %v1845 = vadd.f32 %v1418, %v1811
      %s1846 = scalar_lea.vmem %s3, 6
      %v1847 = vld [vmem:[%s1846] sm:$0x3]
      %v1850 = vunpack.c.l.b16 %v471
      %v1851 = vunpack.c.l.b16 %v472
      %v1852 = vpack.c.b16 %v1851, %v1850
      %v1854 = vsel %vm915, %v1852, 0
      %v1857 = vsel %vm964, %v1847, 0
      %1859 = vmatprep.subr.bf16.mxu0 0
      %1860 = vmatpush1.bf16.msra.mxu0 0
      %1861 = vmatprep.subr.bf16.mxu0 0
      %1862 = vmatpush1.bf16.msra.mxu0 0
      %1863 = vmatprep.subr.bf16.mxu0 0
      %1864 = vmatpush1.bf16.msra.mxu0 0
      %1865 = vmatprep.subr.bf16.mxu0 0
      %1866 = vmatpush1.bf16.msra.mxu0 0
      %1867 = vmatprep.subr.bf16.mxu0 0
      %1868 = vmatpush1.bf16.msra.mxu0 0
      %1869 = vmatprep.subr.bf16.mxu0 0
      %1870 = vmatpush1.bf16.msra.mxu0 0
      %1871 = vmatprep.subr.bf16.mxu0 0
      %1872 = vmatpush1.bf16.msra.mxu0 0
      %1873 = vmatprep.subr.bf16.mxu0 0
      %1874 = vmatpush1.bf16.msra.mxu0 %v1857
      %1875 = vmatprep.subr.bf16.mxu0 0
      %1876 = vmatpush2.bf16.msra.mxu0 0
      %1877 = vmatprep.subr.bf16.mxu0 0
      %1878 = vmatpush2.bf16.msra.mxu0 0
      %1879 = vmatprep.subr.bf16.mxu0 0
      %1880 = vmatpush2.bf16.msra.mxu0 0
      %1881 = vmatprep.subr.bf16.mxu0 0
      %1882 = vmatpush2.bf16.msra.mxu0 0
      %1883 = vmatprep.subr.bf16.mxu0 0
      %1884 = vmatpush2.bf16.msra.mxu0 0
      %1885 = vmatprep.subr.bf16.mxu0 0
      %1886 = vmatpush2.bf16.msra.mxu0 0
      %1887 = vmatprep.subr.bf16.mxu0 0
      %1888 = vmatpush2.bf16.msra.mxu0 0
      %1889 = vmatprep.subr.bf16.mxu0 0
      %1890 = vmatpush2.bf16.msra.mxu0 0
      %1891 = vmatprep.mubr.bf16.mxu0 0
      %1892 = vmatmul.mubr.bf16.gmra.mxu0 %v1213
      %v1893 = vpop.f32.mrf.mxu0
      %v1894 = vadd.f32 0.0, %v1893
      %v1895 = vpop.f32.mrf.mxu0
      %v1896 = vpop.f32.mrf.mxu0
      %v1897 = vadd.f32 0.0, %v1896
      %v1898 = vpop.f32.mrf.mxu0
      %1899 = vmatprep.mubr.bf16.mxu0 0
      %1900 = vmatmul.mubr.bf16.gmra.mxu0 %v1216
      %v1901 = vpop.f32.mrf.mxu0
      %v1902 = vadd.f32 0.0, %v1901
      %v1903 = vpop.f32.mrf.mxu0
      %v1904 = vpop.f32.mrf.mxu0
      %v1905 = vadd.f32 0.0, %v1904
      %v1906 = vpop.f32.mrf.mxu0
      %1907 = vmatprep.mubr.bf16.mxu0 0
      %1908 = vmatmul.mubr.bf16.gmra.mxu0 %v1219
      %v1909 = vpop.f32.mrf.mxu0
      %v1910 = vadd.f32 0.0, %v1909
      %v1911 = vpop.f32.mrf.mxu0
      %v1912 = vpop.f32.mrf.mxu0
      %v1913 = vadd.f32 0.0, %v1912
      %v1914 = vpop.f32.mrf.mxu0
      %1915 = vmatprep.mubr.bf16.mxu0 0
      %1916 = vmatmul.mubr.bf16.gmra.mxu0 %v1222
      %v1917 = vpop.f32.mrf.mxu0
      %v1918 = vadd.f32 0.0, %v1917
      %v1919 = vpop.f32.mrf.mxu0
      %v1920 = vpop.f32.mrf.mxu0
      %v1921 = vadd.f32 0.0, %v1920
      %v1922 = vpop.f32.mrf.mxu0
      %1923 = vmatprep.mubr.bf16.mxu0 0
      %1924 = vmatmul.mubr.bf16.gmra.mxu0 %v1225
      %v1925 = vpop.f32.mrf.mxu0
      %v1926 = vadd.f32 0.0, %v1925
      %v1927 = vpop.f32.mrf.mxu0
      %v1928 = vpop.f32.mrf.mxu0
      %v1929 = vadd.f32 0.0, %v1928
      %v1930 = vpop.f32.mrf.mxu0
      %1931 = vmatprep.mubr.bf16.mxu0 0
      %1932 = vmatmul.mubr.bf16.gmra.mxu0 %v1228
      %v1933 = vpop.f32.mrf.mxu0
      %v1934 = vadd.f32 0.0, %v1933
      %v1935 = vpop.f32.mrf.mxu0
      %v1936 = vpop.f32.mrf.mxu0
      %v1937 = vadd.f32 0.0, %v1936
      %v1938 = vpop.f32.mrf.mxu0
      %1939 = vmatprep.mubr.bf16.mxu0 0
      %1940 = vmatmul.mubr.bf16.gmra.mxu0 %v1231
      %v1941 = vpop.f32.mrf.mxu0
      %v1942 = vadd.f32 0.0, %v1941
      %v1943 = vpop.f32.mrf.mxu0
      %v1944 = vpop.f32.mrf.mxu0
      %v1945 = vadd.f32 0.0, %v1944
      %v1946 = vpop.f32.mrf.mxu0
      %1947 = vmatprep.mubr.bf16.mxu0 0
      %1948 = vmatmul.mubr.bf16.gmra.mxu0 %v1234
      %v1949 = vpop.f32.mrf.mxu0
      %v1950 = vadd.f32 0.0, %v1949
      %v1951 = vpop.f32.mrf.mxu0
      %v1952 = vpop.f32.mrf.mxu0
      %v1953 = vadd.f32 0.0, %v1952
      %v1954 = vpop.f32.mrf.mxu0
      %1955 = vmatprep.mubr.bf16.mxu0 0
      %1956 = vmatmul.mubr.bf16.gmra.mxu0 %v1237
      %v1957 = vpop.f32.mrf.mxu0
      %v1958 = vadd.f32 0.0, %v1957
      %v1959 = vpop.f32.mrf.mxu0
      %v1960 = vpop.f32.mrf.mxu0
      %v1961 = vadd.f32 0.0, %v1960
      %v1962 = vpop.f32.mrf.mxu0
      %1963 = vmatprep.mubr.bf16.mxu0 0
      %1964 = vmatmul.mubr.bf16.gmra.mxu0 %v1240
      %v1965 = vpop.f32.mrf.mxu0
      %v1966 = vadd.f32 0.0, %v1965
      %v1967 = vpop.f32.mrf.mxu0
      %v1968 = vpop.f32.mrf.mxu0
      %v1969 = vadd.f32 0.0, %v1968
      %v1970 = vpop.f32.mrf.mxu0
      %1971 = vmatprep.mubr.bf16.mxu0 0
      %1972 = vmatmul.mubr.bf16.gmra.mxu0 %v1243
      %v1973 = vpop.f32.mrf.mxu0
      %v1974 = vadd.f32 0.0, %v1973
      %v1975 = vpop.f32.mrf.mxu0
      %v1976 = vpop.f32.mrf.mxu0
      %v1977 = vadd.f32 0.0, %v1976
      %v1978 = vpop.f32.mrf.mxu0
      %1979 = vmatprep.mubr.bf16.mxu0 0
      %1980 = vmatmul.mubr.bf16.gmra.mxu0 %v1246
      %v1981 = vpop.f32.mrf.mxu0
      %v1982 = vadd.f32 0.0, %v1981
      %v1983 = vpop.f32.mrf.mxu0
      %v1984 = vpop.f32.mrf.mxu0
      %v1985 = vadd.f32 0.0, %v1984
      %v1986 = vpop.f32.mrf.mxu0
      %1987 = vmatprep.mubr.bf16.mxu0 0
      %1988 = vmatmul.mubr.bf16.gmra.mxu0 %v1249
      %v1989 = vpop.f32.mrf.mxu0
      %v1990 = vadd.f32 0.0, %v1989
      %v1991 = vpop.f32.mrf.mxu0
      %v1992 = vpop.f32.mrf.mxu0
      %v1993 = vadd.f32 0.0, %v1992
      %v1994 = vpop.f32.mrf.mxu0
      %1995 = vmatprep.mubr.bf16.mxu0 0
      %1996 = vmatmul.mubr.bf16.gmra.mxu0 %v1252
      %v1997 = vpop.f32.mrf.mxu0
      %v1998 = vadd.f32 0.0, %v1997
      %v1999 = vpop.f32.mrf.mxu0
      %v2000 = vpop.f32.mrf.mxu0
      %v2001 = vadd.f32 0.0, %v2000
      %v2002 = vpop.f32.mrf.mxu0
      %2003 = vmatprep.mubr.bf16.mxu0 0
      %2004 = vmatmul.mubr.bf16.gmra.mxu0 %v1255
      %v2005 = vpop.f32.mrf.mxu0
      %v2006 = vadd.f32 0.0, %v2005
      %v2007 = vpop.f32.mrf.mxu0
      %v2008 = vpop.f32.mrf.mxu0
      %v2009 = vadd.f32 0.0, %v2008
      %v2010 = vpop.f32.mrf.mxu0
      %2011 = vmatprep.mubr.bf16.mxu0 0
      %2012 = vmatmul.mubr.bf16.gmra.mxu0 %v1854
      %v2013 = vpop.f32.mrf.mxu0
      %v2014 = vadd.f32 0.0, %v2013
      %v2015 = vpop.f32.mrf.mxu0
      %v2016 = vpop.f32.mrf.mxu0
      %v2017 = vadd.f32 0.0, %v2016
      %v2018 = vpop.f32.mrf.mxu0
      %2019 = vdwg.mxu0
      %v2020 = vadd.f32 %v1814, %v1894
      %v2021 = vadd.f32 %v1815, %v1897
      %v2022 = vadd.f32 %v1816, %v1902
      %v2023 = vadd.f32 %v1817, %v1905
      %v2024 = vadd.f32 %v1818, %v1910
      %v2025 = vadd.f32 %v1819, %v1913
      %v2026 = vadd.f32 %v1820, %v1918
      %v2027 = vadd.f32 %v1821, %v1921
      %v2028 = vadd.f32 %v1822, %v1926
      %v2029 = vadd.f32 %v1823, %v1929
      %v2030 = vadd.f32 %v1824, %v1934
      %v2031 = vadd.f32 %v1825, %v1937
      %v2032 = vadd.f32 %v1826, %v1942
      %v2033 = vadd.f32 %v1827, %v1945
      %v2034 = vadd.f32 %v1828, %v1950
      %v2035 = vadd.f32 %v1829, %v1953
      %v2036 = vadd.f32 %v1830, %v1958
      %v2037 = vadd.f32 %v1831, %v1961
      %v2038 = vadd.f32 %v1832, %v1966
      %v2039 = vadd.f32 %v1833, %v1969
      %v2040 = vadd.f32 %v1834, %v1974
      %v2041 = vadd.f32 %v1835, %v1977
      %v2042 = vadd.f32 %v1836, %v1982
      %v2043 = vadd.f32 %v1837, %v1985
      %v2044 = vadd.f32 %v1838, %v1990
      %v2045 = vadd.f32 %v1839, %v1993
      %v2046 = vadd.f32 %v1840, %v1998
      %v2047 = vadd.f32 %v1841, %v2001
      %v2048 = vadd.f32 %v1842, %v2006
      %v2049 = vadd.f32 %v1843, %v2009
      %v2050 = vadd.f32 %v1844, %v2014
      %v2051 = vadd.f32 %v1845, %v2017
      %v2053 = vshrl.u32 %v471, 16
      %v2055 = vrot.slane %v2053, 4
      %v2056 = vshll.u32 %v471, 16
      %v2058 = vrot.slane %v2056, 5
      %v2059 = vor.u32 %v2055, %v2058
      %v2060 = vrot.slane %v2059, 4
      %v2062 = vshll.u32 %v472, 16
      %v2064 = vrot.slane %v2062, 5
      %v2065 = vsel %vm480, %v2060, %v2064
      %v2066 = vshrl.u32 %v472, 16
      %v2068 = vrot.slane %v2066, 4
      %v2069 = vor.u32 %v2068, %v2064
      %v2070 = vrot.slane %v2069, 4
      %v2072 = vshll.u32 %v473, 16
      %v2074 = vrot.slane %v2072, 5
      %v2075 = vsel %vm480, %v2070, %v2074
      %s2076 = scalar_lea.vmem %s3, 8
      %v2077 = vld [vmem:[%s2076] sm:$0x3]
      %v2078 = vunpack.c.l.b16 %v2065
      %v2079 = vunpack.c.l.b16 %v2075
      %v2080 = vpack.c.b16 %v2079, %v2078
      %v2082 = vsel %vm915, %v2080, 0
      %v2085 = vsel %vm964, %v2077, 0
      %2087 = vmatprep.subr.bf16.mxu0 0
      %2088 = vmatpush1.bf16.msra.mxu0 0
      %2089 = vmatprep.subr.bf16.mxu0 0
      %2090 = vmatpush1.bf16.msra.mxu0 0
      %2091 = vmatprep.subr.bf16.mxu0 0
      %2092 = vmatpush1.bf16.msra.mxu0 0
      %2093 = vmatprep.subr.bf16.mxu0 0
      %2094 = vmatpush1.bf16.msra.mxu0 0
      %2095 = vmatprep.subr.bf16.mxu0 0
      %2096 = vmatpush1.bf16.msra.mxu0 0
      %2097 = vmatprep.subr.bf16.mxu0 0
      %2098 = vmatpush1.bf16.msra.mxu0 0
      %2099 = vmatprep.subr.bf16.mxu0 0
      %2100 = vmatpush1.bf16.msra.mxu0 0
      %2101 = vmatprep.subr.bf16.mxu0 0
      %2102 = vmatpush1.bf16.msra.mxu0 %v2085
      %2103 = vmatprep.subr.bf16.mxu0 0
      %2104 = vmatpush2.bf16.msra.mxu0 0
      %2105 = vmatprep.subr.bf16.mxu0 0
      %2106 = vmatpush2.bf16.msra.mxu0 0
      %2107 = vmatprep.subr.bf16.mxu0 0
      %2108 = vmatpush2.bf16.msra.mxu0 0
      %2109 = vmatprep.subr.bf16.mxu0 0
      %2110 = vmatpush2.bf16.msra.mxu0 0
      %2111 = vmatprep.subr.bf16.mxu0 0
      %2112 = vmatpush2.bf16.msra.mxu0 0
      %2113 = vmatprep.subr.bf16.mxu0 0
      %2114 = vmatpush2.bf16.msra.mxu0 0
      %2115 = vmatprep.subr.bf16.mxu0 0
      %2116 = vmatpush2.bf16.msra.mxu0 0
      %2117 = vmatprep.subr.bf16.mxu0 0
      %2118 = vmatpush2.bf16.msra.mxu0 0
      %2119 = vmatprep.mubr.bf16.mxu0 0
      %2120 = vmatmul.mubr.bf16.gmra.mxu0 %v920
      %v2121 = vpop.f32.mrf.mxu0
      %v2122 = vadd.f32 0.0, %v2121
      %v2123 = vpop.f32.mrf.mxu0
      %v2124 = vpop.f32.mrf.mxu0
      %v2125 = vadd.f32 0.0, %v2124
      %v2126 = vpop.f32.mrf.mxu0
      %2127 = vmatprep.mubr.bf16.mxu0 0
      %2128 = vmatmul.mubr.bf16.gmra.mxu0 %v923
      %v2129 = vpop.f32.mrf.mxu0
      %v2130 = vadd.f32 0.0, %v2129
      %v2131 = vpop.f32.mrf.mxu0
      %v2132 = vpop.f32.mrf.mxu0
      %v2133 = vadd.f32 0.0, %v2132
      %v2134 = vpop.f32.mrf.mxu0
      %2135 = vmatprep.mubr.bf16.mxu0 0
      %2136 = vmatmul.mubr.bf16.gmra.mxu0 %v926
      %v2137 = vpop.f32.mrf.mxu0
      %v2138 = vadd.f32 0.0, %v2137
      %v2139 = vpop.f32.mrf.mxu0
      %v2140 = vpop.f32.mrf.mxu0
      %v2141 = vadd.f32 0.0, %v2140
      %v2142 = vpop.f32.mrf.mxu0
      %2143 = vmatprep.mubr.bf16.mxu0 0
      %2144 = vmatmul.mubr.bf16.gmra.mxu0 %v929
      %v2145 = vpop.f32.mrf.mxu0
      %v2146 = vadd.f32 0.0, %v2145
      %v2147 = vpop.f32.mrf.mxu0
      %v2148 = vpop.f32.mrf.mxu0
      %v2149 = vadd.f32 0.0, %v2148
      %v2150 = vpop.f32.mrf.mxu0
      %2151 = vmatprep.mubr.bf16.mxu0 0
      %2152 = vmatmul.mubr.bf16.gmra.mxu0 %v932
      %v2153 = vpop.f32.mrf.mxu0
      %v2154 = vadd.f32 0.0, %v2153
      %v2155 = vpop.f32.mrf.mxu0
      %v2156 = vpop.f32.mrf.mxu0
      %v2157 = vadd.f32 0.0, %v2156
      %v2158 = vpop.f32.mrf.mxu0
      %2159 = vmatprep.mubr.bf16.mxu0 0
      %2160 = vmatmul.mubr.bf16.gmra.mxu0 %v935
      %v2161 = vpop.f32.mrf.mxu0
      %v2162 = vadd.f32 0.0, %v2161
      %v2163 = vpop.f32.mrf.mxu0
      %v2164 = vpop.f32.mrf.mxu0
      %v2165 = vadd.f32 0.0, %v2164
      %v2166 = vpop.f32.mrf.mxu0
      %2167 = vmatprep.mubr.bf16.mxu0 0
      %2168 = vmatmul.mubr.bf16.gmra.mxu0 %v938
      %v2169 = vpop.f32.mrf.mxu0
      %v2170 = vadd.f32 0.0, %v2169
      %v2171 = vpop.f32.mrf.mxu0
      %v2172 = vpop.f32.mrf.mxu0
      %v2173 = vadd.f32 0.0, %v2172
      %v2174 = vpop.f32.mrf.mxu0
      %2175 = vmatprep.mubr.bf16.mxu0 0
      %2176 = vmatmul.mubr.bf16.gmra.mxu0 %v941
      %v2177 = vpop.f32.mrf.mxu0
      %v2178 = vadd.f32 0.0, %v2177
      %v2179 = vpop.f32.mrf.mxu0
      %v2180 = vpop.f32.mrf.mxu0
      %v2181 = vadd.f32 0.0, %v2180
      %v2182 = vpop.f32.mrf.mxu0
      %2183 = vmatprep.mubr.bf16.mxu0 0
      %2184 = vmatmul.mubr.bf16.gmra.mxu0 %v944
      %v2185 = vpop.f32.mrf.mxu0
      %v2186 = vadd.f32 0.0, %v2185
      %v2187 = vpop.f32.mrf.mxu0
      %v2188 = vpop.f32.mrf.mxu0
      %v2189 = vadd.f32 0.0, %v2188
      %v2190 = vpop.f32.mrf.mxu0
      %2191 = vmatprep.mubr.bf16.mxu0 0
      %2192 = vmatmul.mubr.bf16.gmra.mxu0 %v947
      %v2193 = vpop.f32.mrf.mxu0
      %v2194 = vadd.f32 0.0, %v2193
      %v2195 = vpop.f32.mrf.mxu0
      %v2196 = vpop.f32.mrf.mxu0
      %v2197 = vadd.f32 0.0, %v2196
      %v2198 = vpop.f32.mrf.mxu0
      %2199 = vmatprep.mubr.bf16.mxu0 0
      %2200 = vmatmul.mubr.bf16.gmra.mxu0 %v950
      %v2201 = vpop.f32.mrf.mxu0
      %v2202 = vadd.f32 0.0, %v2201
      %v2203 = vpop.f32.mrf.mxu0
      %v2204 = vpop.f32.mrf.mxu0
      %v2205 = vadd.f32 0.0, %v2204
      %v2206 = vpop.f32.mrf.mxu0
      %2207 = vmatprep.mubr.bf16.mxu0 0
      %2208 = vmatmul.mubr.bf16.gmra.mxu0 %v953
      %v2209 = vpop.f32.mrf.mxu0
      %v2210 = vadd.f32 0.0, %v2209
      %v2211 = vpop.f32.mrf.mxu0
      %v2212 = vpop.f32.mrf.mxu0
      %v2213 = vadd.f32 0.0, %v2212
      %v2214 = vpop.f32.mrf.mxu0
      %2215 = vmatprep.mubr.bf16.mxu0 0
      %2216 = vmatmul.mubr.bf16.gmra.mxu0 %v956
      %v2217 = vpop.f32.mrf.mxu0
      %v2218 = vadd.f32 0.0, %v2217
      %v2219 = vpop.f32.mrf.mxu0
      %v2220 = vpop.f32.mrf.mxu0
      %v2221 = vadd.f32 0.0, %v2220
      %v2222 = vpop.f32.mrf.mxu0
      %2223 = vmatprep.mubr.bf16.mxu0 0
      %2224 = vmatmul.mubr.bf16.gmra.mxu0 %v959
      %v2225 = vpop.f32.mrf.mxu0
      %v2226 = vadd.f32 0.0, %v2225
      %v2227 = vpop.f32.mrf.mxu0
      %v2228 = vpop.f32.mrf.mxu0
      %v2229 = vadd.f32 0.0, %v2228
      %v2230 = vpop.f32.mrf.mxu0
      %2231 = vmatprep.mubr.bf16.mxu0 0
      %2232 = vmatmul.mubr.bf16.gmra.mxu0 %v962
      %v2233 = vpop.f32.mrf.mxu0
      %v2234 = vadd.f32 0.0, %v2233
      %v2235 = vpop.f32.mrf.mxu0
      %v2236 = vpop.f32.mrf.mxu0
      %v2237 = vadd.f32 0.0, %v2236
      %v2238 = vpop.f32.mrf.mxu0
      %2239 = vmatprep.mubr.bf16.mxu0 0
      %2240 = vmatmul.mubr.bf16.gmra.mxu0 %v2082
      %v2241 = vpop.f32.mrf.mxu0
      %v2242 = vadd.f32 0.0, %v2241
      %v2243 = vpop.f32.mrf.mxu0
      %v2244 = vpop.f32.mrf.mxu0
      %v2245 = vadd.f32 0.0, %v2244
      %v2246 = vpop.f32.mrf.mxu0
      %2247 = vdwg.mxu0
      %v2248 = vadd.f32 %v2020, %v2122
      %v2249 = vadd.f32 %v2021, %v2125
      %v2250 = vadd.f32 %v2022, %v2130
      %v2251 = vadd.f32 %v2023, %v2133
      %v2252 = vadd.f32 %v2024, %v2138
      %v2253 = vadd.f32 %v2025, %v2141
      %v2254 = vadd.f32 %v2026, %v2146
      %v2255 = vadd.f32 %v2027, %v2149
      %v2256 = vadd.f32 %v2028, %v2154
      %v2257 = vadd.f32 %v2029, %v2157
      %v2258 = vadd.f32 %v2030, %v2162
      %v2259 = vadd.f32 %v2031, %v2165
      %v2260 = vadd.f32 %v2032, %v2170
      %v2261 = vadd.f32 %v2033, %v2173
      %v2262 = vadd.f32 %v2034, %v2178
      %v2263 = vadd.f32 %v2035, %v2181
      %v2264 = vadd.f32 %v2036, %v2186
      %v2265 = vadd.f32 %v2037, %v2189
      %v2266 = vadd.f32 %v2038, %v2194
      %v2267 = vadd.f32 %v2039, %v2197
      %v2268 = vadd.f32 %v2040, %v2202
      %v2269 = vadd.f32 %v2041, %v2205
      %v2270 = vadd.f32 %v2042, %v2210
      %v2271 = vadd.f32 %v2043, %v2213
      %v2272 = vadd.f32 %v2044, %v2218
      %v2273 = vadd.f32 %v2045, %v2221
      %v2274 = vadd.f32 %v2046, %v2226
      %v2275 = vadd.f32 %v2047, %v2229
      %v2276 = vadd.f32 %v2048, %v2234
      %v2277 = vadd.f32 %v2049, %v2237
      %v2278 = vadd.f32 %v2050, %v2242
      %v2279 = vadd.f32 %v2051, %v2245
      %v2281 = vrot.slane %v471, 5
      %v2282 = vrot.slane %v2281, 4
      %v2283 = vrot.slane %v472, 5
      %v2284 = vsel %vm1439, %v2282, %v2283
      %v2285 = vrot.slane %v2283, 4
      %v2286 = vrot.slane %v473, 5
      %v2287 = vsel %vm1439, %v2285, %v2286
      %s2288 = scalar_lea.vmem %s3, 10
      %v2289 = vld [vmem:[%s2288] sm:$0x3]
      %v2290 = vunpack.c.l.b16 %v2284
      %v2291 = vunpack.c.l.b16 %v2287
      %v2292 = vpack.c.b16 %v2291, %v2290
      %v2294 = vsel %vm915, %v2292, 0
      %v2297 = vsel %vm964, %v2289, 0
      %2299 = vmatprep.subr.bf16.mxu0 0
      %2300 = vmatpush1.bf16.msra.mxu0 0
      %2301 = vmatprep.subr.bf16.mxu0 0
      %2302 = vmatpush1.bf16.msra.mxu0 0
      %2303 = vmatprep.subr.bf16.mxu0 0
      %2304 = vmatpush1.bf16.msra.mxu0 0
      %2305 = vmatprep.subr.bf16.mxu0 0
      %2306 = vmatpush1.bf16.msra.mxu0 0
      %2307 = vmatprep.subr.bf16.mxu0 0
      %2308 = vmatpush1.bf16.msra.mxu0 0
      %2309 = vmatprep.subr.bf16.mxu0 0
      %2310 = vmatpush1.bf16.msra.mxu0 0
      %2311 = vmatprep.subr.bf16.mxu0 0
      %2312 = vmatpush1.bf16.msra.mxu0 0
      %2313 = vmatprep.subr.bf16.mxu0 0
      %2314 = vmatpush1.bf16.msra.mxu0 %v2297
      %2315 = vmatprep.subr.bf16.mxu0 0
      %2316 = vmatpush2.bf16.msra.mxu0 0
      %2317 = vmatprep.subr.bf16.mxu0 0
      %2318 = vmatpush2.bf16.msra.mxu0 0
      %2319 = vmatprep.subr.bf16.mxu0 0
      %2320 = vmatpush2.bf16.msra.mxu0 0
      %2321 = vmatprep.subr.bf16.mxu0 0
      %2322 = vmatpush2.bf16.msra.mxu0 0
      %2323 = vmatprep.subr.bf16.mxu0 0
      %2324 = vmatpush2.bf16.msra.mxu0 0
      %2325 = vmatprep.subr.bf16.mxu0 0
      %2326 = vmatpush2.bf16.msra.mxu0 0
      %2327 = vmatprep.subr.bf16.mxu0 0
      %2328 = vmatpush2.bf16.msra.mxu0 0
      %2329 = vmatprep.subr.bf16.mxu0 0
      %2330 = vmatpush2.bf16.msra.mxu0 0
      %2331 = vmatprep.mubr.bf16.mxu0 0
      %2332 = vmatmul.mubr.bf16.gmra.mxu0 %v1606
      %v2333 = vpop.f32.mrf.mxu0
      %v2334 = vadd.f32 0.0, %v2333
      %v2335 = vpop.f32.mrf.mxu0
      %v2336 = vpop.f32.mrf.mxu0
      %v2337 = vadd.f32 0.0, %v2336
      %v2338 = vpop.f32.mrf.mxu0
      %2339 = vmatprep.mubr.bf16.mxu0 0
      %2340 = vmatmul.mubr.bf16.gmra.mxu0 %v1609
      %v2341 = vpop.f32.mrf.mxu0
      %v2342 = vadd.f32 0.0, %v2341
      %v2343 = vpop.f32.mrf.mxu0
      %v2344 = vpop.f32.mrf.mxu0
      %v2345 = vadd.f32 0.0, %v2344
      %v2346 = vpop.f32.mrf.mxu0
      %2347 = vmatprep.mubr.bf16.mxu0 0
      %2348 = vmatmul.mubr.bf16.gmra.mxu0 %v1612
      %v2349 = vpop.f32.mrf.mxu0
      %v2350 = vadd.f32 0.0, %v2349
      %v2351 = vpop.f32.mrf.mxu0
      %v2352 = vpop.f32.mrf.mxu0
      %v2353 = vadd.f32 0.0, %v2352
      %v2354 = vpop.f32.mrf.mxu0
      %2355 = vmatprep.mubr.bf16.mxu0 0
      %2356 = vmatmul.mubr.bf16.gmra.mxu0 %v1615
      %v2357 = vpop.f32.mrf.mxu0
      %v2358 = vadd.f32 0.0, %v2357
      %v2359 = vpop.f32.mrf.mxu0
      %v2360 = vpop.f32.mrf.mxu0
      %v2361 = vadd.f32 0.0, %v2360
      %v2362 = vpop.f32.mrf.mxu0
      %2363 = vmatprep.mubr.bf16.mxu0 0
      %2364 = vmatmul.mubr.bf16.gmra.mxu0 %v1618
      %v2365 = vpop.f32.mrf.mxu0
      %v2366 = vadd.f32 0.0, %v2365
      %v2367 = vpop.f32.mrf.mxu0
      %v2368 = vpop.f32.mrf.mxu0
      %v2369 = vadd.f32 0.0, %v2368
      %v2370 = vpop.f32.mrf.mxu0
      %2371 = vmatprep.mubr.bf16.mxu0 0
      %2372 = vmatmul.mubr.bf16.gmra.mxu0 %v1621
      %v2373 = vpop.f32.mrf.mxu0
      %v2374 = vadd.f32 0.0, %v2373
      %v2375 = vpop.f32.mrf.mxu0
      %v2376 = vpop.f32.mrf.mxu0
      %v2377 = vadd.f32 0.0, %v2376
      %v2378 = vpop.f32.mrf.mxu0
      %2379 = vmatprep.mubr.bf16.mxu0 0
      %2380 = vmatmul.mubr.bf16.gmra.mxu0 %v1624
      %v2381 = vpop.f32.mrf.mxu0
      %v2382 = vadd.f32 0.0, %v2381
      %v2383 = vpop.f32.mrf.mxu0
      %v2384 = vpop.f32.mrf.mxu0
      %v2385 = vadd.f32 0.0, %v2384
      %v2386 = vpop.f32.mrf.mxu0
      %2387 = vmatprep.mubr.bf16.mxu0 0
      %2388 = vmatmul.mubr.bf16.gmra.mxu0 %v1627
      %v2389 = vpop.f32.mrf.mxu0
      %v2390 = vadd.f32 0.0, %v2389
      %v2391 = vpop.f32.mrf.mxu0
      %v2392 = vpop.f32.mrf.mxu0
      %v2393 = vadd.f32 0.0, %v2392
      %v2394 = vpop.f32.mrf.mxu0
      %2395 = vmatprep.mubr.bf16.mxu0 0
      %2396 = vmatmul.mubr.bf16.gmra.mxu0 %v1630
      %v2397 = vpop.f32.mrf.mxu0
      %v2398 = vadd.f32 0.0, %v2397
      %v2399 = vpop.f32.mrf.mxu0
      %v2400 = vpop.f32.mrf.mxu0
      %v2401 = vadd.f32 0.0, %v2400
      %v2402 = vpop.f32.mrf.mxu0
      %2403 = vmatprep.mubr.bf16.mxu0 0
      %2404 = vmatmul.mubr.bf16.gmra.mxu0 %v1633
      %v2405 = vpop.f32.mrf.mxu0
      %v2406 = vadd.f32 0.0, %v2405
      %v2407 = vpop.f32.mrf.mxu0
      %v2408 = vpop.f32.mrf.mxu0
      %v2409 = vadd.f32 0.0, %v2408
      %v2410 = vpop.f32.mrf.mxu0
      %2411 = vmatprep.mubr.bf16.mxu0 0
      %2412 = vmatmul.mubr.bf16.gmra.mxu0 %v1636
      %v2413 = vpop.f32.mrf.mxu0
      %v2414 = vadd.f32 0.0, %v2413
      %v2415 = vpop.f32.mrf.mxu0
      %v2416 = vpop.f32.mrf.mxu0
      %v2417 = vadd.f32 0.0, %v2416
      %v2418 = vpop.f32.mrf.mxu0
      %2419 = vmatprep.mubr.bf16.mxu0 0
      %2420 = vmatmul.mubr.bf16.gmra.mxu0 %v1639
      %v2421 = vpop.f32.mrf.mxu0
      %v2422 = vadd.f32 0.0, %v2421
      %v2423 = vpop.f32.mrf.mxu0
      %v2424 = vpop.f32.mrf.mxu0
      %v2425 = vadd.f32 0.0, %v2424
      %v2426 = vpop.f32.mrf.mxu0
      %2427 = vmatprep.mubr.bf16.mxu0 0
      %2428 = vmatmul.mubr.bf16.gmra.mxu0 %v1642
      %v2429 = vpop.f32.mrf.mxu0
      %v2430 = vadd.f32 0.0, %v2429
      %v2431 = vpop.f32.mrf.mxu0
      %v2432 = vpop.f32.mrf.mxu0
      %v2433 = vadd.f32 0.0, %v2432
      %v2434 = vpop.f32.mrf.mxu0
      %2435 = vmatprep.mubr.bf16.mxu0 0
      %2436 = vmatmul.mubr.bf16.gmra.mxu0 %v1645
      %v2437 = vpop.f32.mrf.mxu0
      %v2438 = vadd.f32 0.0, %v2437
      %v2439 = vpop.f32.mrf.mxu0
      %v2440 = vpop.f32.mrf.mxu0
      %v2441 = vadd.f32 0.0, %v2440
      %v2442 = vpop.f32.mrf.mxu0
      %2443 = vmatprep.mubr.bf16.mxu0 0
      %2444 = vmatmul.mubr.bf16.gmra.mxu0 %v1648
      %v2445 = vpop.f32.mrf.mxu0
      %v2446 = vadd.f32 0.0, %v2445
      %v2447 = vpop.f32.mrf.mxu0
      %v2448 = vpop.f32.mrf.mxu0
      %v2449 = vadd.f32 0.0, %v2448
      %v2450 = vpop.f32.mrf.mxu0
      %2451 = vmatprep.mubr.bf16.mxu0 0
      %2452 = vmatmul.mubr.bf16.gmra.mxu0 %v2294
      %v2453 = vpop.f32.mrf.mxu0
      %v2454 = vadd.f32 0.0, %v2453
      %v2455 = vpop.f32.mrf.mxu0
      %v2456 = vpop.f32.mrf.mxu0
      %v2457 = vadd.f32 0.0, %v2456
      %v2458 = vpop.f32.mrf.mxu0
      %2459 = vdwg.mxu0
      %v2460 = vadd.f32 %v2248, %v2334
      %v2461 = vadd.f32 %v2249, %v2337
      %v2462 = vadd.f32 %v2250, %v2342
      %v2463 = vadd.f32 %v2251, %v2345
      %v2464 = vadd.f32 %v2252, %v2350
      %v2465 = vadd.f32 %v2253, %v2353
      %v2466 = vadd.f32 %v2254, %v2358
      %v2467 = vadd.f32 %v2255, %v2361
      %v2468 = vadd.f32 %v2256, %v2366
      %v2469 = vadd.f32 %v2257, %v2369
      %v2470 = vadd.f32 %v2258, %v2374
      %v2471 = vadd.f32 %v2259, %v2377
      %v2472 = vadd.f32 %v2260, %v2382
      %v2473 = vadd.f32 %v2261, %v2385
      %v2474 = vadd.f32 %v2262, %v2390
      %v2475 = vadd.f32 %v2263, %v2393
      %v2476 = vadd.f32 %v2264, %v2398
      %v2477 = vadd.f32 %v2265, %v2401
      %v2478 = vadd.f32 %v2266, %v2406
      %v2479 = vadd.f32 %v2267, %v2409
      %v2480 = vadd.f32 %v2268, %v2414
      %v2481 = vadd.f32 %v2269, %v2417
      %v2482 = vadd.f32 %v2270, %v2422
      %v2483 = vadd.f32 %v2271, %v2425
      %v2484 = vadd.f32 %v2272, %v2430
      %v2485 = vadd.f32 %v2273, %v2433
      %v2486 = vadd.f32 %v2274, %v2438
      %v2487 = vadd.f32 %v2275, %v2441
      %v2488 = vadd.f32 %v2276, %v2446
      %v2489 = vadd.f32 %v2277, %v2449
      %v2490 = vadd.f32 %v2278, %v2454
      %v2491 = vadd.f32 %v2279, %v2457
      %s2492 = scalar_lea.vmem %s3, 12
      %v2493 = vld [vmem:[%s2492] sm:$0x3]
      %v2496 = vunpack.c.l.b16 %v474
      %v2497 = vunpack.c.l.b16 %v475
      %v2498 = vpack.c.b16 %v2497, %v2496
      %v2500 = vsel %vm915, %v2498, 0
      %v2503 = vsel %vm964, %v2493, 0
      %2505 = vmatprep.subr.bf16.mxu0 0
      %2506 = vmatpush1.bf16.msra.mxu0 0
      %2507 = vmatprep.subr.bf16.mxu0 0
      %2508 = vmatpush1.bf16.msra.mxu0 0
      %2509 = vmatprep.subr.bf16.mxu0 0
      %2510 = vmatpush1.bf16.msra.mxu0 0
      %2511 = vmatprep.subr.bf16.mxu0 0
      %2512 = vmatpush1.bf16.msra.mxu0 0
      %2513 = vmatprep.subr.bf16.mxu0 0
      %2514 = vmatpush1.bf16.msra.mxu0 0
      %2515 = vmatprep.subr.bf16.mxu0 0
      %2516 = vmatpush1.bf16.msra.mxu0 0
      %2517 = vmatprep.subr.bf16.mxu0 0
      %2518 = vmatpush1.bf16.msra.mxu0 0
      %2519 = vmatprep.subr.bf16.mxu0 0
      %2520 = vmatpush1.bf16.msra.mxu0 %v2503
      %2521 = vmatprep.subr.bf16.mxu0 0
      %2522 = vmatpush2.bf16.msra.mxu0 0
      %2523 = vmatprep.subr.bf16.mxu0 0
      %2524 = vmatpush2.bf16.msra.mxu0 0
      %2525 = vmatprep.subr.bf16.mxu0 0
      %2526 = vmatpush2.bf16.msra.mxu0 0
      %2527 = vmatprep.subr.bf16.mxu0 0
      %2528 = vmatpush2.bf16.msra.mxu0 0
      %2529 = vmatprep.subr.bf16.mxu0 0
      %2530 = vmatpush2.bf16.msra.mxu0 0
      %2531 = vmatprep.subr.bf16.mxu0 0
      %2532 = vmatpush2.bf16.msra.mxu0 0
      %2533 = vmatprep.subr.bf16.mxu0 0
      %2534 = vmatpush2.bf16.msra.mxu0 0
      %2535 = vmatprep.subr.bf16.mxu0 0
      %2536 = vmatpush2.bf16.msra.mxu0 0
      %2537 = vmatprep.mubr.bf16.mxu0 0
      %2538 = vmatmul.mubr.bf16.gmra.mxu0 %v1216
      %v2539 = vpop.f32.mrf.mxu0
      %v2540 = vadd.f32 0.0, %v2539
      %v2541 = vpop.f32.mrf.mxu0
      %v2542 = vpop.f32.mrf.mxu0
      %v2543 = vadd.f32 0.0, %v2542
      %v2544 = vpop.f32.mrf.mxu0
      %2545 = vmatprep.mubr.bf16.mxu0 0
      %2546 = vmatmul.mubr.bf16.gmra.mxu0 %v1219
      %v2547 = vpop.f32.mrf.mxu0
      %v2548 = vadd.f32 0.0, %v2547
      %v2549 = vpop.f32.mrf.mxu0
      %v2550 = vpop.f32.mrf.mxu0
      %v2551 = vadd.f32 0.0, %v2550
      %v2552 = vpop.f32.mrf.mxu0
      %2553 = vmatprep.mubr.bf16.mxu0 0
      %2554 = vmatmul.mubr.bf16.gmra.mxu0 %v1222
      %v2555 = vpop.f32.mrf.mxu0
      %v2556 = vadd.f32 0.0, %v2555
      %v2557 = vpop.f32.mrf.mxu0
      %v2558 = vpop.f32.mrf.mxu0
      %v2559 = vadd.f32 0.0, %v2558
      %v2560 = vpop.f32.mrf.mxu0
      %2561 = vmatprep.mubr.bf16.mxu0 0
      %2562 = vmatmul.mubr.bf16.gmra.mxu0 %v1225
      %v2563 = vpop.f32.mrf.mxu0
      %v2564 = vadd.f32 0.0, %v2563
      %v2565 = vpop.f32.mrf.mxu0
      %v2566 = vpop.f32.mrf.mxu0
      %v2567 = vadd.f32 0.0, %v2566
      %v2568 = vpop.f32.mrf.mxu0
      %2569 = vmatprep.mubr.bf16.mxu0 0
      %2570 = vmatmul.mubr.bf16.gmra.mxu0 %v1228
      %v2571 = vpop.f32.mrf.mxu0
      %v2572 = vadd.f32 0.0, %v2571
      %v2573 = vpop.f32.mrf.mxu0
      %v2574 = vpop.f32.mrf.mxu0
      %v2575 = vadd.f32 0.0, %v2574
      %v2576 = vpop.f32.mrf.mxu0
      %2577 = vmatprep.mubr.bf16.mxu0 0
      %2578 = vmatmul.mubr.bf16.gmra.mxu0 %v1231
      %v2579 = vpop.f32.mrf.mxu0
      %v2580 = vadd.f32 0.0, %v2579
      %v2581 = vpop.f32.mrf.mxu0
      %v2582 = vpop.f32.mrf.mxu0
      %v2583 = vadd.f32 0.0, %v2582
      %v2584 = vpop.f32.mrf.mxu0
      %2585 = vmatprep.mubr.bf16.mxu0 0
      %2586 = vmatmul.mubr.bf16.gmra.mxu0 %v1234
      %v2587 = vpop.f32.mrf.mxu0
      %v2588 = vadd.f32 0.0, %v2587
      %v2589 = vpop.f32.mrf.mxu0
      %v2590 = vpop.f32.mrf.mxu0
      %v2591 = vadd.f32 0.0, %v2590
      %v2592 = vpop.f32.mrf.mxu0
      %2593 = vmatprep.mubr.bf16.mxu0 0
      %2594 = vmatmul.mubr.bf16.gmra.mxu0 %v1237
      %v2595 = vpop.f32.mrf.mxu0
      %v2596 = vadd.f32 0.0, %v2595
      %v2597 = vpop.f32.mrf.mxu0
      %v2598 = vpop.f32.mrf.mxu0
      %v2599 = vadd.f32 0.0, %v2598
      %v2600 = vpop.f32.mrf.mxu0
      %2601 = vmatprep.mubr.bf16.mxu0 0
      %2602 = vmatmul.mubr.bf16.gmra.mxu0 %v1240
      %v2603 = vpop.f32.mrf.mxu0
      %v2604 = vadd.f32 0.0, %v2603
      %v2605 = vpop.f32.mrf.mxu0
      %v2606 = vpop.f32.mrf.mxu0
      %v2607 = vadd.f32 0.0, %v2606
      %v2608 = vpop.f32.mrf.mxu0
      %2609 = vmatprep.mubr.bf16.mxu0 0
      %2610 = vmatmul.mubr.bf16.gmra.mxu0 %v1243
      %v2611 = vpop.f32.mrf.mxu0
      %v2612 = vadd.f32 0.0, %v2611
      %v2613 = vpop.f32.mrf.mxu0
      %v2614 = vpop.f32.mrf.mxu0
      %v2615 = vadd.f32 0.0, %v2614
      %v2616 = vpop.f32.mrf.mxu0
      %2617 = vmatprep.mubr.bf16.mxu0 0
      %2618 = vmatmul.mubr.bf16.gmra.mxu0 %v1246
      %v2619 = vpop.f32.mrf.mxu0
      %v2620 = vadd.f32 0.0, %v2619
      %v2621 = vpop.f32.mrf.mxu0
      %v2622 = vpop.f32.mrf.mxu0
      %v2623 = vadd.f32 0.0, %v2622
      %v2624 = vpop.f32.mrf.mxu0
      %2625 = vmatprep.mubr.bf16.mxu0 0
      %2626 = vmatmul.mubr.bf16.gmra.mxu0 %v1249
      %v2627 = vpop.f32.mrf.mxu0
      %v2628 = vadd.f32 0.0, %v2627
      %v2629 = vpop.f32.mrf.mxu0
      %v2630 = vpop.f32.mrf.mxu0
      %v2631 = vadd.f32 0.0, %v2630
      %v2632 = vpop.f32.mrf.mxu0
      %2633 = vmatprep.mubr.bf16.mxu0 0
      %2634 = vmatmul.mubr.bf16.gmra.mxu0 %v1252
      %v2635 = vpop.f32.mrf.mxu0
      %v2636 = vadd.f32 0.0, %v2635
      %v2637 = vpop.f32.mrf.mxu0
      %v2638 = vpop.f32.mrf.mxu0
      %v2639 = vadd.f32 0.0, %v2638
      %v2640 = vpop.f32.mrf.mxu0
      %2641 = vmatprep.mubr.bf16.mxu0 0
      %2642 = vmatmul.mubr.bf16.gmra.mxu0 %v1255
      %v2643 = vpop.f32.mrf.mxu0
      %v2644 = vadd.f32 0.0, %v2643
      %v2645 = vpop.f32.mrf.mxu0
      %v2646 = vpop.f32.mrf.mxu0
      %v2647 = vadd.f32 0.0, %v2646
      %v2648 = vpop.f32.mrf.mxu0
      %2649 = vmatprep.mubr.bf16.mxu0 0
      %2650 = vmatmul.mubr.bf16.gmra.mxu0 %v1854
      %v2651 = vpop.f32.mrf.mxu0
      %v2652 = vadd.f32 0.0, %v2651
      %v2653 = vpop.f32.mrf.mxu0
      %v2654 = vpop.f32.mrf.mxu0
      %v2655 = vadd.f32 0.0, %v2654
      %v2656 = vpop.f32.mrf.mxu0
      %2657 = vmatprep.mubr.bf16.mxu0 0
      %2658 = vmatmul.mubr.bf16.gmra.mxu0 %v2500
      %v2659 = vpop.f32.mrf.mxu0
      %v2660 = vadd.f32 0.0, %v2659
      %v2661 = vpop.f32.mrf.mxu0
      %v2662 = vpop.f32.mrf.mxu0
      %v2663 = vadd.f32 0.0, %v2662
      %v2664 = vpop.f32.mrf.mxu0
      %2665 = vdwg.mxu0
      %v2666 = vadd.f32 %v2460, %v2540
      %v2667 = vadd.f32 %v2461, %v2543
      %v2668 = vadd.f32 %v2462, %v2548
      %v2669 = vadd.f32 %v2463, %v2551
      %v2670 = vadd.f32 %v2464, %v2556
      %v2671 = vadd.f32 %v2465, %v2559
      %v2672 = vadd.f32 %v2466, %v2564
      %v2673 = vadd.f32 %v2467, %v2567
      %v2674 = vadd.f32 %v2468, %v2572
      %v2675 = vadd.f32 %v2469, %v2575
      %v2676 = vadd.f32 %v2470, %v2580
      %v2677 = vadd.f32 %v2471, %v2583
      %v2678 = vadd.f32 %v2472, %v2588
      %v2679 = vadd.f32 %v2473, %v2591
      %v2680 = vadd.f32 %v2474, %v2596
      %v2681 = vadd.f32 %v2475, %v2599
      %v2682 = vadd.f32 %v2476, %v2604
      %v2683 = vadd.f32 %v2477, %v2607
      %v2684 = vadd.f32 %v2478, %v2612
      %v2685 = vadd.f32 %v2479, %v2615
      %v2686 = vadd.f32 %v2480, %v2620
      %v2687 = vadd.f32 %v2481, %v2623
      %v2688 = vadd.f32 %v2482, %v2628
      %v2689 = vadd.f32 %v2483, %v2631
      %v2690 = vadd.f32 %v2484, %v2636
      %v2691 = vadd.f32 %v2485, %v2639
      %v2692 = vadd.f32 %v2486, %v2644
      %v2693 = vadd.f32 %v2487, %v2647
      %v2694 = vadd.f32 %v2488, %v2652
      %v2695 = vadd.f32 %v2489, %v2655
      %v2696 = vadd.f32 %v2490, %v2660
      %v2697 = vadd.f32 %v2491, %v2663
      %v2699 = vshrl.u32 %v474, 16
      %v2701 = vrot.slane %v2699, 4
      %v2702 = vshll.u32 %v474, 16
      %v2704 = vrot.slane %v2702, 5
      %v2705 = vor.u32 %v2701, %v2704
      %v2706 = vrot.slane %v2705, 4
      %v2708 = vshll.u32 %v475, 16
      %v2710 = vrot.slane %v2708, 5
      %v2711 = vsel %vm480, %v2706, %v2710
      %v2712 = vshrl.u32 %v475, 16
      %v2714 = vrot.slane %v2712, 4
      %v2715 = vor.u32 %v2714, %v2710
      %v2716 = vrot.slane %v2715, 4
      %v2718 = vshll.u32 %v476, 16
      %v2720 = vrot.slane %v2718, 5
      %v2721 = vsel %vm480, %v2716, %v2720
      %s2722 = scalar_lea.vmem %s3, 14
      %v2723 = vld [vmem:[%s2722] sm:$0x3]
      %v2724 = vunpack.c.l.b16 %v2711
      %v2725 = vunpack.c.l.b16 %v2721
      %v2726 = vpack.c.b16 %v2725, %v2724
      %v2728 = vsel %vm915, %v2726, 0
      %v2731 = vsel %vm964, %v2723, 0
      %2733 = vmatprep.subr.bf16.mxu0 0
      %2734 = vmatpush1.bf16.msra.mxu0 0
      %2735 = vmatprep.subr.bf16.mxu0 0
      %2736 = vmatpush1.bf16.msra.mxu0 0
      %2737 = vmatprep.subr.bf16.mxu0 0
      %2738 = vmatpush1.bf16.msra.mxu0 0
      %2739 = vmatprep.subr.bf16.mxu0 0
      %2740 = vmatpush1.bf16.msra.mxu0 0
      %2741 = vmatprep.subr.bf16.mxu0 0
      %2742 = vmatpush1.bf16.msra.mxu0 0
      %2743 = vmatprep.subr.bf16.mxu0 0
      %2744 = vmatpush1.bf16.msra.mxu0 0
      %2745 = vmatprep.subr.bf16.mxu0 0
      %2746 = vmatpush1.bf16.msra.mxu0 0
      %2747 = vmatprep.subr.bf16.mxu0 0
      %2748 = vmatpush1.bf16.msra.mxu0 %v2731
      %2749 = vmatprep.subr.bf16.mxu0 0
      %2750 = vmatpush2.bf16.msra.mxu0 0
      %2751 = vmatprep.subr.bf16.mxu0 0
      %2752 = vmatpush2.bf16.msra.mxu0 0
      %2753 = vmatprep.subr.bf16.mxu0 0
      %2754 = vmatpush2.bf16.msra.mxu0 0
      %2755 = vmatprep.subr.bf16.mxu0 0
      %2756 = vmatpush2.bf16.msra.mxu0 0
      %2757 = vmatprep.subr.bf16.mxu0 0
      %2758 = vmatpush2.bf16.msra.mxu0 0
      %2759 = vmatprep.subr.bf16.mxu0 0
      %2760 = vmatpush2.bf16.msra.mxu0 0
      %2761 = vmatprep.subr.bf16.mxu0 0
      %2762 = vmatpush2.bf16.msra.mxu0 0
      %2763 = vmatprep.subr.bf16.mxu0 0
      %2764 = vmatpush2.bf16.msra.mxu0 0
      %2765 = vmatprep.mubr.bf16.mxu0 0
      %2766 = vmatmul.mubr.bf16.gmra.mxu0 %v923
      %v2767 = vpop.f32.mrf.mxu0
      %v2768 = vadd.f32 0.0, %v2767
      %v2769 = vpop.f32.mrf.mxu0
      %v2770 = vpop.f32.mrf.mxu0
      %v2771 = vadd.f32 0.0, %v2770
      %v2772 = vpop.f32.mrf.mxu0
      %2773 = vmatprep.mubr.bf16.mxu0 0
      %2774 = vmatmul.mubr.bf16.gmra.mxu0 %v926
      %v2775 = vpop.f32.mrf.mxu0
      %v2776 = vadd.f32 0.0, %v2775
      %v2777 = vpop.f32.mrf.mxu0
      %v2778 = vpop.f32.mrf.mxu0
      %v2779 = vadd.f32 0.0, %v2778
      %v2780 = vpop.f32.mrf.mxu0
      %2781 = vmatprep.mubr.bf16.mxu0 0
      %2782 = vmatmul.mubr.bf16.gmra.mxu0 %v929
      %v2783 = vpop.f32.mrf.mxu0
      %v2784 = vadd.f32 0.0, %v2783
      %v2785 = vpop.f32.mrf.mxu0
      %v2786 = vpop.f32.mrf.mxu0
      %v2787 = vadd.f32 0.0, %v2786
      %v2788 = vpop.f32.mrf.mxu0
      %2789 = vmatprep.mubr.bf16.mxu0 0
      %2790 = vmatmul.mubr.bf16.gmra.mxu0 %v932
      %v2791 = vpop.f32.mrf.mxu0
      %v2792 = vadd.f32 0.0, %v2791
      %v2793 = vpop.f32.mrf.mxu0
      %v2794 = vpop.f32.mrf.mxu0
      %v2795 = vadd.f32 0.0, %v2794
      %v2796 = vpop.f32.mrf.mxu0
      %2797 = vmatprep.mubr.bf16.mxu0 0
      %2798 = vmatmul.mubr.bf16.gmra.mxu0 %v935
      %v2799 = vpop.f32.mrf.mxu0
      %v2800 = vadd.f32 0.0, %v2799
      %v2801 = vpop.f32.mrf.mxu0
      %v2802 = vpop.f32.mrf.mxu0
      %v2803 = vadd.f32 0.0, %v2802
      %v2804 = vpop.f32.mrf.mxu0
      %2805 = vmatprep.mubr.bf16.mxu0 0
      %2806 = vmatmul.mubr.bf16.gmra.mxu0 %v938
      %v2807 = vpop.f32.mrf.mxu0
      %v2808 = vadd.f32 0.0, %v2807
      %v2809 = vpop.f32.mrf.mxu0
      %v2810 = vpop.f32.mrf.mxu0
      %v2811 = vadd.f32 0.0, %v2810
      %v2812 = vpop.f32.mrf.mxu0
      %2813 = vmatprep.mubr.bf16.mxu0 0
      %2814 = vmatmul.mubr.bf16.gmra.mxu0 %v941
      %v2815 = vpop.f32.mrf.mxu0
      %v2816 = vadd.f32 0.0, %v2815
      %v2817 = vpop.f32.mrf.mxu0
      %v2818 = vpop.f32.mrf.mxu0
      %v2819 = vadd.f32 0.0, %v2818
      %v2820 = vpop.f32.mrf.mxu0
      %2821 = vmatprep.mubr.bf16.mxu0 0
      %2822 = vmatmul.mubr.bf16.gmra.mxu0 %v944
      %v2823 = vpop.f32.mrf.mxu0
      %v2824 = vadd.f32 0.0, %v2823
      %v2825 = vpop.f32.mrf.mxu0
      %v2826 = vpop.f32.mrf.mxu0
      %v2827 = vadd.f32 0.0, %v2826
      %v2828 = vpop.f32.mrf.mxu0
      %2829 = vmatprep.mubr.bf16.mxu0 0
      %2830 = vmatmul.mubr.bf16.gmra.mxu0 %v947
      %v2831 = vpop.f32.mrf.mxu0
      %v2832 = vadd.f32 0.0, %v2831
      %v2833 = vpop.f32.mrf.mxu0
      %v2834 = vpop.f32.mrf.mxu0
      %v2835 = vadd.f32 0.0, %v2834
      %v2836 = vpop.f32.mrf.mxu0
      %2837 = vmatprep.mubr.bf16.mxu0 0
      %2838 = vmatmul.mubr.bf16.gmra.mxu0 %v950
      %v2839 = vpop.f32.mrf.mxu0
      %v2840 = vadd.f32 0.0, %v2839
      %v2841 = vpop.f32.mrf.mxu0
      %v2842 = vpop.f32.mrf.mxu0
      %v2843 = vadd.f32 0.0, %v2842
      %v2844 = vpop.f32.mrf.mxu0
      %2845 = vmatprep.mubr.bf16.mxu0 0
      %2846 = vmatmul.mubr.bf16.gmra.mxu0 %v953
      %v2847 = vpop.f32.mrf.mxu0
      %v2848 = vadd.f32 0.0, %v2847
      %v2849 = vpop.f32.mrf.mxu0
      %v2850 = vpop.f32.mrf.mxu0
      %v2851 = vadd.f32 0.0, %v2850
      %v2852 = vpop.f32.mrf.mxu0
      %2853 = vmatprep.mubr.bf16.mxu0 0
      %2854 = vmatmul.mubr.bf16.gmra.mxu0 %v956
      %v2855 = vpop.f32.mrf.mxu0
      %v2856 = vadd.f32 0.0, %v2855
      %v2857 = vpop.f32.mrf.mxu0
      %v2858 = vpop.f32.mrf.mxu0
      %v2859 = vadd.f32 0.0, %v2858
      %v2860 = vpop.f32.mrf.mxu0
      %2861 = vmatprep.mubr.bf16.mxu0 0
      %2862 = vmatmul.mubr.bf16.gmra.mxu0 %v959
      %v2863 = vpop.f32.mrf.mxu0
      %v2864 = vadd.f32 0.0, %v2863
      %v2865 = vpop.f32.mrf.mxu0
      %v2866 = vpop.f32.mrf.mxu0
      %v2867 = vadd.f32 0.0, %v2866
      %v2868 = vpop.f32.mrf.mxu0
      %2869 = vmatprep.mubr.bf16.mxu0 0
      %2870 = vmatmul.mubr.bf16.gmra.mxu0 %v962
      %v2871 = vpop.f32.mrf.mxu0
      %v2872 = vadd.f32 0.0, %v2871
      %v2873 = vpop.f32.mrf.mxu0
      %v2874 = vpop.f32.mrf.mxu0
      %v2875 = vadd.f32 0.0, %v2874
      %v2876 = vpop.f32.mrf.mxu0
      %2877 = vmatprep.mubr.bf16.mxu0 0
      %2878 = vmatmul.mubr.bf16.gmra.mxu0 %v2082
      %v2879 = vpop.f32.mrf.mxu0
      %v2880 = vadd.f32 0.0, %v2879
      %v2881 = vpop.f32.mrf.mxu0
      %v2882 = vpop.f32.mrf.mxu0
      %v2883 = vadd.f32 0.0, %v2882
      %v2884 = vpop.f32.mrf.mxu0
      %2885 = vmatprep.mubr.bf16.mxu0 0
      %2886 = vmatmul.mubr.bf16.gmra.mxu0 %v2728
      %v2887 = vpop.f32.mrf.mxu0
      %v2888 = vadd.f32 0.0, %v2887
      %v2889 = vpop.f32.mrf.mxu0
      %v2890 = vpop.f32.mrf.mxu0
      %v2891 = vadd.f32 0.0, %v2890
      %v2892 = vpop.f32.mrf.mxu0
      %2893 = vdwg.mxu0
      %v2894 = vadd.f32 %v2666, %v2768
      %v2895 = vadd.f32 %v2667, %v2771
      %v2896 = vadd.f32 %v2668, %v2776
      %v2897 = vadd.f32 %v2669, %v2779
      %v2898 = vadd.f32 %v2670, %v2784
      %v2899 = vadd.f32 %v2671, %v2787
      %v2900 = vadd.f32 %v2672, %v2792
      %v2901 = vadd.f32 %v2673, %v2795
      %v2902 = vadd.f32 %v2674, %v2800
      %v2903 = vadd.f32 %v2675, %v2803
      %v2904 = vadd.f32 %v2676, %v2808
      %v2905 = vadd.f32 %v2677, %v2811
      %v2906 = vadd.f32 %v2678, %v2816
      %v2907 = vadd.f32 %v2679, %v2819
      %v2908 = vadd.f32 %v2680, %v2824
      %v2909 = vadd.f32 %v2681, %v2827
      %v2910 = vadd.f32 %v2682, %v2832
      %v2911 = vadd.f32 %v2683, %v2835
      %v2912 = vadd.f32 %v2684, %v2840
      %v2913 = vadd.f32 %v2685, %v2843
      %v2914 = vadd.f32 %v2686, %v2848
      %v2915 = vadd.f32 %v2687, %v2851
      %v2916 = vadd.f32 %v2688, %v2856
      %v2917 = vadd.f32 %v2689, %v2859
      %v2918 = vadd.f32 %v2690, %v2864
      %v2919 = vadd.f32 %v2691, %v2867
      %v2920 = vadd.f32 %v2692, %v2872
      %v2921 = vadd.f32 %v2693, %v2875
      %v2922 = vadd.f32 %v2694, %v2880
      %v2923 = vadd.f32 %v2695, %v2883
      %v2924 = vadd.f32 %v2696, %v2888
      %v2925 = vadd.f32 %v2697, %v2891
      %v2927 = vrot.slane %v474, 5
      %v2928 = vrot.slane %v2927, 4
      %v2929 = vrot.slane %v475, 5
      %v2930 = vsel %vm1439, %v2928, %v2929
      %v2931 = vrot.slane %v2929, 4
      %v2932 = vrot.slane %v476, 5
      %v2933 = vsel %vm1439, %v2931, %v2932
      %s2934 = scalar_lea.vmem %s3, 16
      %v2935 = vld [vmem:[%s2934] sm:$0x3]
      %v2936 = vunpack.c.l.b16 %v2930
      %v2937 = vunpack.c.l.b16 %v2933
      %v2938 = vpack.c.b16 %v2937, %v2936
      %v2940 = vsel %vm915, %v2938, 0
      %v2943 = vsel %vm964, %v2935, 0
      %2945 = vmatprep.subr.bf16.mxu0 0
      %2946 = vmatpush1.bf16.msra.mxu0 0
      %2947 = vmatprep.subr.bf16.mxu0 0
      %2948 = vmatpush1.bf16.msra.mxu0 0
      %2949 = vmatprep.subr.bf16.mxu0 0
      %2950 = vmatpush1.bf16.msra.mxu0 0
      %2951 = vmatprep.subr.bf16.mxu0 0
      %2952 = vmatpush1.bf16.msra.mxu0 0
      %2953 = vmatprep.subr.bf16.mxu0 0
      %2954 = vmatpush1.bf16.msra.mxu0 0
      %2955 = vmatprep.subr.bf16.mxu0 0
      %2956 = vmatpush1.bf16.msra.mxu0 0
      %2957 = vmatprep.subr.bf16.mxu0 0
      %2958 = vmatpush1.bf16.msra.mxu0 0
      %2959 = vmatprep.subr.bf16.mxu0 0
      %2960 = vmatpush1.bf16.msra.mxu0 %v2943
      %2961 = vmatprep.subr.bf16.mxu0 0
      %2962 = vmatpush2.bf16.msra.mxu0 0
      %2963 = vmatprep.subr.bf16.mxu0 0
      %2964 = vmatpush2.bf16.msra.mxu0 0
      %2965 = vmatprep.subr.bf16.mxu0 0
      %2966 = vmatpush2.bf16.msra.mxu0 0
      %2967 = vmatprep.subr.bf16.mxu0 0
      %2968 = vmatpush2.bf16.msra.mxu0 0
      %2969 = vmatprep.subr.bf16.mxu0 0
      %2970 = vmatpush2.bf16.msra.mxu0 0
      %2971 = vmatprep.subr.bf16.mxu0 0
      %2972 = vmatpush2.bf16.msra.mxu0 0
      %2973 = vmatprep.subr.bf16.mxu0 0
      %2974 = vmatpush2.bf16.msra.mxu0 0
      %2975 = vmatprep.subr.bf16.mxu0 0
      %2976 = vmatpush2.bf16.msra.mxu0 0
      %2977 = vmatprep.mubr.bf16.mxu0 0
      %2978 = vmatmul.mubr.bf16.gmra.mxu0 %v1609
      %v2979 = vpop.f32.mrf.mxu0
      %v2980 = vadd.f32 0.0, %v2979
      %v2981 = vpop.f32.mrf.mxu0
      %v2982 = vpop.f32.mrf.mxu0
      %v2983 = vadd.f32 0.0, %v2982
      %v2984 = vpop.f32.mrf.mxu0
      %2985 = vmatprep.mubr.bf16.mxu0 0
      %2986 = vmatmul.mubr.bf16.gmra.mxu0 %v1612
      %v2987 = vpop.f32.mrf.mxu0
      %v2988 = vadd.f32 0.0, %v2987
      %v2989 = vpop.f32.mrf.mxu0
      %v2990 = vpop.f32.mrf.mxu0
      %v2991 = vadd.f32 0.0, %v2990
      %v2992 = vpop.f32.mrf.mxu0
      %2993 = vmatprep.mubr.bf16.mxu0 0
      %2994 = vmatmul.mubr.bf16.gmra.mxu0 %v1615
      %v2995 = vpop.f32.mrf.mxu0
      %v2996 = vadd.f32 0.0, %v2995
      %v2997 = vpop.f32.mrf.mxu0
      %v2998 = vpop.f32.mrf.mxu0
      %v2999 = vadd.f32 0.0, %v2998
      %v3000 = vpop.f32.mrf.mxu0
      %3001 = vmatprep.mubr.bf16.mxu0 0
      %3002 = vmatmul.mubr.bf16.gmra.mxu0 %v1618
      %v3003 = vpop.f32.mrf.mxu0
      %v3004 = vadd.f32 0.0, %v3003
      %v3005 = vpop.f32.mrf.mxu0
      %v3006 = vpop.f32.mrf.mxu0
      %v3007 = vadd.f32 0.0, %v3006
      %v3008 = vpop.f32.mrf.mxu0
      %3009 = vmatprep.mubr.bf16.mxu0 0
      %3010 = vmatmul.mubr.bf16.gmra.mxu0 %v1621
      %v3011 = vpop.f32.mrf.mxu0
      %v3012 = vadd.f32 0.0, %v3011
      %v3013 = vpop.f32.mrf.mxu0
      %v3014 = vpop.f32.mrf.mxu0
      %v3015 = vadd.f32 0.0, %v3014
      %v3016 = vpop.f32.mrf.mxu0
      %3017 = vmatprep.mubr.bf16.mxu0 0
      %3018 = vmatmul.mubr.bf16.gmra.mxu0 %v1624
      %v3019 = vpop.f32.mrf.mxu0
      %v3020 = vadd.f32 0.0, %v3019
      %v3021 = vpop.f32.mrf.mxu0
      %v3022 = vpop.f32.mrf.mxu0
      %v3023 = vadd.f32 0.0, %v3022
      %v3024 = vpop.f32.mrf.mxu0
      %3025 = vmatprep.mubr.bf16.mxu0 0
      %3026 = vmatmul.mubr.bf16.gmra.mxu0 %v1627
      %v3027 = vpop.f32.mrf.mxu0
      %v3028 = vadd.f32 0.0, %v3027
      %v3029 = vpop.f32.mrf.mxu0
      %v3030 = vpop.f32.mrf.mxu0
      %v3031 = vadd.f32 0.0, %v3030
      %v3032 = vpop.f32.mrf.mxu0
      %3033 = vmatprep.mubr.bf16.mxu0 0
      %3034 = vmatmul.mubr.bf16.gmra.mxu0 %v1630
      %v3035 = vpop.f32.mrf.mxu0
      %v3036 = vadd.f32 0.0, %v3035
      %v3037 = vpop.f32.mrf.mxu0
      %v3038 = vpop.f32.mrf.mxu0
      %v3039 = vadd.f32 0.0, %v3038
      %v3040 = vpop.f32.mrf.mxu0
      %3041 = vmatprep.mubr.bf16.mxu0 0
      %3042 = vmatmul.mubr.bf16.gmra.mxu0 %v1633
      %v3043 = vpop.f32.mrf.mxu0
      %v3044 = vadd.f32 0.0, %v3043
      %v3045 = vpop.f32.mrf.mxu0
      %v3046 = vpop.f32.mrf.mxu0
      %v3047 = vadd.f32 0.0, %v3046
      %v3048 = vpop.f32.mrf.mxu0
      %3049 = vmatprep.mubr.bf16.mxu0 0
      %3050 = vmatmul.mubr.bf16.gmra.mxu0 %v1636
      %v3051 = vpop.f32.mrf.mxu0
      %v3052 = vadd.f32 0.0, %v3051
      %v3053 = vpop.f32.mrf.mxu0
      %v3054 = vpop.f32.mrf.mxu0
      %v3055 = vadd.f32 0.0, %v3054
      %v3056 = vpop.f32.mrf.mxu0
      %3057 = vmatprep.mubr.bf16.mxu0 0
      %3058 = vmatmul.mubr.bf16.gmra.mxu0 %v1639
      %v3059 = vpop.f32.mrf.mxu0
      %v3060 = vadd.f32 0.0, %v3059
      %v3061 = vpop.f32.mrf.mxu0
      %v3062 = vpop.f32.mrf.mxu0
      %v3063 = vadd.f32 0.0, %v3062
      %v3064 = vpop.f32.mrf.mxu0
      %3065 = vmatprep.mubr.bf16.mxu0 0
      %3066 = vmatmul.mubr.bf16.gmra.mxu0 %v1642
      %v3067 = vpop.f32.mrf.mxu0
      %v3068 = vadd.f32 0.0, %v3067
      %v3069 = vpop.f32.mrf.mxu0
      %v3070 = vpop.f32.mrf.mxu0
      %v3071 = vadd.f32 0.0, %v3070
      %v3072 = vpop.f32.mrf.mxu0
      %3073 = vmatprep.mubr.bf16.mxu0 0
      %3074 = vmatmul.mubr.bf16.gmra.mxu0 %v1645
      %v3075 = vpop.f32.mrf.mxu0
      %v3076 = vadd.f32 0.0, %v3075
      %v3077 = vpop.f32.mrf.mxu0
      %v3078 = vpop.f32.mrf.mxu0
      %v3079 = vadd.f32 0.0, %v3078
      %v3080 = vpop.f32.mrf.mxu0
      %3081 = vmatprep.mubr.bf16.mxu0 0
      %3082 = vmatmul.mubr.bf16.gmra.mxu0 %v1648
      %v3083 = vpop.f32.mrf.mxu0
      %v3084 = vadd.f32 0.0, %v3083
      %v3085 = vpop.f32.mrf.mxu0
      %v3086 = vpop.f32.mrf.mxu0
      %v3087 = vadd.f32 0.0, %v3086
      %v3088 = vpop.f32.mrf.mxu0
      %3089 = vmatprep.mubr.bf16.mxu0 0
      %3090 = vmatmul.mubr.bf16.gmra.mxu0 %v2294
      %v3091 = vpop.f32.mrf.mxu0
      %v3092 = vadd.f32 0.0, %v3091
      %v3093 = vpop.f32.mrf.mxu0
      %v3094 = vpop.f32.mrf.mxu0
      %v3095 = vadd.f32 0.0, %v3094
      %v3096 = vpop.f32.mrf.mxu0
      %3097 = vmatprep.mubr.bf16.mxu0 0
      %3098 = vmatmul.mubr.bf16.gmra.mxu0 %v2940
      %v3099 = vpop.f32.mrf.mxu0
      %v3100 = vadd.f32 0.0, %v3099
      %v3101 = vpop.f32.mrf.mxu0
      %v3102 = vpop.f32.mrf.mxu0
      %v3103 = vadd.f32 0.0, %v3102
      %v3104 = vpop.f32.mrf.mxu0
      %3105 = vdwg.mxu0
      %v3106 = vadd.f32 %v2894, %v2980
      %v3107 = vadd.f32 %v2895, %v2983
      %v3108 = vadd.f32 %v2896, %v2988
      %v3109 = vadd.f32 %v2897, %v2991
      %v3110 = vadd.f32 %v2898, %v2996
      %v3111 = vadd.f32 %v2899, %v2999
      %v3112 = vadd.f32 %v2900, %v3004
      %v3113 = vadd.f32 %v2901, %v3007
      %v3114 = vadd.f32 %v2902, %v3012
      %v3115 = vadd.f32 %v2903, %v3015
      %v3116 = vadd.f32 %v2904, %v3020
      %v3117 = vadd.f32 %v2905, %v3023
      %v3118 = vadd.f32 %v2906, %v3028
      %v3119 = vadd.f32 %v2907, %v3031
      %v3120 = vadd.f32 %v2908, %v3036
      %v3121 = vadd.f32 %v2909, %v3039
      %v3122 = vadd.f32 %v2910, %v3044
      %v3123 = vadd.f32 %v2911, %v3047
      %v3124 = vadd.f32 %v2912, %v3052
      %v3125 = vadd.f32 %v2913, %v3055
      %v3126 = vadd.f32 %v2914, %v3060
      %v3127 = vadd.f32 %v2915, %v3063
      %v3128 = vadd.f32 %v2916, %v3068
      %v3129 = vadd.f32 %v2917, %v3071
      %v3130 = vadd.f32 %v2918, %v3076
      %v3131 = vadd.f32 %v2919, %v3079
      %v3132 = vadd.f32 %v2920, %v3084
      %v3133 = vadd.f32 %v2921, %v3087
      %v3134 = vadd.f32 %v2922, %v3092
      %v3135 = vadd.f32 %v2923, %v3095
      %v3136 = vadd.f32 %v2924, %v3100
      %v3137 = vadd.f32 %v2925, %v3103
      %v3138 = vld [vmem:[%s4] sm:$0x1]
      %v3140 = vlaneseq
      %v3141 = vshrl.u32 %v3140, 7
      %v3142 = vsub.s32 0, %v3141
      %v3143 = vrot.slane %v3138, %v3142
      %v3145 = vmul.f32 %v3106, %v3143
      %v3146 = vmul.f32 %v3107, %v3143
      %v3147 = vmul.f32 %v3108, %v3143
      %v3148 = vmul.f32 %v3109, %v3143
      %v3149 = vmul.f32 %v3110, %v3143
      %v3150 = vmul.f32 %v3111, %v3143
      %v3151 = vmul.f32 %v3112, %v3143
      %v3152 = vmul.f32 %v3113, %v3143
      %v3153 = vmul.f32 %v3114, %v3143
      %v3154 = vmul.f32 %v3115, %v3143
      %v3155 = vmul.f32 %v3116, %v3143
      %v3156 = vmul.f32 %v3117, %v3143
      %v3157 = vmul.f32 %v3118, %v3143
      %v3158 = vmul.f32 %v3119, %v3143
      %v3159 = vmul.f32 %v3120, %v3143
      %v3160 = vmul.f32 %v3121, %v3143
      %v3161 = vmul.f32 %v3122, %v3143
      %v3162 = vmul.f32 %v3123, %v3143
      %v3163 = vmul.f32 %v3124, %v3143
      %v3164 = vmul.f32 %v3125, %v3143
      %v3165 = vmul.f32 %v3126, %v3143
      %v3166 = vmul.f32 %v3127, %v3143
      %v3167 = vmul.f32 %v3128, %v3143
      %v3168 = vmul.f32 %v3129, %v3143
      %v3169 = vmul.f32 %v3130, %v3143
      %v3170 = vmul.f32 %v3131, %v3143
      %v3171 = vmul.f32 %v3132, %v3143
      %v3172 = vmul.f32 %v3133, %v3143
      %v3173 = vmul.f32 %v3134, %v3143
      %v3174 = vmul.f32 %v3135, %v3143
      %v3175 = vmul.f32 %v3136, %v3143
      %v3176 = vmul.f32 %v3137, %v3143
      %v3177 = vld [vmem:[%s5] sm:$0x1]
      %v3179 = vlaneseq
      %v3180 = vshrl.u32 %v3179, 7
      %v3181 = vsub.s32 0, %v3180
      %v3182 = vrot.slane %v3177, %v3181
      %v3184 = vadd.f32 %v3145, %v3182
      %v3185 = vadd.f32 %v3146, %v3182
      %v3186 = vadd.f32 %v3147, %v3182
      %v3187 = vadd.f32 %v3148, %v3182
      %v3188 = vadd.f32 %v3149, %v3182
      %v3189 = vadd.f32 %v3150, %v3182
      %v3190 = vadd.f32 %v3151, %v3182
      %v3191 = vadd.f32 %v3152, %v3182
      %v3192 = vadd.f32 %v3153, %v3182
      %v3193 = vadd.f32 %v3154, %v3182
      %v3194 = vadd.f32 %v3155, %v3182
      %v3195 = vadd.f32 %v3156, %v3182
      %v3196 = vadd.f32 %v3157, %v3182
      %v3197 = vadd.f32 %v3158, %v3182
      %v3198 = vadd.f32 %v3159, %v3182
      %v3199 = vadd.f32 %v3160, %v3182
      %v3200 = vadd.f32 %v3161, %v3182
      %v3201 = vadd.f32 %v3162, %v3182
      %v3202 = vadd.f32 %v3163, %v3182
      %v3203 = vadd.f32 %v3164, %v3182
      %v3204 = vadd.f32 %v3165, %v3182
      %v3205 = vadd.f32 %v3166, %v3182
      %v3206 = vadd.f32 %v3167, %v3182
      %v3207 = vadd.f32 %v3168, %v3182
      %v3208 = vadd.f32 %v3169, %v3182
      %v3209 = vadd.f32 %v3170, %v3182
      %v3210 = vadd.f32 %v3171, %v3182
      %v3211 = vadd.f32 %v3172, %v3182
      %v3212 = vadd.f32 %v3173, %v3182
      %v3213 = vadd.f32 %v3174, %v3182
      %v3214 = vadd.f32 %v3175, %v3182
      %v3215 = vadd.f32 %v3176, %v3182
      %v3216 = vmax.f32 %v3184, 0.0
      %v3217 = vmax.f32 %v3185, 0.0
      %v3218 = vmax.f32 %v3186, 0.0
      %v3219 = vmax.f32 %v3187, 0.0
      %v3220 = vmax.f32 %v3188, 0.0
      %v3221 = vmax.f32 %v3189, 0.0
      %v3222 = vmax.f32 %v3190, 0.0
      %v3223 = vmax.f32 %v3191, 0.0
      %v3224 = vmax.f32 %v3192, 0.0
      %v3225 = vmax.f32 %v3193, 0.0
      %v3226 = vmax.f32 %v3194, 0.0
      %v3227 = vmax.f32 %v3195, 0.0
      %v3228 = vmax.f32 %v3196, 0.0
      %v3229 = vmax.f32 %v3197, 0.0
      %v3230 = vmax.f32 %v3198, 0.0
      %v3231 = vmax.f32 %v3199, 0.0
      %v3232 = vmax.f32 %v3200, 0.0
      %v3233 = vmax.f32 %v3201, 0.0
      %v3234 = vmax.f32 %v3202, 0.0
      %v3235 = vmax.f32 %v3203, 0.0
      %v3236 = vmax.f32 %v3204, 0.0
      %v3237 = vmax.f32 %v3205, 0.0
      %v3238 = vmax.f32 %v3206, 0.0
      %v3239 = vmax.f32 %v3207, 0.0
      %v3240 = vmax.f32 %v3208, 0.0
      %v3241 = vmax.f32 %v3209, 0.0
      %v3242 = vmax.f32 %v3210, 0.0
      %v3243 = vmax.f32 %v3211, 0.0
      %v3244 = vmax.f32 %v3212, 0.0
      %v3245 = vmax.f32 %v3213, 0.0
      %v3246 = vmax.f32 %v3214, 0.0
      %v3247 = vmax.f32 %v3215, 0.0
      %vm3248 = vcmask 64512
      %3249 = vst.msk [vmem:[%s420] sm:$0xff] %vm3248, %v3216
      %3250 = vst.msk [vmem:[%s420 + $0x8] sm:$0xff] %vm3248, %v3217
      %3251 = vst.msk [vmem:[%s420 + $0x10] sm:$0xff] %vm3248, %v3218
      %3252 = vst.msk [vmem:[%s420 + $0x18] sm:$0xff] %vm3248, %v3219
      %3253 = vst.msk [vmem:[%s420 + $0x20] sm:$0xff] %vm3248, %v3220
      %3254 = vst.msk [vmem:[%s420 + $0x28] sm:$0xff] %vm3248, %v3221
      %3255 = vst.msk [vmem:[%s420 + $0x30] sm:$0xff] %vm3248, %v3222
      %3256 = vst.msk [vmem:[%s420 + $0x38] sm:$0xff] %vm3248, %v3223
      %3257 = vst.msk [vmem:[%s420 + $0x40] sm:$0xff] %vm3248, %v3224
      %3258 = vst.msk [vmem:[%s420 + $0x48] sm:$0xff] %vm3248, %v3225
      %3259 = vst.msk [vmem:[%s420 + $0x50] sm:$0xff] %vm3248, %v3226
      %3260 = vst.msk [vmem:[%s420 + $0x58] sm:$0xff] %vm3248, %v3227
      %3261 = vst.msk [vmem:[%s420 + $0x60] sm:$0xff] %vm3248, %v3228
      %3262 = vst.msk [vmem:[%s420 + $0x68] sm:$0xff] %vm3248, %v3229
      %3263 = vst.msk [vmem:[%s420 + $0x70] sm:$0xff] %vm3248, %v3230
      %3264 = vst.msk [vmem:[%s420 + $0x78] sm:$0xff] %vm3248, %v3231
      %3265 = vst.msk [vmem:[%s420 + $0x80] sm:$0xff] %vm3248, %v3232
      %3266 = vst.msk [vmem:[%s420 + $0x88] sm:$0xff] %vm3248, %v3233
      %3267 = vst.msk [vmem:[%s420 + $0x90] sm:$0xff] %vm3248, %v3234
      %3268 = vst.msk [vmem:[%s420 + $0x98] sm:$0xff] %vm3248, %v3235
      %3269 = vst.msk [vmem:[%s420 + $0xa0] sm:$0xff] %vm3248, %v3236
      %3270 = vst.msk [vmem:[%s420 + $0xa8] sm:$0xff] %vm3248, %v3237
      %3271 = vst.msk [vmem:[%s420 + $0xb0] sm:$0xff] %vm3248, %v3238
      %3272 = vst.msk [vmem:[%s420 + $0xb8] sm:$0xff] %vm3248, %v3239
      %3273 = vst.msk [vmem:[%s420 + $0xc0] sm:$0xff] %vm3248, %v3240
      %3274 = vst.msk [vmem:[%s420 + $0xc8] sm:$0xff] %vm3248, %v3241
      %3275 = vst.msk [vmem:[%s420 + $0xd0] sm:$0xff] %vm3248, %v3242
      %3276 = vst.msk [vmem:[%s420 + $0xd8] sm:$0xff] %vm3248, %v3243
      %3277 = vst.msk [vmem:[%s420 + $0xe0] sm:$0xff] %vm3248, %v3244
      %3278 = vst.msk [vmem:[%s420 + $0xe8] sm:$0xff] %vm3248, %v3245
      %3279 = vst.msk [vmem:[%s420 + $0xf0] sm:$0xff] %vm3248, %v3246
      %3280 = vst.msk [vmem:[%s420 + $0xf8] sm:$0xff] %vm3248, %v3247
      %s3281 = smul.u32 32, %s22
      %p3282 = scmp.lt.s32.totalorder %s21, 1
      %s3283 = scalar_select %p3282, %s21, 1
      %p3284 = scmp.lt.s32.totalorder %s3281, 31
      %s3285 = scalar_select %p3284, %s3281, 31
      %s3286 = smul.addr %s3283, 32
      %s3287 = sadd.s32 %s3285, %s3286
      %s3288 = smul.addr %s3287, 8
      %s3289 = scalar_lea.vmem %s6, %s3288
      // Predicated region
      $region45: #{convolutional_block.3} parent=43 // pred_check
        %p3290 = pneg %p206
      $region46: #{convolutional_block.3} parent=43 // pred_check_branch
        %3292 = sbr.rel (%p3290) target = $region48
      $region47: #{convolutional_block.3} parent=43 // pred_region
        %s3293 = smul.u32 32, %s22
      $region48: #{convolutional_block.3} parent=43 // pred_fallthru
        _
    $region44: #{convolutional_block.3} parent=5 // pred_fallthru
      _
    %p3294 = scmp.le.s32.totalorder 2, %s12
    // Predicated region
    $region49: #{convolutional_block.3} parent=5 // pred_check
      %p3295 = pneg %p3294
    $region50: #{convolutional_block.3} parent=5 // pred_check_branch
      %3297 = sbr.rel (%p3295) target = $region52
    $region51: #{convolutional_block.3} parent=5 // pred_region
      %s3298 = ssub.s32 %s12, 2
      // Predicated region
      $region53: #{convolutional_block.3} parent=51 // pred_check
        %p3299 = pneg %p212
      $region54: #{convolutional_block.3} parent=51 // pred_check_branch
        %3301 = sbr.rel (%p3299) target = $region56
      $region55: #{convolutional_block.3} parent=51 // pred_region
        %s3302 = smul.u32 32, %s24
        %p3303 = scmp.lt.s32.totalorder %s23, 1
        %s3304 = scalar_select %p3303, %s23, 1
        %p3305 = scmp.lt.s32.totalorder %s3302, 31
        %s3306 = scalar_select %p3305, %s3302, 31
        %s3307 = smul.addr %s3304, 32
        %s3308 = sadd.s32 %s3306, %s3307
        %s3309 = smul.addr %s3308, 8
        %s3310 = scalar_lea.vmem %s6, %s3309
      $region56: #{convolutional_block.3} parent=51 // pred_fallthru
        _
    $region52: #{convolutional_block.3} parent=5 // pred_fallthru
      _
  $region6: #{convolutional_block.3} parent=0 // loop_footer
    %s16 = sadd.s32 1, %s12
  $region7: #{convolutional_block.3} parent=0 // loop_footer_branch
    %11 = sbr.rel target = $region3
  $region8: #{convolutional_block.3} parent=0 // loop_exit
    _

</llo_original>
